<compile_context>
chip_gen: v7x
topology: tpu7x:2x2x1
jax: 0.10.0
libtpu: 0.0.40
codegen_flags: <defaults>
</compile_context>

<pallas_src>
import jax
import jax.numpy as jnp
from jax import lax
from jax.experimental import pallas as pl
from jax.experimental.pallas import tpu as pltpu

EPS = 1e-5
IN_SIZE = 28 * 28
HIDDEN = 256
OUT_SIZE = 10
OUT_PAD = 128              # lane-dense padded output width (sliced to 10 outside)
N_REPEAT = 98              # hidden (Linear+ReLU+BN) blocks after the first layer
K_LAYERS = 14              # hidden layers processed per grid step (98 = 7 * 14)
NUM_STEPS = N_REPEAT // K_LAYERS

# bf16 weights / MXU operands (f32 accumulation + f32 BN math).  Set False to
# reproduce the f32 PyTorch reference bit-for-bit in the matmuls.
USE_BF16_WEIGHTS = True


# ---------------------------------------------------------------- kernel ----

def _relu_bn(y, bias, gamma, beta):
    """ReLU(y + bias) followed by training-mode BatchNorm1d (batch stats).

    Uses the two-moment form (E[y], E[y^2]) so the two reductions are
    independent, shortening the per-layer dependent chain.  All math in f32.
    """
    y = jnp.maximum(y + bias, 0.0)
    inv_b = 1.0 / y.shape[0]
    s1 = jnp.sum(y, axis=0, keepdims=True)
    s2 = jnp.sum(y * y, axis=0, keepdims=True)
    mu = s1 * inv_b
    var = jnp.maximum(s2 * inv_b - mu * mu, 0.0)   # clamp guards cancellation
    scale = gamma * lax.rsqrt(var + EPS)           # folded BN affine
    shift = beta - mu * scale
    return y * scale + shift


def _fused_kernel(x_ref, w1_ref, p1_ref, wh_ref, ph_ref, wf_ref, bf_ref,
                  out_ref, h_ref):
    step = pl.program_id(0)
    cdt = w1_ref.dtype                             # MXU operand dtype (bf16 or f32)

    # --- prologue: first Linear(784,256) + ReLU + BN, only on step 0 ----------
    @pl.when(step == 0)
    def _():
        y = jnp.dot(x_ref[...].astype(cdt), w1_ref[...],
                    preferred_element_type=jnp.float32)
        p1 = p1_ref[...]                           # [3, HIDDEN] = bias/gamma/beta
        h_ref[...] = _relu_bn(y, p1[0:1, :], p1[1:2, :], p1[2:3, :])

    # --- K_LAYERS hidden Linear(256,256)+ReLU+BN layers per grid step ---------
    # NOTE: this read must stay AFTER the prologue write (program order).
    h = h_ref[...]
    for k in range(K_LAYERS):                      # static unroll
        y = jnp.dot(h.astype(cdt), wh_ref[k], preferred_element_type=jnp.float32)
        p = ph_ref[k]                              # [3, HIDDEN]
        h = _relu_bn(y, p[0:1, :], p[1:2, :], p[2:3, :])
    h_ref[...] = h

    # --- epilogue: final Linear(256,10) (zero-padded to 128 lanes) ------------
    @pl.when(step == NUM_STEPS - 1)
    def _():
        out_ref[...] = (jnp.dot(h.astype(cdt), wf_ref[...],
                                preferred_element_type=jnp.float32)
                        + bf_ref[...])


# --------------------------------------------------------------- wrapper ----

def mnist_net_forward(x_nchw, params):
    B = x_nchw.shape[0]
    x = x_nchw.reshape(B, -1).astype(jnp.float32)     # x.view(x.size(0), -1)

    out_pad = pl.pallas_call(
        _fused_kernel,
        out_shape=jax.ShapeDtypeStruct((B, OUT_PAD), jnp.float32),
        grid_spec=pltpu.PrefetchScalarGridSpec(
            num_scalar_prefetch=0,
            grid=(NUM_STEPS,),
            in_specs=[
                pl.BlockSpec((B, IN_SIZE), lambda s: (0, 0)),                 # x
                pl.BlockSpec((IN_SIZE, HIDDEN), lambda s: (0, 0)),            # W1^T
                pl.BlockSpec((3, HIDDEN), lambda s: (0, 0)),                  # b1/g1/beta1
                pl.BlockSpec((K_LAYERS, HIDDEN, HIDDEN), lambda s: (s, 0, 0)),# Wh^T stack
                pl.BlockSpec((K_LAYERS, 3, HIDDEN), lambda s: (s, 0, 0)),     # bh/gh/betah
                pl.BlockSpec((HIDDEN, OUT_PAD), lambda s: (0, 0)),            # Wf^T (padded)
                pl.BlockSpec((1, OUT_PAD), lambda s: (0, 0)),                 # bf (padded)
            ],
            out_specs=pl.BlockSpec((B, OUT_PAD), lambda s: (0, 0)),
            scratch_shapes=[pltpu.VMEM((B, HIDDEN), jnp.float32)],            # resident act
        ),
        compiler_params=pltpu.CompilerParams(
            dimension_semantics=("arbitrary",)),      # carried state -> sequential grid
    )(x, params["w1_t"], params["p1"], params["wh"], params["ph"],
      params["wf_t_pad"], params["bf_pad"])

    return out_pad[:, :OUT_SIZE]


# ------------------------------------------------------- parameter set-up ---

def init_params(key, weight_dtype=jnp.bfloat16 if USE_BF16_WEIGHTS else jnp.float32):
    """Deterministic init matching nn.Module parameter shapes.
    Linear weights/biases ~ U(-1/sqrt(fan_in), 1/sqrt(fan_in)) (PyTorch default),
    BatchNorm gamma=1, beta=0.  Weights stored pre-transposed as [in, out] in
    `weight_dtype`; biases/BN params stay f32."""
    keys = jax.random.split(key, 3)

    def lin(k, fan_in, fan_out):
        kw, kb = jax.random.split(k)
        bound = 1.0 / jnp.sqrt(jnp.float32(fan_in))
        w_t = jax.random.uniform(kw, (fan_in, fan_out), jnp.float32, -bound, bound)
        b = jax.random.uniform(kb, (fan_out,), jnp.float32, -bound, bound)
        return w_t, b

    # First layer + its BN params, packed [3, HIDDEN] = (bias, gamma, beta).
    w1_t, b1 = lin(keys[0], IN_SIZE, HIDDEN)
    p1 = jnp.stack([b1,
                    jnp.ones((HIDDEN,), jnp.float32),
                    jnp.zeros((HIDDEN,), jnp.float32)], axis=0)

    # 98 hidden layers: weights [98,256,256], packed params [98,3,256].
    hk = jax.random.split(keys[1], N_REPEAT)
    wh, bh = [], []
    for i in range(N_REPEAT):
        w_t, b = lin(hk[i], HIDDEN, HIDDEN)
        wh.append(w_t)
        bh.append(b)
    wh = jnp.stack(wh)                                    # [98, 256, 256]
    bh = jnp.stack(bh)                                    # [98, 256]
    ph = jnp.stack([bh,
                    jnp.ones((N_REPEAT, HIDDEN), jnp.float32),
                    jnp.zeros((N_REPEAT, HIDDEN), jnp.float32)], axis=1)  # [98,3,256]

    # Final layer, zero-padded from 10 to 128 output lanes (full-lane stores).
    wf_t, bf = lin(keys[2], HIDDEN, OUT_SIZE)
    wf_t_pad = jnp.zeros((HIDDEN, OUT_PAD), jnp.float32).at[:, :OUT_SIZE].set(wf_t)
    bf_pad = jnp.zeros((1, OUT_PAD), jnp.float32).at[0, :OUT_SIZE].set(bf)

    return dict(w1_t=w1_t.astype(weight_dtype),
                p1=p1,
                wh=wh.astype(weight_dtype),
                ph=ph,
                wf_t_pad=wf_t_pad.astype(weight_dtype),
                bf_pad=bf_pad)


# ----------------------------------------------------------------- driver ---

if __name__ == "__main__":
    key = jax.random.PRNGKey(0)
    kx, kp = jax.random.split(key)
    # MNIST-like NCHW input at small batch (B=8 keeps the sublane dim aligned).
    x = jax.random.normal(kx, (8, 1, 28, 28), jnp.float32)
    params = init_params(kp)

    out = mnist_net_forward(x, params)
    jax.block_until_ready(out)
    assert out.shape == (8, OUT_SIZE) and out.dtype == jnp.float32
    assert bool(jnp.all(jnp.isfinite(out)))
    print("KERNEL_OK")
</pallas_src>

<mosaic_0001>
module attributes {stable_mosaic.version = 11 : i64} {
  func.func @_fused_kernel(%arg0: i32, %arg1: memref<8x784xf32, #tpu.memory_space<vmem>>, %arg2: memref<784x256xbf16, #tpu.memory_space<vmem>>, %arg3: memref<3x256xf32, #tpu.memory_space<vmem>>, %arg4: memref<14x256x256xbf16, #tpu.memory_space<vmem>>, %arg5: memref<14x3x256xf32, #tpu.memory_space<vmem>>, %arg6: memref<256x128xbf16, #tpu.memory_space<vmem>>, %arg7: memref<1x128xf32, #tpu.memory_space<vmem>>, %arg8: memref<8x128xf32, #tpu.memory_space<vmem>>, %arg9: memref<8x256xf32, #tpu.memory_space<vmem>>) attributes {dimension_semantics = [#tpu.dimension_semantics<arbitrary>], iteration_bounds = array<i64: 7>, scalar_prefetch = 0 : i64, scratch_operands = 1 : i64, tpu.core_type = #tpu.core_type<tc>, window_params = [{pipeline_mode = #tpu.pipeline_mode<synchronous>, transform_indices = @transform_0, window_bounds = array<i64: 8, 784>}, {pipeline_mode = #tpu.pipeline_mode<synchronous>, transform_indices = @transform_1, window_bounds = array<i64: 784, 256>}, {pipeline_mode = #tpu.pipeline_mode<synchronous>, transform_indices = @transform_2, window_bounds = array<i64: 3, 256>}, {transform_indices = @transform_3, window_bounds = array<i64: 14, 256, 256>}, {transform_indices = @transform_4, window_bounds = array<i64: 14, 3, 256>}, {pipeline_mode = #tpu.pipeline_mode<synchronous>, transform_indices = @transform_5, window_bounds = array<i64: 256, 128>}, {pipeline_mode = #tpu.pipeline_mode<synchronous>, transform_indices = @transform_6, window_bounds = array<i64: 1, 128>}, {pipeline_mode = #tpu.pipeline_mode<synchronous>, transform_indices = @transform_7, window_bounds = array<i64: 8, 128>}]} {
    %c0_i32 = arith.constant 0 : i32
    %0 = arith.cmpi eq, %arg0, %c0_i32 : i32
    %1 = arith.extui %0 : i1 to i32
    %c0_i32_0 = arith.constant 0 : i32
    %2 = arith.cmpi ne, %1, %c0_i32_0 : i32
    scf.if %2 {
      %c0_187 = arith.constant 0 : index
      %c0_188 = arith.constant 0 : index
      %512 = vector.load %arg1[%c0_187, %c0_188] : memref<8x784xf32, #tpu.memory_space<vmem>>, vector<8x784xf32>
      %513 = arith.truncf %512 : vector<8x784xf32> to vector<8x784xbf16>
      %c0_189 = arith.constant 0 : index
      %c0_190 = arith.constant 0 : index
      %514 = vector.load %arg2[%c0_189, %c0_190] : memref<784x256xbf16, #tpu.memory_space<vmem>>, vector<784x256xbf16>
      %cst_191 = arith.constant dense<0.000000e+00> : vector<8x256xf32>
      %515 = tpu.matmul %513, %514, %cst_191 {dimension_numbers = #tpu.dot_dimension_numbers<[1], [0], [0], [1], [0, 0, 1, 1], [], []>} : vector<8x784xbf16>, vector<784x256xbf16>, vector<8x256xf32> -> vector<8x256xf32>
      %c0_192 = arith.constant 0 : index
      %c0_193 = arith.constant 0 : index
      %516 = vector.load %arg3[%c0_192, %c0_193] : memref<3x256xf32, #tpu.memory_space<vmem>>, vector<3x256xf32>
      %517 = vector.extract_strided_slice %516 {offsets = [0, 0], sizes = [1, 256], strides = [1, 1]} : vector<3x256xf32> to vector<1x256xf32>
      %518 = vector.extract_strided_slice %516 {offsets = [1, 0], sizes = [1, 256], strides = [1, 1]} : vector<3x256xf32> to vector<1x256xf32>
      %519 = vector.extract_strided_slice %516 {offsets = [2, 0], sizes = [1, 256], strides = [1, 1]} : vector<3x256xf32> to vector<1x256xf32>
      %520 = vector.broadcast %517 : vector<1x256xf32> to vector<8x256xf32>
      %521 = arith.addf %515, %520 : vector<8x256xf32>
      %cst_194 = arith.constant 0.000000e+00 : f32
      %522 = vector.broadcast %cst_194 : f32 to vector<8x256xf32>
      %523 = arith.maximumf %521, %522 : vector<8x256xf32>
      %cst_195 = arith.constant dense<0.000000e+00> : vector<256xf32>
      %524 = vector.multi_reduction <add>, %523, %cst_195 [0] : vector<8x256xf32> to vector<256xf32>
      %525 = vector.shape_cast %524 : vector<256xf32> to vector<1x256xf32>
      %526 = arith.mulf %523, %523 : vector<8x256xf32>
      %cst_196 = arith.constant dense<0.000000e+00> : vector<256xf32>
      %527 = vector.multi_reduction <add>, %526, %cst_196 [0] : vector<8x256xf32> to vector<256xf32>
      %528 = vector.shape_cast %527 : vector<256xf32> to vector<1x256xf32>
      %cst_197 = arith.constant 1.250000e-01 : f32
      %529 = vector.broadcast %cst_197 : f32 to vector<1x256xf32>
      %530 = arith.mulf %525, %529 : vector<1x256xf32>
      %cst_198 = arith.constant 1.250000e-01 : f32
      %531 = vector.broadcast %cst_198 : f32 to vector<1x256xf32>
      %532 = arith.mulf %528, %531 : vector<1x256xf32>
      %533 = arith.mulf %530, %530 : vector<1x256xf32>
      %534 = arith.subf %532, %533 : vector<1x256xf32>
      %cst_199 = arith.constant 0.000000e+00 : f32
      %535 = vector.broadcast %cst_199 : f32 to vector<1x256xf32>
      %536 = arith.maximumf %534, %535 : vector<1x256xf32>
      %cst_200 = arith.constant 9.99999974E-6 : f32
      %537 = vector.broadcast %cst_200 : f32 to vector<1x256xf32>
      %538 = arith.addf %536, %537 : vector<1x256xf32>
      %539 = math.rsqrt %538 : vector<1x256xf32>
      %540 = arith.mulf %518, %539 : vector<1x256xf32>
      %541 = arith.mulf %530, %540 : vector<1x256xf32>
      %542 = arith.subf %519, %541 : vector<1x256xf32>
      %543 = vector.broadcast %540 : vector<1x256xf32> to vector<8x256xf32>
      %544 = arith.mulf %523, %543 : vector<8x256xf32>
      %545 = vector.broadcast %542 : vector<1x256xf32> to vector<8x256xf32>
      %546 = arith.addf %544, %545 : vector<8x256xf32>
      %c0_201 = arith.constant 0 : index
      %c0_202 = arith.constant 0 : index
      %547 = vector.load %arg9[%c0_201, %c0_202] : memref<8x256xf32, #tpu.memory_space<vmem>>, vector<8x256xf32>
      tpu.vector_store %arg9[%c0_201, %c0_202], %546 {strides = array<i32>} : memref<8x256xf32, #tpu.memory_space<vmem>>, vector<8x256xf32>,
    } else {
    }
    %c0 = arith.constant 0 : index
    %c0_1 = arith.constant 0 : index
    %3 = vector.load %arg9[%c0, %c0_1] : memref<8x256xf32, #tpu.memory_space<vmem>>, vector<8x256xf32>
    %4 = arith.truncf %3 : vector<8x256xf32> to vector<8x256xbf16>
    %c0_2 = arith.constant 0 : index
    %c0_3 = arith.constant 0 : index
    %c0_4 = arith.constant 0 : index
    %5 = vector.load %arg4[%c0_2, %c0_3, %c0_4] : memref<14x256x256xbf16, #tpu.memory_space<vmem>>, vector<1x256x256xbf16>
    %6 = vector.shape_cast %5 : vector<1x256x256xbf16> to vector<256x256xbf16>
    %cst = arith.constant dense<0.000000e+00> : vector<8x256xf32>
    %7 = tpu.matmul %4, %6, %cst {dimension_numbers = #tpu.dot_dimension_numbers<[1], [0], [0], [1], [0, 0, 1, 1], [], []>} : vector<8x256xbf16>, vector<256x256xbf16>, vector<8x256xf32> -> vector<8x256xf32>
    %c0_5 = arith.constant 0 : index
    %c0_6 = arith.constant 0 : index
    %c0_7 = arith.constant 0 : index
    %8 = vector.load %arg5[%c0_5, %c0_6, %c0_7] : memref<14x3x256xf32, #tpu.memory_space<vmem>>, vector<1x3x256xf32>
    %9 = vector.shape_cast %8 : vector<1x3x256xf32> to vector<3x256xf32>
    %10 = vector.extract_strided_slice %9 {offsets = [0, 0], sizes = [1, 256], strides = [1, 1]} : vector<3x256xf32> to vector<1x256xf32>
    %11 = vector.extract_strided_slice %9 {offsets = [1, 0], sizes = [1, 256], strides = [1, 1]} : vector<3x256xf32> to vector<1x256xf32>
    %12 = vector.extract_strided_slice %9 {offsets = [2, 0], sizes = [1, 256], strides = [1, 1]} : vector<3x256xf32> to vector<1x256xf32>
    %13 = vector.broadcast %10 : vector<1x256xf32> to vector<8x256xf32>
    %14 = arith.addf %7, %13 : vector<8x256xf32>
    %cst_8 = arith.constant 0.000000e+00 : f32
    %15 = vector.broadcast %cst_8 : f32 to vector<8x256xf32>
    %16 = arith.maximumf %14, %15 : vector<8x256xf32>
    %cst_9 = arith.constant dense<0.000000e+00> : vector<256xf32>
    %17 = vector.multi_reduction <add>, %16, %cst_9 [0] : vector<8x256xf32> to vector<256xf32>
    %18 = vector.shape_cast %17 : vector<256xf32> to vector<1x256xf32>
    %19 = arith.mulf %16, %16 : vector<8x256xf32>
    %cst_10 = arith.constant dense<0.000000e+00> : vector<256xf32>
    %20 = vector.multi_reduction <add>, %19, %cst_10 [0] : vector<8x256xf32> to vector<256xf32>
    %21 = vector.shape_cast %20 : vector<256xf32> to vector<1x256xf32>
    %cst_11 = arith.constant 1.250000e-01 : f32
    %22 = vector.broadcast %cst_11 : f32 to vector<1x256xf32>
    %23 = arith.mulf %18, %22 : vector<1x256xf32>
    %cst_12 = arith.constant 1.250000e-01 : f32
    %24 = vector.broadcast %cst_12 : f32 to vector<1x256xf32>
    %25 = arith.mulf %21, %24 : vector<1x256xf32>
    %26 = arith.mulf %23, %23 : vector<1x256xf32>
    %27 = arith.subf %25, %26 : vector<1x256xf32>
    %cst_13 = arith.constant 0.000000e+00 : f32
    %28 = vector.broadcast %cst_13 : f32 to vector<1x256xf32>
    %29 = arith.maximumf %27, %28 : vector<1x256xf32>
    %cst_14 = arith.constant 9.99999974E-6 : f32
    %30 = vector.broadcast %cst_14 : f32 to vector<1x256xf32>
    %31 = arith.addf %29, %30 : vector<1x256xf32>
    %32 = math.rsqrt %31 : vector<1x256xf32>
    %33 = arith.mulf %11, %32 : vector<1x256xf32>
    %34 = arith.mulf %23, %33 : vector<1x256xf32>
    %35 = arith.subf %12, %34 : vector<1x256xf32>
    %36 = vector.broadcast %33 : vector<1x256xf32> to vector<8x256xf32>
    %37 = arith.mulf %16, %36 : vector<8x256xf32>
    %38 = vector.broadcast %35 : vector<1x256xf32> to vector<8x256xf32>
    %39 = arith.addf %37, %38 : vector<8x256xf32>
    %40 = arith.truncf %39 : vector<8x256xf32> to vector<8x256xbf16>
    %c1 = arith.constant 1 : index
    %c0_15 = arith.constant 0 : index
    %c0_16 = arith.constant 0 : index
    %41 = vector.load %arg4[%c1, %c0_15, %c0_16] : memref<14x256x256xbf16, #tpu.memory_space<vmem>>, vector<1x256x256xbf16>
    %42 = vector.shape_cast %41 : vector<1x256x256xbf16> to vector<256x256xbf16>
    %cst_17 = arith.constant dense<0.000000e+00> : vector<8x256xf32>
    %43 = tpu.matmul %40, %42, %cst_17 {dimension_numbers = #tpu.dot_dimension_numbers<[1], [0], [0], [1], [0, 0, 1, 1], [], []>} : vector<8x256xbf16>, vector<256x256xbf16>, vector<8x256xf32> -> vector<8x256xf32>
    %c1_18 = arith.constant 1 : index
    %c0_19 = arith.constant 0 : index
    %c0_20 = arith.constant 0 : index
    %44 = vector.load %arg5[%c1_18, %c0_19, %c0_20] : memref<14x3x256xf32, #tpu.memory_space<vmem>>, vector<1x3x256xf32>
    %45 = vector.shape_cast %44 : vector<1x3x256xf32> to vector<3x256xf32>
    %46 = vector.extract_strided_slice %45 {offsets = [0, 0], sizes = [1, 256], strides = [1, 1]} : vector<3x256xf32> to vector<1x256xf32>
    %47 = vector.extract_strided_slice %45 {offsets = [1, 0], sizes = [1, 256], strides = [1, 1]} : vector<3x256xf32> to vector<1x256xf32>
    %48 = vector.extract_strided_slice %45 {offsets = [2, 0], sizes = [1, 256], strides = [1, 1]} : vector<3x256xf32> to vector<1x256xf32>
    %49 = vector.broadcast %46 : vector<1x256xf32> to vector<8x256xf32>
    %50 = arith.addf %43, %49 : vector<8x256xf32>
    %cst_21 = arith.constant 0.000000e+00 : f32
    %51 = vector.broadcast %cst_21 : f32 to vector<8x256xf32>
    %52 = arith.maximumf %50, %51 : vector<8x256xf32>
    %cst_22 = arith.constant dense<0.000000e+00> : vector<256xf32>
    %53 = vector.multi_reduction <add>, %52, %cst_22 [0] : vector<8x256xf32> to vector<256xf32>
    %54 = vector.shape_cast %53 : vector<256xf32> to vector<1x256xf32>
    %55 = arith.mulf %52, %52 : vector<8x256xf32>
    %cst_23 = arith.constant dense<0.000000e+00> : vector<256xf32>
    %56 = vector.multi_reduction <add>, %55, %cst_23 [0] : vector<8x256xf32> to vector<256xf32>
    %57 = vector.shape_cast %56 : vector<256xf32> to vector<1x256xf32>
    %cst_24 = arith.constant 1.250000e-01 : f32
    %58 = vector.broadcast %cst_24 : f32 to vector<1x256xf32>
    %59 = arith.mulf %54, %58 : vector<1x256xf32>
    %cst_25 = arith.constant 1.250000e-01 : f32
    %60 = vector.broadcast %cst_25 : f32 to vector<1x256xf32>
    %61 = arith.mulf %57, %60 : vector<1x256xf32>
    %62 = arith.mulf %59, %59 : vector<1x256xf32>
    %63 = arith.subf %61, %62 : vector<1x256xf32>
    %cst_26 = arith.constant 0.000000e+00 : f32
    %64 = vector.broadcast %cst_26 : f32 to vector<1x256xf32>
    %65 = arith.maximumf %63, %64 : vector<1x256xf32>
    %cst_27 = arith.constant 9.99999974E-6 : f32
    %66 = vector.broadcast %cst_27 : f32 to vector<1x256xf32>
    %67 = arith.addf %65, %66 : vector<1x256xf32>
    %68 = math.rsqrt %67 : vector<1x256xf32>
    %69 = arith.mulf %47, %68 : vector<1x256xf32>
    %70 = arith.mulf %59, %69 : vector<1x256xf32>
    %71 = arith.subf %48, %70 : vector<1x256xf32>
    %72 = vector.broadcast %69 : vector<1x256xf32> to vector<8x256xf32>
    %73 = arith.mulf %52, %72 : vector<8x256xf32>
    %74 = vector.broadcast %71 : vector<1x256xf32> to vector<8x256xf32>
    %75 = arith.addf %73, %74 : vector<8x256xf32>
    %76 = arith.truncf %75 : vector<8x256xf32> to vector<8x256xbf16>
    %c2 = arith.constant 2 : index
    %c0_28 = arith.constant 0 : index
    %c0_29 = arith.constant 0 : index
    %77 = vector.load %arg4[%c2, %c0_28, %c0_29] : memref<14x256x256xbf16, #tpu.memory_space<vmem>>, vector<1x256x256xbf16>
    %78 = vector.shape_cast %77 : vector<1x256x256xbf16> to vector<256x256xbf16>
    %cst_30 = arith.constant dense<0.000000e+00> : vector<8x256xf32>
    %79 = tpu.matmul %76, %78, %cst_30 {dimension_numbers = #tpu.dot_dimension_numbers<[1], [0], [0], [1], [0, 0, 1, 1], [], []>} : vector<8x256xbf16>, vector<256x256xbf16>, vector<8x256xf32> -> vector<8x256xf32>
    %c2_31 = arith.constant 2 : index
    %c0_32 = arith.constant 0 : index
    %c0_33 = arith.constant 0 : index
    %80 = vector.load %arg5[%c2_31, %c0_32, %c0_33] : memref<14x3x256xf32, #tpu.memory_space<vmem>>, vector<1x3x256xf32>
    %81 = vector.shape_cast %80 : vector<1x3x256xf32> to vector<3x256xf32>
    %82 = vector.extract_strided_slice %81 {offsets = [0, 0], sizes = [1, 256], strides = [1, 1]} : vector<3x256xf32> to vector<1x256xf32>
    %83 = vector.extract_strided_slice %81 {offsets = [1, 0], sizes = [1, 256], strides = [1, 1]} : vector<3x256xf32> to vector<1x256xf32>
    %84 = vector.extract_strided_slice %81 {offsets = [2, 0], sizes = [1, 256], strides = [1, 1]} : vector<3x256xf32> to vector<1x256xf32>
    %85 = vector.broadcast %82 : vector<1x256xf32> to vector<8x256xf32>
    %86 = arith.addf %79, %85 : vector<8x256xf32>
    %cst_34 = arith.constant 0.000000e+00 : f32
    %87 = vector.broadcast %cst_34 : f32 to vector<8x256xf32>
    %88 = arith.maximumf %86, %87 : vector<8x256xf32>
    %cst_35 = arith.constant dense<0.000000e+00> : vector<256xf32>
    %89 = vector.multi_reduction <add>, %88, %cst_35 [0] : vector<8x256xf32> to vector<256xf32>
    %90 = vector.shape_cast %89 : vector<256xf32> to vector<1x256xf32>
    %91 = arith.mulf %88, %88 : vector<8x256xf32>
    %cst_36 = arith.constant dense<0.000000e+00> : vector<256xf32>
    %92 = vector.multi_reduction <add>, %91, %cst_36 [0] : vector<8x256xf32> to vector<256xf32>
    %93 = vector.shape_cast %92 : vector<256xf32> to vector<1x256xf32>
    %cst_37 = arith.constant 1.250000e-01 : f32
    %94 = vector.broadcast %cst_37 : f32 to vector<1x256xf32>
    %95 = arith.mulf %90, %94 : vector<1x256xf32>
    %cst_38 = arith.constant 1.250000e-01 : f32
    %96 = vector.broadcast %cst_38 : f32 to vector<1x256xf32>
    %97 = arith.mulf %93, %96 : vector<1x256xf32>
    %98 = arith.mulf %95, %95 : vector<1x256xf32>
    %99 = arith.subf %97, %98 : vector<1x256xf32>
    %cst_39 = arith.constant 0.000000e+00 : f32
    %100 = vector.broadcast %cst_39 : f32 to vector<1x256xf32>
    %101 = arith.maximumf %99, %100 : vector<1x256xf32>
    %cst_40 = arith.constant 9.99999974E-6 : f32
    %102 = vector.broadcast %cst_40 : f32 to vector<1x256xf32>
    %103 = arith.addf %101, %102 : vector<1x256xf32>
    %104 = math.rsqrt %103 : vector<1x256xf32>
    %105 = arith.mulf %83, %104 : vector<1x256xf32>
    %106 = arith.mulf %95, %105 : vector<1x256xf32>
    %107 = arith.subf %84, %106 : vector<1x256xf32>
    %108 = vector.broadcast %105 : vector<1x256xf32> to vector<8x256xf32>
    %109 = arith.mulf %88, %108 : vector<8x256xf32>
    %110 = vector.broadcast %107 : vector<1x256xf32> to vector<8x256xf32>
    %111 = arith.addf %109, %110 : vector<8x256xf32>
    %112 = arith.truncf %111 : vector<8x256xf32> to vector<8x256xbf16>
    %c3 = arith.constant 3 : index
    %c0_41 = arith.constant 0 : index
    %c0_42 = arith.constant 0 : index
    %113 = vector.load %arg4[%c3, %c0_41, %c0_42] : memref<14x256x256xbf16, #tpu.memory_space<vmem>>, vector<1x256x256xbf16>
    %114 = vector.shape_cast %113 : vector<1x256x256xbf16> to vector<256x256xbf16>
    %cst_43 = arith.constant dense<0.000000e+00> : vector<8x256xf32>
    %115 = tpu.matmul %112, %114, %cst_43 {dimension_numbers = #tpu.dot_dimension_numbers<[1], [0], [0], [1], [0, 0, 1, 1], [], []>} : vector<8x256xbf16>, vector<256x256xbf16>, vector<8x256xf32> -> vector<8x256xf32>
    %c3_44 = arith.constant 3 : index
    %c0_45 = arith.constant 0 : index
    %c0_46 = arith.constant 0 : index
    %116 = vector.load %arg5[%c3_44, %c0_45, %c0_46] : memref<14x3x256xf32, #tpu.memory_space<vmem>>, vector<1x3x256xf32>
    %117 = vector.shape_cast %116 : vector<1x3x256xf32> to vector<3x256xf32>
    %118 = vector.extract_strided_slice %117 {offsets = [0, 0], sizes = [1, 256], strides = [1, 1]} : vector<3x256xf32> to vector<1x256xf32>
    %119 = vector.extract_strided_slice %117 {offsets = [1, 0], sizes = [1, 256], strides = [1, 1]} : vector<3x256xf32> to vector<1x256xf32>
    %120 = vector.extract_strided_slice %117 {offsets = [2, 0], sizes = [1, 256], strides = [1, 1]} : vector<3x256xf32> to vector<1x256xf32>
    %121 = vector.broadcast %118 : vector<1x256xf32> to vector<8x256xf32>
    %122 = arith.addf %115, %121 : vector<8x256xf32>
    %cst_47 = arith.constant 0.000000e+00 : f32
    %123 = vector.broadcast %cst_47 : f32 to vector<8x256xf32>
    %124 = arith.maximumf %122, %123 : vector<8x256xf32>
    %cst_48 = arith.constant dense<0.000000e+00> : vector<256xf32>
    %125 = vector.multi_reduction <add>, %124, %cst_48 [0] : vector<8x256xf32> to vector<256xf32>
    %126 = vector.shape_cast %125 : vector<256xf32> to vector<1x256xf32>
    %127 = arith.mulf %124, %124 : vector<8x256xf32>
    %cst_49 = arith.constant dense<0.000000e+00> : vector<256xf32>
    %128 = vector.multi_reduction <add>, %127, %cst_49 [0] : vector<8x256xf32> to vector<256xf32>
    %129 = vector.shape_cast %128 : vector<256xf32> to vector<1x256xf32>
    %cst_50 = arith.constant 1.250000e-01 : f32
    %130 = vector.broadcast %cst_50 : f32 to vector<1x256xf32>
    %131 = arith.mulf %126, %130 : vector<1x256xf32>
    %cst_51 = arith.constant 1.250000e-01 : f32
    %132 = vector.broadcast %cst_51 : f32 to vector<1x256xf32>
    %133 = arith.mulf %129, %132 : vector<1x256xf32>
    %134 = arith.mulf %131, %131 : vector<1x256xf32>
    %135 = arith.subf %133, %134 : vector<1x256xf32>
    %cst_52 = arith.constant 0.000000e+00 : f32
    %136 = vector.broadcast %cst_52 : f32 to vector<1x256xf32>
    %137 = arith.maximumf %135, %136 : vector<1x256xf32>
    %cst_53 = arith.constant 9.99999974E-6 : f32
    %138 = vector.broadcast %cst_53 : f32 to vector<1x256xf32>
    %139 = arith.addf %137, %138 : vector<1x256xf32>
    %140 = math.rsqrt %139 : vector<1x256xf32>
    %141 = arith.mulf %119, %140 : vector<1x256xf32>
    %142 = arith.mulf %131, %141 : vector<1x256xf32>
    %143 = arith.subf %120, %142 : vector<1x256xf32>
    %144 = vector.broadcast %141 : vector<1x256xf32> to vector<8x256xf32>
    %145 = arith.mulf %124, %144 : vector<8x256xf32>
    %146 = vector.broadcast %143 : vector<1x256xf32> to vector<8x256xf32>
    %147 = arith.addf %145, %146 : vector<8x256xf32>
    %148 = arith.truncf %147 : vector<8x256xf32> to vector<8x256xbf16>
    %c4 = arith.constant 4 : index
    %c0_54 = arith.constant 0 : index
    %c0_55 = arith.constant 0 : index
    %149 = vector.load %arg4[%c4, %c0_54, %c0_55] : memref<14x256x256xbf16, #tpu.memory_space<vmem>>, vector<1x256x256xbf16>
    %150 = vector.shape_cast %149 : vector<1x256x256xbf16> to vector<256x256xbf16>
    %cst_56 = arith.constant dense<0.000000e+00> : vector<8x256xf32>
    %151 = tpu.matmul %148, %150, %cst_56 {dimension_numbers = #tpu.dot_dimension_numbers<[1], [0], [0], [1], [0, 0, 1, 1], [], []>} : vector<8x256xbf16>, vector<256x256xbf16>, vector<8x256xf32> -> vector<8x256xf32>
    %c4_57 = arith.constant 4 : index
    %c0_58 = arith.constant 0 : index
    %c0_59 = arith.constant 0 : index
    %152 = vector.load %arg5[%c4_57, %c0_58, %c0_59] : memref<14x3x256xf32, #tpu.memory_space<vmem>>, vector<1x3x256xf32>
    %153 = vector.shape_cast %152 : vector<1x3x256xf32> to vector<3x256xf32>
    %154 = vector.extract_strided_slice %153 {offsets = [0, 0], sizes = [1, 256], strides = [1, 1]} : vector<3x256xf32> to vector<1x256xf32>
    %155 = vector.extract_strided_slice %153 {offsets = [1, 0], sizes = [1, 256], strides = [1, 1]} : vector<3x256xf32> to vector<1x256xf32>
    %156 = vector.extract_strided_slice %153 {offsets = [2, 0], sizes = [1, 256], strides = [1, 1]} : vector<3x256xf32> to vector<1x256xf32>
    %157 = vector.broadcast %154 : vector<1x256xf32> to vector<8x256xf32>
    %158 = arith.addf %151, %157 : vector<8x256xf32>
    %cst_60 = arith.constant 0.000000e+00 : f32
    %159 = vector.broadcast %cst_60 : f32 to vector<8x256xf32>
    %160 = arith.maximumf %158, %159 : vector<8x256xf32>
    %cst_61 = arith.constant dense<0.000000e+00> : vector<256xf32>
    %161 = vector.multi_reduction <add>, %160, %cst_61 [0] : vector<8x256xf32> to vector<256xf32>
    %162 = vector.shape_cast %161 : vector<256xf32> to vector<1x256xf32>
    %163 = arith.mulf %160, %160 : vector<8x256xf32>
    %cst_62 = arith.constant dense<0.000000e+00> : vector<256xf32>
    %164 = vector.multi_reduction <add>, %163, %cst_62 [0] : vector<8x256xf32> to vector<256xf32>
    %165 = vector.shape_cast %164 : vector<256xf32> to vector<1x256xf32>
    %cst_63 = arith.constant 1.250000e-01 : f32
    %166 = vector.broadcast %cst_63 : f32 to vector<1x256xf32>
    %167 = arith.mulf %162, %166 : vector<1x256xf32>
    %cst_64 = arith.constant 1.250000e-01 : f32
    %168 = vector.broadcast %cst_64 : f32 to vector<1x256xf32>
    %169 = arith.mulf %165, %168 : vector<1x256xf32>
    %170 = arith.mulf %167, %167 : vector<1x256xf32>
    %171 = arith.subf %169, %170 : vector<1x256xf32>
    %cst_65 = arith.constant 0.000000e+00 : f32
    %172 = vector.broadcast %cst_65 : f32 to vector<1x256xf32>
    %173 = arith.maximumf %171, %172 : vector<1x256xf32>
    %cst_66 = arith.constant 9.99999974E-6 : f32
    %174 = vector.broadcast %cst_66 : f32 to vector<1x256xf32>
    %175 = arith.addf %173, %174 : vector<1x256xf32>
    %176 = math.rsqrt %175 : vector<1x256xf32>
    %177 = arith.mulf %155, %176 : vector<1x256xf32>
    %178 = arith.mulf %167, %177 : vector<1x256xf32>
    %179 = arith.subf %156, %178 : vector<1x256xf32>
    %180 = vector.broadcast %177 : vector<1x256xf32> to vector<8x256xf32>
    %181 = arith.mulf %160, %180 : vector<8x256xf32>
    %182 = vector.broadcast %179 : vector<1x256xf32> to vector<8x256xf32>
    %183 = arith.addf %181, %182 : vector<8x256xf32>
    %184 = arith.truncf %183 : vector<8x256xf32> to vector<8x256xbf16>
    %c5 = arith.constant 5 : index
    %c0_67 = arith.constant 0 : index
    %c0_68 = arith.constant 0 : index
    %185 = vector.load %arg4[%c5, %c0_67, %c0_68] : memref<14x256x256xbf16, #tpu.memory_space<vmem>>, vector<1x256x256xbf16>
    %186 = vector.shape_cast %185 : vector<1x256x256xbf16> to vector<256x256xbf16>
    %cst_69 = arith.constant dense<0.000000e+00> : vector<8x256xf32>
    %187 = tpu.matmul %184, %186, %cst_69 {dimension_numbers = #tpu.dot_dimension_numbers<[1], [0], [0], [1], [0, 0, 1, 1], [], []>} : vector<8x256xbf16>, vector<256x256xbf16>, vector<8x256xf32> -> vector<8x256xf32>
    %c5_70 = arith.constant 5 : index
    %c0_71 = arith.constant 0 : index
    %c0_72 = arith.constant 0 : index
    %188 = vector.load %arg5[%c5_70, %c0_71, %c0_72] : memref<14x3x256xf32, #tpu.memory_space<vmem>>, vector<1x3x256xf32>
    %189 = vector.shape_cast %188 : vector<1x3x256xf32> to vector<3x256xf32>
    %190 = vector.extract_strided_slice %189 {offsets = [0, 0], sizes = [1, 256], strides = [1, 1]} : vector<3x256xf32> to vector<1x256xf32>
    %191 = vector.extract_strided_slice %189 {offsets = [1, 0], sizes = [1, 256], strides = [1, 1]} : vector<3x256xf32> to vector<1x256xf32>
    %192 = vector.extract_strided_slice %189 {offsets = [2, 0], sizes = [1, 256], strides = [1, 1]} : vector<3x256xf32> to vector<1x256xf32>
    %193 = vector.broadcast %190 : vector<1x256xf32> to vector<8x256xf32>
    %194 = arith.addf %187, %193 : vector<8x256xf32>
    %cst_73 = arith.constant 0.000000e+00 : f32
    %195 = vector.broadcast %cst_73 : f32 to vector<8x256xf32>
    %196 = arith.maximumf %194, %195 : vector<8x256xf32>
    %cst_74 = arith.constant dense<0.000000e+00> : vector<256xf32>
    %197 = vector.multi_reduction <add>, %196, %cst_74 [0] : vector<8x256xf32> to vector<256xf32>
    %198 = vector.shape_cast %197 : vector<256xf32> to vector<1x256xf32>
    %199 = arith.mulf %196, %196 : vector<8x256xf32>
    %cst_75 = arith.constant dense<0.000000e+00> : vector<256xf32>
    %200 = vector.multi_reduction <add>, %199, %cst_75 [0] : vector<8x256xf32> to vector<256xf32>
    %201 = vector.shape_cast %200 : vector<256xf32> to vector<1x256xf32>
    %cst_76 = arith.constant 1.250000e-01 : f32
    %202 = vector.broadcast %cst_76 : f32 to vector<1x256xf32>
    %203 = arith.mulf %198, %202 : vector<1x256xf32>
    %cst_77 = arith.constant 1.250000e-01 : f32
    %204 = vector.broadcast %cst_77 : f32 to vector<1x256xf32>
    %205 = arith.mulf %201, %204 : vector<1x256xf32>
    %206 = arith.mulf %203, %203 : vector<1x256xf32>
    %207 = arith.subf %205, %206 : vector<1x256xf32>
    %cst_78 = arith.constant 0.000000e+00 : f32
    %208 = vector.broadcast %cst_78 : f32 to vector<1x256xf32>
    %209 = arith.maximumf %207, %208 : vector<1x256xf32>
    %cst_79 = arith.constant 9.99999974E-6 : f32
    %210 = vector.broadcast %cst_79 : f32 to vector<1x256xf32>
    %211 = arith.addf %209, %210 : vector<1x256xf32>
    %212 = math.rsqrt %211 : vector<1x256xf32>
    %213 = arith.mulf %191, %212 : vector<1x256xf32>
    %214 = arith.mulf %203, %213 : vector<1x256xf32>
    %215 = arith.subf %192, %214 : vector<1x256xf32>
    %216 = vector.broadcast %213 : vector<1x256xf32> to vector<8x256xf32>
    %217 = arith.mulf %196, %216 : vector<8x256xf32>
    %218 = vector.broadcast %215 : vector<1x256xf32> to vector<8x256xf32>
    %219 = arith.addf %217, %218 : vector<8x256xf32>
    %220 = arith.truncf %219 : vector<8x256xf32> to vector<8x256xbf16>
    %c6 = arith.constant 6 : index
    %c0_80 = arith.constant 0 : index
    %c0_81 = arith.constant 0 : index
    %221 = vector.load %arg4[%c6, %c0_80, %c0_81] : memref<14x256x256xbf16, #tpu.memory_space<vmem>>, vector<1x256x256xbf16>
    %222 = vector.shape_cast %221 : vector<1x256x256xbf16> to vector<256x256xbf16>
    %cst_82 = arith.constant dense<0.000000e+00> : vector<8x256xf32>
    %223 = tpu.matmul %220, %222, %cst_82 {dimension_numbers = #tpu.dot_dimension_numbers<[1], [0], [0], [1], [0, 0, 1, 1], [], []>} : vector<8x256xbf16>, vector<256x256xbf16>, vector<8x256xf32> -> vector<8x256xf32>
    %c6_83 = arith.constant 6 : index
    %c0_84 = arith.constant 0 : index
    %c0_85 = arith.constant 0 : index
    %224 = vector.load %arg5[%c6_83, %c0_84, %c0_85] : memref<14x3x256xf32, #tpu.memory_space<vmem>>, vector<1x3x256xf32>
    %225 = vector.shape_cast %224 : vector<1x3x256xf32> to vector<3x256xf32>
    %226 = vector.extract_strided_slice %225 {offsets = [0, 0], sizes = [1, 256], strides = [1, 1]} : vector<3x256xf32> to vector<1x256xf32>
    %227 = vector.extract_strided_slice %225 {offsets = [1, 0], sizes = [1, 256], strides = [1, 1]} : vector<3x256xf32> to vector<1x256xf32>
    %228 = vector.extract_strided_slice %225 {offsets = [2, 0], sizes = [1, 256], strides = [1, 1]} : vector<3x256xf32> to vector<1x256xf32>
    %229 = vector.broadcast %226 : vector<1x256xf32> to vector<8x256xf32>
    %230 = arith.addf %223, %229 : vector<8x256xf32>
    %cst_86 = arith.constant 0.000000e+00 : f32
    %231 = vector.broadcast %cst_86 : f32 to vector<8x256xf32>
    %232 = arith.maximumf %230, %231 : vector<8x256xf32>
    %cst_87 = arith.constant dense<0.000000e+00> : vector<256xf32>
    %233 = vector.multi_reduction <add>, %232, %cst_87 [0] : vector<8x256xf32> to vector<256xf32>
    %234 = vector.shape_cast %233 : vector<256xf32> to vector<1x256xf32>
    %235 = arith.mulf %232, %232 : vector<8x256xf32>
    %cst_88 = arith.constant dense<0.000000e+00> : vector<256xf32>
    %236 = vector.multi_reduction <add>, %235, %cst_88 [0] : vector<8x256xf32> to vector<256xf32>
    %237 = vector.shape_cast %236 : vector<256xf32> to vector<1x256xf32>
    %cst_89 = arith.constant 1.250000e-01 : f32
    %238 = vector.broadcast %cst_89 : f32 to vector<1x256xf32>
    %239 = arith.mulf %234, %238 : vector<1x256xf32>
    %cst_90 = arith.constant 1.250000e-01 : f32
    %240 = vector.broadcast %cst_90 : f32 to vector<1x256xf32>
    %241 = arith.mulf %237, %240 : vector<1x256xf32>
    %242 = arith.mulf %239, %239 : vector<1x256xf32>
    %243 = arith.subf %241, %242 : vector<1x256xf32>
    %cst_91 = arith.constant 0.000000e+00 : f32
    %244 = vector.broadcast %cst_91 : f32 to vector<1x256xf32>
    %245 = arith.maximumf %243, %244 : vector<1x256xf32>
    %cst_92 = arith.constant 9.99999974E-6 : f32
    %246 = vector.broadcast %cst_92 : f32 to vector<1x256xf32>
    %247 = arith.addf %245, %246 : vector<1x256xf32>
    %248 = math.rsqrt %247 : vector<1x256xf32>
    %249 = arith.mulf %227, %248 : vector<1x256xf32>
    %250 = arith.mulf %239, %249 : vector<1x256xf32>
    %251 = arith.subf %228, %250 : vector<1x256xf32>
    %252 = vector.broadcast %249 : vector<1x256xf32> to vector<8x256xf32>
    %253 = arith.mulf %232, %252 : vector<8x256xf32>
    %254 = vector.broadcast %251 : vector<1x256xf32> to vector<8x256xf32>
    %255 = arith.addf %253, %254 : vector<8x256xf32>
    %256 = arith.truncf %255 : vector<8x256xf32> to vector<8x256xbf16>
    %c7 = arith.constant 7 : index
    %c0_93 = arith.constant 0 : index
    %c0_94 = arith.constant 0 : index
    %257 = vector.load %arg4[%c7, %c0_93, %c0_94] : memref<14x256x256xbf16, #tpu.memory_space<vmem>>, vector<1x256x256xbf16>
    %258 = vector.shape_cast %257 : vector<1x256x256xbf16> to vector<256x256xbf16>
    %cst_95 = arith.constant dense<0.000000e+00> : vector<8x256xf32>
    %259 = tpu.matmul %256, %258, %cst_95 {dimension_numbers = #tpu.dot_dimension_numbers<[1], [0], [0], [1], [0, 0, 1, 1], [], []>} : vector<8x256xbf16>, vector<256x256xbf16>, vector<8x256xf32> -> vector<8x256xf32>
    %c7_96 = arith.constant 7 : index
    %c0_97 = arith.constant 0 : index
    %c0_98 = arith.constant 0 : index
    %260 = vector.load %arg5[%c7_96, %c0_97, %c0_98] : memref<14x3x256xf32, #tpu.memory_space<vmem>>, vector<1x3x256xf32>
    %261 = vector.shape_cast %260 : vector<1x3x256xf32> to vector<3x256xf32>
    %262 = vector.extract_strided_slice %261 {offsets = [0, 0], sizes = [1, 256], strides = [1, 1]} : vector<3x256xf32> to vector<1x256xf32>
    %263 = vector.extract_strided_slice %261 {offsets = [1, 0], sizes = [1, 256], strides = [1, 1]} : vector<3x256xf32> to vector<1x256xf32>
    %264 = vector.extract_strided_slice %261 {offsets = [2, 0], sizes = [1, 256], strides = [1, 1]} : vector<3x256xf32> to vector<1x256xf32>
    %265 = vector.broadcast %262 : vector<1x256xf32> to vector<8x256xf32>
    %266 = arith.addf %259, %265 : vector<8x256xf32>
    %cst_99 = arith.constant 0.000000e+00 : f32
    %267 = vector.broadcast %cst_99 : f32 to vector<8x256xf32>
    %268 = arith.maximumf %266, %267 : vector<8x256xf32>
    %cst_100 = arith.constant dense<0.000000e+00> : vector<256xf32>
    %269 = vector.multi_reduction <add>, %268, %cst_100 [0] : vector<8x256xf32> to vector<256xf32>
    %270 = vector.shape_cast %269 : vector<256xf32> to vector<1x256xf32>
    %271 = arith.mulf %268, %268 : vector<8x256xf32>
    %cst_101 = arith.constant dense<0.000000e+00> : vector<256xf32>
    %272 = vector.multi_reduction <add>, %271, %cst_101 [0] : vector<8x256xf32> to vector<256xf32>
    %273 = vector.shape_cast %272 : vector<256xf32> to vector<1x256xf32>
    %cst_102 = arith.constant 1.250000e-01 : f32
    %274 = vector.broadcast %cst_102 : f32 to vector<1x256xf32>
    %275 = arith.mulf %270, %274 : vector<1x256xf32>
    %cst_103 = arith.constant 1.250000e-01 : f32
    %276 = vector.broadcast %cst_103 : f32 to vector<1x256xf32>
    %277 = arith.mulf %273, %276 : vector<1x256xf32>
    %278 = arith.mulf %275, %275 : vector<1x256xf32>
    %279 = arith.subf %277, %278 : vector<1x256xf32>
    %cst_104 = arith.constant 0.000000e+00 : f32
    %280 = vector.broadcast %cst_104 : f32 to vector<1x256xf32>
    %281 = arith.maximumf %279, %280 : vector<1x256xf32>
    %cst_105 = arith.constant 9.99999974E-6 : f32
    %282 = vector.broadcast %cst_105 : f32 to vector<1x256xf32>
    %283 = arith.addf %281, %282 : vector<1x256xf32>
    %284 = math.rsqrt %283 : vector<1x256xf32>
    %285 = arith.mulf %263, %284 : vector<1x256xf32>
    %286 = arith.mulf %275, %285 : vector<1x256xf32>
    %287 = arith.subf %264, %286 : vector<1x256xf32>
    %288 = vector.broadcast %285 : vector<1x256xf32> to vector<8x256xf32>
    %289 = arith.mulf %268, %288 : vector<8x256xf32>
    %290 = vector.broadcast %287 : vector<1x256xf32> to vector<8x256xf32>
    %291 = arith.addf %289, %290 : vector<8x256xf32>
    %292 = arith.truncf %291 : vector<8x256xf32> to vector<8x256xbf16>
    %c8 = arith.constant 8 : index
    %c0_106 = arith.constant 0 : index
    %c0_107 = arith.constant 0 : index
    %293 = vector.load %arg4[%c8, %c0_106, %c0_107] : memref<14x256x256xbf16, #tpu.memory_space<vmem>>, vector<1x256x256xbf16>
    %294 = vector.shape_cast %293 : vector<1x256x256xbf16> to vector<256x256xbf16>
    %cst_108 = arith.constant dense<0.000000e+00> : vector<8x256xf32>
    %295 = tpu.matmul %292, %294, %cst_108 {dimension_numbers = #tpu.dot_dimension_numbers<[1], [0], [0], [1], [0, 0, 1, 1], [], []>} : vector<8x256xbf16>, vector<256x256xbf16>, vector<8x256xf32> -> vector<8x256xf32>
    %c8_109 = arith.constant 8 : index
    %c0_110 = arith.constant 0 : index
    %c0_111 = arith.constant 0 : index
    %296 = vector.load %arg5[%c8_109, %c0_110, %c0_111] : memref<14x3x256xf32, #tpu.memory_space<vmem>>, vector<1x3x256xf32>
    %297 = vector.shape_cast %296 : vector<1x3x256xf32> to vector<3x256xf32>
    %298 = vector.extract_strided_slice %297 {offsets = [0, 0], sizes = [1, 256], strides = [1, 1]} : vector<3x256xf32> to vector<1x256xf32>
    %299 = vector.extract_strided_slice %297 {offsets = [1, 0], sizes = [1, 256], strides = [1, 1]} : vector<3x256xf32> to vector<1x256xf32>
    %300 = vector.extract_strided_slice %297 {offsets = [2, 0], sizes = [1, 256], strides = [1, 1]} : vector<3x256xf32> to vector<1x256xf32>
    %301 = vector.broadcast %298 : vector<1x256xf32> to vector<8x256xf32>
    %302 = arith.addf %295, %301 : vector<8x256xf32>
    %cst_112 = arith.constant 0.000000e+00 : f32
    %303 = vector.broadcast %cst_112 : f32 to vector<8x256xf32>
    %304 = arith.maximumf %302, %303 : vector<8x256xf32>
    %cst_113 = arith.constant dense<0.000000e+00> : vector<256xf32>
    %305 = vector.multi_reduction <add>, %304, %cst_113 [0] : vector<8x256xf32> to vector<256xf32>
    %306 = vector.shape_cast %305 : vector<256xf32> to vector<1x256xf32>
    %307 = arith.mulf %304, %304 : vector<8x256xf32>
    %cst_114 = arith.constant dense<0.000000e+00> : vector<256xf32>
    %308 = vector.multi_reduction <add>, %307, %cst_114 [0] : vector<8x256xf32> to vector<256xf32>
    %309 = vector.shape_cast %308 : vector<256xf32> to vector<1x256xf32>
    %cst_115 = arith.constant 1.250000e-01 : f32
    %310 = vector.broadcast %cst_115 : f32 to vector<1x256xf32>
    %311 = arith.mulf %306, %310 : vector<1x256xf32>
    %cst_116 = arith.constant 1.250000e-01 : f32
    %312 = vector.broadcast %cst_116 : f32 to vector<1x256xf32>
    %313 = arith.mulf %309, %312 : vector<1x256xf32>
    %314 = arith.mulf %311, %311 : vector<1x256xf32>
    %315 = arith.subf %313, %314 : vector<1x256xf32>
    %cst_117 = arith.constant 0.000000e+00 : f32
    %316 = vector.broadcast %cst_117 : f32 to vector<1x256xf32>
    %317 = arith.maximumf %315, %316 : vector<1x256xf32>
    %cst_118 = arith.constant 9.99999974E-6 : f32
    %318 = vector.broadcast %cst_118 : f32 to vector<1x256xf32>
    %319 = arith.addf %317, %318 : vector<1x256xf32>
    %320 = math.rsqrt %319 : vector<1x256xf32>
    %321 = arith.mulf %299, %320 : vector<1x256xf32>
    %322 = arith.mulf %311, %321 : vector<1x256xf32>
    %323 = arith.subf %300, %322 : vector<1x256xf32>
    %324 = vector.broadcast %321 : vector<1x256xf32> to vector<8x256xf32>
    %325 = arith.mulf %304, %324 : vector<8x256xf32>
    %326 = vector.broadcast %323 : vector<1x256xf32> to vector<8x256xf32>
    %327 = arith.addf %325, %326 : vector<8x256xf32>
    %328 = arith.truncf %327 : vector<8x256xf32> to vector<8x256xbf16>
    %c9 = arith.constant 9 : index
    %c0_119 = arith.constant 0 : index
    %c0_120 = arith.constant 0 : index
    %329 = vector.load %arg4[%c9, %c0_119, %c0_120] : memref<14x256x256xbf16, #tpu.memory_space<vmem>>, vector<1x256x256xbf16>
    %330 = vector.shape_cast %329 : vector<1x256x256xbf16> to vector<256x256xbf16>
    %cst_121 = arith.constant dense<0.000000e+00> : vector<8x256xf32>
    %331 = tpu.matmul %328, %330, %cst_121 {dimension_numbers = #tpu.dot_dimension_numbers<[1], [0], [0], [1], [0, 0, 1, 1], [], []>} : vector<8x256xbf16>, vector<256x256xbf16>, vector<8x256xf32> -> vector<8x256xf32>
    %c9_122 = arith.constant 9 : index
    %c0_123 = arith.constant 0 : index
    %c0_124 = arith.constant 0 : index
    %332 = vector.load %arg5[%c9_122, %c0_123, %c0_124] : memref<14x3x256xf32, #tpu.memory_space<vmem>>, vector<1x3x256xf32>
    %333 = vector.shape_cast %332 : vector<1x3x256xf32> to vector<3x256xf32>
    %334 = vector.extract_strided_slice %333 {offsets = [0, 0], sizes = [1, 256], strides = [1, 1]} : vector<3x256xf32> to vector<1x256xf32>
    %335 = vector.extract_strided_slice %333 {offsets = [1, 0], sizes = [1, 256], strides = [1, 1]} : vector<3x256xf32> to vector<1x256xf32>
    %336 = vector.extract_strided_slice %333 {offsets = [2, 0], sizes = [1, 256], strides = [1, 1]} : vector<3x256xf32> to vector<1x256xf32>
    %337 = vector.broadcast %334 : vector<1x256xf32> to vector<8x256xf32>
    %338 = arith.addf %331, %337 : vector<8x256xf32>
    %cst_125 = arith.constant 0.000000e+00 : f32
    %339 = vector.broadcast %cst_125 : f32 to vector<8x256xf32>
    %340 = arith.maximumf %338, %339 : vector<8x256xf32>
    %cst_126 = arith.constant dense<0.000000e+00> : vector<256xf32>
    %341 = vector.multi_reduction <add>, %340, %cst_126 [0] : vector<8x256xf32> to vector<256xf32>
    %342 = vector.shape_cast %341 : vector<256xf32> to vector<1x256xf32>
    %343 = arith.mulf %340, %340 : vector<8x256xf32>
    %cst_127 = arith.constant dense<0.000000e+00> : vector<256xf32>
    %344 = vector.multi_reduction <add>, %343, %cst_127 [0] : vector<8x256xf32> to vector<256xf32>
    %345 = vector.shape_cast %344 : vector<256xf32> to vector<1x256xf32>
    %cst_128 = arith.constant 1.250000e-01 : f32
    %346 = vector.broadcast %cst_128 : f32 to vector<1x256xf32>
    %347 = arith.mulf %342, %346 : vector<1x256xf32>
    %cst_129 = arith.constant 1.250000e-01 : f32
    %348 = vector.broadcast %cst_129 : f32 to vector<1x256xf32>
    %349 = arith.mulf %345, %348 : vector<1x256xf32>
    %350 = arith.mulf %347, %347 : vector<1x256xf32>
    %351 = arith.subf %349, %350 : vector<1x256xf32>
    %cst_130 = arith.constant 0.000000e+00 : f32
    %352 = vector.broadcast %cst_130 : f32 to vector<1x256xf32>
    %353 = arith.maximumf %351, %352 : vector<1x256xf32>
    %cst_131 = arith.constant 9.99999974E-6 : f32
    %354 = vector.broadcast %cst_131 : f32 to vector<1x256xf32>
    %355 = arith.addf %353, %354 : vector<1x256xf32>
    %356 = math.rsqrt %355 : vector<1x256xf32>
    %357 = arith.mulf %335, %356 : vector<1x256xf32>
    %358 = arith.mulf %347, %357 : vector<1x256xf32>
    %359 = arith.subf %336, %358 : vector<1x256xf32>
    %360 = vector.broadcast %357 : vector<1x256xf32> to vector<8x256xf32>
    %361 = arith.mulf %340, %360 : vector<8x256xf32>
    %362 = vector.broadcast %359 : vector<1x256xf32> to vector<8x256xf32>
    %363 = arith.addf %361, %362 : vector<8x256xf32>
    %364 = arith.truncf %363 : vector<8x256xf32> to vector<8x256xbf16>
    %c10 = arith.constant 10 : index
    %c0_132 = arith.constant 0 : index
    %c0_133 = arith.constant 0 : index
    %365 = vector.load %arg4[%c10, %c0_132, %c0_133] : memref<14x256x256xbf16, #tpu.memory_space<vmem>>, vector<1x256x256xbf16>
    %366 = vector.shape_cast %365 : vector<1x256x256xbf16> to vector<256x256xbf16>
    %cst_134 = arith.constant dense<0.000000e+00> : vector<8x256xf32>
    %367 = tpu.matmul %364, %366, %cst_134 {dimension_numbers = #tpu.dot_dimension_numbers<[1], [0], [0], [1], [0, 0, 1, 1], [], []>} : vector<8x256xbf16>, vector<256x256xbf16>, vector<8x256xf32> -> vector<8x256xf32>
    %c10_135 = arith.constant 10 : index
    %c0_136 = arith.constant 0 : index
    %c0_137 = arith.constant 0 : index
    %368 = vector.load %arg5[%c10_135, %c0_136, %c0_137] : memref<14x3x256xf32, #tpu.memory_space<vmem>>, vector<1x3x256xf32>
    %369 = vector.shape_cast %368 : vector<1x3x256xf32> to vector<3x256xf32>
    %370 = vector.extract_strided_slice %369 {offsets = [0, 0], sizes = [1, 256], strides = [1, 1]} : vector<3x256xf32> to vector<1x256xf32>
    %371 = vector.extract_strided_slice %369 {offsets = [1, 0], sizes = [1, 256], strides = [1, 1]} : vector<3x256xf32> to vector<1x256xf32>
    %372 = vector.extract_strided_slice %369 {offsets = [2, 0], sizes = [1, 256], strides = [1, 1]} : vector<3x256xf32> to vector<1x256xf32>
    %373 = vector.broadcast %370 : vector<1x256xf32> to vector<8x256xf32>
    %374 = arith.addf %367, %373 : vector<8x256xf32>
    %cst_138 = arith.constant 0.000000e+00 : f32
    %375 = vector.broadcast %cst_138 : f32 to vector<8x256xf32>
    %376 = arith.maximumf %374, %375 : vector<8x256xf32>
    %cst_139 = arith.constant dense<0.000000e+00> : vector<256xf32>
    %377 = vector.multi_reduction <add>, %376, %cst_139 [0] : vector<8x256xf32> to vector<256xf32>
    %378 = vector.shape_cast %377 : vector<256xf32> to vector<1x256xf32>
    %379 = arith.mulf %376, %376 : vector<8x256xf32>
    %cst_140 = arith.constant dense<0.000000e+00> : vector<256xf32>
    %380 = vector.multi_reduction <add>, %379, %cst_140 [0] : vector<8x256xf32> to vector<256xf32>
    %381 = vector.shape_cast %380 : vector<256xf32> to vector<1x256xf32>
    %cst_141 = arith.constant 1.250000e-01 : f32
    %382 = vector.broadcast %cst_141 : f32 to vector<1x256xf32>
    %383 = arith.mulf %378, %382 : vector<1x256xf32>
    %cst_142 = arith.constant 1.250000e-01 : f32
    %384 = vector.broadcast %cst_142 : f32 to vector<1x256xf32>
    %385 = arith.mulf %381, %384 : vector<1x256xf32>
    %386 = arith.mulf %383, %383 : vector<1x256xf32>
    %387 = arith.subf %385, %386 : vector<1x256xf32>
    %cst_143 = arith.constant 0.000000e+00 : f32
    %388 = vector.broadcast %cst_143 : f32 to vector<1x256xf32>
    %389 = arith.maximumf %387, %388 : vector<1x256xf32>
    %cst_144 = arith.constant 9.99999974E-6 : f32
    %390 = vector.broadcast %cst_144 : f32 to vector<1x256xf32>
    %391 = arith.addf %389, %390 : vector<1x256xf32>
    %392 = math.rsqrt %391 : vector<1x256xf32>
    %393 = arith.mulf %371, %392 : vector<1x256xf32>
    %394 = arith.mulf %383, %393 : vector<1x256xf32>
    %395 = arith.subf %372, %394 : vector<1x256xf32>
    %396 = vector.broadcast %393 : vector<1x256xf32> to vector<8x256xf32>
    %397 = arith.mulf %376, %396 : vector<8x256xf32>
    %398 = vector.broadcast %395 : vector<1x256xf32> to vector<8x256xf32>
    %399 = arith.addf %397, %398 : vector<8x256xf32>
    %400 = arith.truncf %399 : vector<8x256xf32> to vector<8x256xbf16>
    %c11 = arith.constant 11 : index
    %c0_145 = arith.constant 0 : index
    %c0_146 = arith.constant 0 : index
    %401 = vector.load %arg4[%c11, %c0_145, %c0_146] : memref<14x256x256xbf16, #tpu.memory_space<vmem>>, vector<1x256x256xbf16>
    %402 = vector.shape_cast %401 : vector<1x256x256xbf16> to vector<256x256xbf16>
    %cst_147 = arith.constant dense<0.000000e+00> : vector<8x256xf32>
    %403 = tpu.matmul %400, %402, %cst_147 {dimension_numbers = #tpu.dot_dimension_numbers<[1], [0], [0], [1], [0, 0, 1, 1], [], []>} : vector<8x256xbf16>, vector<256x256xbf16>, vector<8x256xf32> -> vector<8x256xf32>
    %c11_148 = arith.constant 11 : index
    %c0_149 = arith.constant 0 : index
    %c0_150 = arith.constant 0 : index
    %404 = vector.load %arg5[%c11_148, %c0_149, %c0_150] : memref<14x3x256xf32, #tpu.memory_space<vmem>>, vector<1x3x256xf32>
    %405 = vector.shape_cast %404 : vector<1x3x256xf32> to vector<3x256xf32>
    %406 = vector.extract_strided_slice %405 {offsets = [0, 0], sizes = [1, 256], strides = [1, 1]} : vector<3x256xf32> to vector<1x256xf32>
    %407 = vector.extract_strided_slice %405 {offsets = [1, 0], sizes = [1, 256], strides = [1, 1]} : vector<3x256xf32> to vector<1x256xf32>
    %408 = vector.extract_strided_slice %405 {offsets = [2, 0], sizes = [1, 256], strides = [1, 1]} : vector<3x256xf32> to vector<1x256xf32>
    %409 = vector.broadcast %406 : vector<1x256xf32> to vector<8x256xf32>
    %410 = arith.addf %403, %409 : vector<8x256xf32>
    %cst_151 = arith.constant 0.000000e+00 : f32
    %411 = vector.broadcast %cst_151 : f32 to vector<8x256xf32>
    %412 = arith.maximumf %410, %411 : vector<8x256xf32>
    %cst_152 = arith.constant dense<0.000000e+00> : vector<256xf32>
    %413 = vector.multi_reduction <add>, %412, %cst_152 [0] : vector<8x256xf32> to vector<256xf32>
    %414 = vector.shape_cast %413 : vector<256xf32> to vector<1x256xf32>
    %415 = arith.mulf %412, %412 : vector<8x256xf32>
    %cst_153 = arith.constant dense<0.000000e+00> : vector<256xf32>
    %416 = vector.multi_reduction <add>, %415, %cst_153 [0] : vector<8x256xf32> to vector<256xf32>
    %417 = vector.shape_cast %416 : vector<256xf32> to vector<1x256xf32>
    %cst_154 = arith.constant 1.250000e-01 : f32
    %418 = vector.broadcast %cst_154 : f32 to vector<1x256xf32>
    %419 = arith.mulf %414, %418 : vector<1x256xf32>
    %cst_155 = arith.constant 1.250000e-01 : f32
    %420 = vector.broadcast %cst_155 : f32 to vector<1x256xf32>
    %421 = arith.mulf %417, %420 : vector<1x256xf32>
    %422 = arith.mulf %419, %419 : vector<1x256xf32>
    %423 = arith.subf %421, %422 : vector<1x256xf32>
    %cst_156 = arith.constant 0.000000e+00 : f32
    %424 = vector.broadcast %cst_156 : f32 to vector<1x256xf32>
    %425 = arith.maximumf %423, %424 : vector<1x256xf32>
    %cst_157 = arith.constant 9.99999974E-6 : f32
    %426 = vector.broadcast %cst_157 : f32 to vector<1x256xf32>
    %427 = arith.addf %425, %426 : vector<1x256xf32>
    %428 = math.rsqrt %427 : vector<1x256xf32>
    %429 = arith.mulf %407, %428 : vector<1x256xf32>
    %430 = arith.mulf %419, %429 : vector<1x256xf32>
    %431 = arith.subf %408, %430 : vector<1x256xf32>
    %432 = vector.broadcast %429 : vector<1x256xf32> to vector<8x256xf32>
    %433 = arith.mulf %412, %432 : vector<8x256xf32>
    %434 = vector.broadcast %431 : vector<1x256xf32> to vector<8x256xf32>
    %435 = arith.addf %433, %434 : vector<8x256xf32>
    %436 = arith.truncf %435 : vector<8x256xf32> to vector<8x256xbf16>
    %c12 = arith.constant 12 : index
    %c0_158 = arith.constant 0 : index
    %c0_159 = arith.constant 0 : index
    %437 = vector.load %arg4[%c12, %c0_158, %c0_159] : memref<14x256x256xbf16, #tpu.memory_space<vmem>>, vector<1x256x256xbf16>
    %438 = vector.shape_cast %437 : vector<1x256x256xbf16> to vector<256x256xbf16>
    %cst_160 = arith.constant dense<0.000000e+00> : vector<8x256xf32>
    %439 = tpu.matmul %436, %438, %cst_160 {dimension_numbers = #tpu.dot_dimension_numbers<[1], [0], [0], [1], [0, 0, 1, 1], [], []>} : vector<8x256xbf16>, vector<256x256xbf16>, vector<8x256xf32> -> vector<8x256xf32>
    %c12_161 = arith.constant 12 : index
    %c0_162 = arith.constant 0 : index
    %c0_163 = arith.constant 0 : index
    %440 = vector.load %arg5[%c12_161, %c0_162, %c0_163] : memref<14x3x256xf32, #tpu.memory_space<vmem>>, vector<1x3x256xf32>
    %441 = vector.shape_cast %440 : vector<1x3x256xf32> to vector<3x256xf32>
    %442 = vector.extract_strided_slice %441 {offsets = [0, 0], sizes = [1, 256], strides = [1, 1]} : vector<3x256xf32> to vector<1x256xf32>
    %443 = vector.extract_strided_slice %441 {offsets = [1, 0], sizes = [1, 256], strides = [1, 1]} : vector<3x256xf32> to vector<1x256xf32>
    %444 = vector.extract_strided_slice %441 {offsets = [2, 0], sizes = [1, 256], strides = [1, 1]} : vector<3x256xf32> to vector<1x256xf32>
    %445 = vector.broadcast %442 : vector<1x256xf32> to vector<8x256xf32>
    %446 = arith.addf %439, %445 : vector<8x256xf32>
    %cst_164 = arith.constant 0.000000e+00 : f32
    %447 = vector.broadcast %cst_164 : f32 to vector<8x256xf32>
    %448 = arith.maximumf %446, %447 : vector<8x256xf32>
    %cst_165 = arith.constant dense<0.000000e+00> : vector<256xf32>
    %449 = vector.multi_reduction <add>, %448, %cst_165 [0] : vector<8x256xf32> to vector<256xf32>
    %450 = vector.shape_cast %449 : vector<256xf32> to vector<1x256xf32>
    %451 = arith.mulf %448, %448 : vector<8x256xf32>
    %cst_166 = arith.constant dense<0.000000e+00> : vector<256xf32>
    %452 = vector.multi_reduction <add>, %451, %cst_166 [0] : vector<8x256xf32> to vector<256xf32>
    %453 = vector.shape_cast %452 : vector<256xf32> to vector<1x256xf32>
    %cst_167 = arith.constant 1.250000e-01 : f32
    %454 = vector.broadcast %cst_167 : f32 to vector<1x256xf32>
    %455 = arith.mulf %450, %454 : vector<1x256xf32>
    %cst_168 = arith.constant 1.250000e-01 : f32
    %456 = vector.broadcast %cst_168 : f32 to vector<1x256xf32>
    %457 = arith.mulf %453, %456 : vector<1x256xf32>
    %458 = arith.mulf %455, %455 : vector<1x256xf32>
    %459 = arith.subf %457, %458 : vector<1x256xf32>
    %cst_169 = arith.constant 0.000000e+00 : f32
    %460 = vector.broadcast %cst_169 : f32 to vector<1x256xf32>
    %461 = arith.maximumf %459, %460 : vector<1x256xf32>
    %cst_170 = arith.constant 9.99999974E-6 : f32
    %462 = vector.broadcast %cst_170 : f32 to vector<1x256xf32>
    %463 = arith.addf %461, %462 : vector<1x256xf32>
    %464 = math.rsqrt %463 : vector<1x256xf32>
    %465 = arith.mulf %443, %464 : vector<1x256xf32>
    %466 = arith.mulf %455, %465 : vector<1x256xf32>
    %467 = arith.subf %444, %466 : vector<1x256xf32>
    %468 = vector.broadcast %465 : vector<1x256xf32> to vector<8x256xf32>
    %469 = arith.mulf %448, %468 : vector<8x256xf32>
    %470 = vector.broadcast %467 : vector<1x256xf32> to vector<8x256xf32>
    %471 = arith.addf %469, %470 : vector<8x256xf32>
    %472 = arith.truncf %471 : vector<8x256xf32> to vector<8x256xbf16>
    %c13 = arith.constant 13 : index
    %c0_171 = arith.constant 0 : index
    %c0_172 = arith.constant 0 : index
    %473 = vector.load %arg4[%c13, %c0_171, %c0_172] : memref<14x256x256xbf16, #tpu.memory_space<vmem>>, vector<1x256x256xbf16>
    %474 = vector.shape_cast %473 : vector<1x256x256xbf16> to vector<256x256xbf16>
    %cst_173 = arith.constant dense<0.000000e+00> : vector<8x256xf32>
    %475 = tpu.matmul %472, %474, %cst_173 {dimension_numbers = #tpu.dot_dimension_numbers<[1], [0], [0], [1], [0, 0, 1, 1], [], []>} : vector<8x256xbf16>, vector<256x256xbf16>, vector<8x256xf32> -> vector<8x256xf32>
    %c13_174 = arith.constant 13 : index
    %c0_175 = arith.constant 0 : index
    %c0_176 = arith.constant 0 : index
    %476 = vector.load %arg5[%c13_174, %c0_175, %c0_176] : memref<14x3x256xf32, #tpu.memory_space<vmem>>, vector<1x3x256xf32>
    %477 = vector.shape_cast %476 : vector<1x3x256xf32> to vector<3x256xf32>
    %478 = vector.extract_strided_slice %477 {offsets = [0, 0], sizes = [1, 256], strides = [1, 1]} : vector<3x256xf32> to vector<1x256xf32>
    %479 = vector.extract_strided_slice %477 {offsets = [1, 0], sizes = [1, 256], strides = [1, 1]} : vector<3x256xf32> to vector<1x256xf32>
    %480 = vector.extract_strided_slice %477 {offsets = [2, 0], sizes = [1, 256], strides = [1, 1]} : vector<3x256xf32> to vector<1x256xf32>
    %481 = vector.broadcast %478 : vector<1x256xf32> to vector<8x256xf32>
    %482 = arith.addf %475, %481 : vector<8x256xf32>
    %cst_177 = arith.constant 0.000000e+00 : f32
    %483 = vector.broadcast %cst_177 : f32 to vector<8x256xf32>
    %484 = arith.maximumf %482, %483 : vector<8x256xf32>
    %cst_178 = arith.constant dense<0.000000e+00> : vector<256xf32>
    %485 = vector.multi_reduction <add>, %484, %cst_178 [0] : vector<8x256xf32> to vector<256xf32>
    %486 = vector.shape_cast %485 : vector<256xf32> to vector<1x256xf32>
    %487 = arith.mulf %484, %484 : vector<8x256xf32>
    %cst_179 = arith.constant dense<0.000000e+00> : vector<256xf32>
    %488 = vector.multi_reduction <add>, %487, %cst_179 [0] : vector<8x256xf32> to vector<256xf32>
    %489 = vector.shape_cast %488 : vector<256xf32> to vector<1x256xf32>
    %cst_180 = arith.constant 1.250000e-01 : f32
    %490 = vector.broadcast %cst_180 : f32 to vector<1x256xf32>
    %491 = arith.mulf %486, %490 : vector<1x256xf32>
    %cst_181 = arith.constant 1.250000e-01 : f32
    %492 = vector.broadcast %cst_181 : f32 to vector<1x256xf32>
    %493 = arith.mulf %489, %492 : vector<1x256xf32>
    %494 = arith.mulf %491, %491 : vector<1x256xf32>
    %495 = arith.subf %493, %494 : vector<1x256xf32>
    %cst_182 = arith.constant 0.000000e+00 : f32
    %496 = vector.broadcast %cst_182 : f32 to vector<1x256xf32>
    %497 = arith.maximumf %495, %496 : vector<1x256xf32>
    %cst_183 = arith.constant 9.99999974E-6 : f32
    %498 = vector.broadcast %cst_183 : f32 to vector<1x256xf32>
    %499 = arith.addf %497, %498 : vector<1x256xf32>
    %500 = math.rsqrt %499 : vector<1x256xf32>
    %501 = arith.mulf %479, %500 : vector<1x256xf32>
    %502 = arith.mulf %491, %501 : vector<1x256xf32>
    %503 = arith.subf %480, %502 : vector<1x256xf32>
    %504 = vector.broadcast %501 : vector<1x256xf32> to vector<8x256xf32>
    %505 = arith.mulf %484, %504 : vector<8x256xf32>
    %506 = vector.broadcast %503 : vector<1x256xf32> to vector<8x256xf32>
    %507 = arith.addf %505, %506 : vector<8x256xf32>
    %c0_184 = arith.constant 0 : index
    %c0_185 = arith.constant 0 : index
    %508 = vector.load %arg9[%c0_184, %c0_185] : memref<8x256xf32, #tpu.memory_space<vmem>>, vector<8x256xf32>
    tpu.vector_store %arg9[%c0_184, %c0_185], %507 {strides = array<i32>} : memref<8x256xf32, #tpu.memory_space<vmem>>, vector<8x256xf32>,
    %c6_i32 = arith.constant 6 : i32
    %509 = arith.cmpi eq, %arg0, %c6_i32 : i32
    %510 = arith.extui %509 : i1 to i32
    %c0_i32_186 = arith.constant 0 : i32
    %511 = arith.cmpi ne, %510, %c0_i32_186 : i32
    scf.if %511 {
      %512 = arith.truncf %507 : vector<8x256xf32> to vector<8x256xbf16>
      %c0_187 = arith.constant 0 : index
      %c0_188 = arith.constant 0 : index
      %513 = vector.load %arg6[%c0_187, %c0_188] : memref<256x128xbf16, #tpu.memory_space<vmem>>, vector<256x128xbf16>
      %cst_189 = arith.constant dense<0.000000e+00> : vector<8x128xf32>
      %514 = tpu.matmul %512, %513, %cst_189 {dimension_numbers = #tpu.dot_dimension_numbers<[1], [0], [0], [1], [0, 0, 1, 1], [], []>} : vector<8x256xbf16>, vector<256x128xbf16>, vector<8x128xf32> -> vector<8x128xf32>
      %c0_190 = arith.constant 0 : index
      %c0_191 = arith.constant 0 : index
      %515 = vector.load %arg7[%c0_190, %c0_191] : memref<1x128xf32, #tpu.memory_space<vmem>>, vector<1x128xf32>
      %516 = vector.broadcast %515 : vector<1x128xf32> to vector<8x128xf32>
      %517 = arith.addf %514, %516 : vector<8x128xf32>
      %c0_192 = arith.constant 0 : index
      %c0_193 = arith.constant 0 : index
      %518 = vector.load %arg8[%c0_192, %c0_193] : memref<8x128xf32, #tpu.memory_space<vmem>>, vector<8x128xf32>
      tpu.vector_store %arg8[%c0_192, %c0_193], %517 {strides = array<i32>} : memref<8x128xf32, #tpu.memory_space<vmem>>, vector<8x128xf32>,
    } else {
    }
    return
  }
  func.func @transform_0(%arg0: i32) -> (i32, i32) {
    %c0_i32 = arith.constant 0 : i32
    %c0_i32_0 = arith.constant 0 : i32
    %c0_i32_1 = arith.constant 0 : i32
    return %c0_i32, %c0_i32_0 : i32, i32
  }
  func.func @transform_1(%arg0: i32) -> (i32, i32) {
    %c0_i32 = arith.constant 0 : i32
    %c0_i32_0 = arith.constant 0 : i32
    %c0_i32_1 = arith.constant 0 : i32
    return %c0_i32, %c0_i32_0 : i32, i32
  }
  func.func @transform_2(%arg0: i32) -> (i32, i32) {
    %c0_i32 = arith.constant 0 : i32
    %c0_i32_0 = arith.constant 0 : i32
    %c0_i32_1 = arith.constant 0 : i32
    return %c0_i32, %c0_i32_0 : i32, i32
  }
  func.func @transform_3(%arg0: i32) -> (i32, i32, i32) {
    %c0_i32 = arith.constant 0 : i32
    %c0_i32_0 = arith.constant 0 : i32
    %c0_i32_1 = arith.constant 0 : i32
    return %arg0, %c0_i32, %c0_i32_0 : i32, i32, i32
  }
  func.func @transform_4(%arg0: i32) -> (i32, i32, i32) {
    %c0_i32 = arith.constant 0 : i32
    %c0_i32_0 = arith.constant 0 : i32
    %c0_i32_1 = arith.constant 0 : i32
    return %arg0, %c0_i32, %c0_i32_0 : i32, i32, i32
  }
  func.func @transform_5(%arg0: i32) -> (i32, i32) {
    %c0_i32 = arith.constant 0 : i32
    %c0_i32_0 = arith.constant 0 : i32
    %c0_i32_1 = arith.constant 0 : i32
    return %c0_i32, %c0_i32_0 : i32, i32
  }
  func.func @transform_6(%arg0: i32) -> (i32, i32) {
    %c0_i32 = arith.constant 0 : i32
    %c0_i32_0 = arith.constant 0 : i32
    %c0_i32_1 = arith.constant 0 : i32
    return %c0_i32, %c0_i32_0 : i32, i32
  }
  func.func @transform_7(%arg0: i32) -> (i32, i32) {
    %c0_i32 = arith.constant 0 : i32
    %c0_i32_0 = arith.constant 0 : i32
    %c0_i32_1 = arith.constant 0 : i32
    return %c0_i32, %c0_i32_0 : i32, i32
  }
}

</mosaic_0001>

<llo_original>
// kernel: tpu_custom_call.1
$region0: #{tpu_custom_call.1}
  #allocation0 [shape = 'u32[]', space=smem, size = 0x4, offset = 0x4, fixed_abs, tag = 'smem constant byte address 0x4 - core index']
  #allocation1 [shape = 'u32[144,128]{1,0:T(1,128)}', space=vmem, size = 0x12000, scoped, tag = 'internal scratch']
  #allocation2 [shape = 'f32[8,256]{1,0:T(8,128)}', space=vmem, size = 0x2000, scoped, tag = 'scratch operand']
  %s0 = inlined_call_operand.hbm [shape: f32[8,784], index: 0, kind: input, shape index: {}]
  %s1 = inlined_call_operand.hbm [shape: bf16[784,256], index: 1, kind: input, shape index: {}]
  %s2 = inlined_call_operand.hbm [shape: f32[3,256], index: 2, kind: input, shape index: {}]
  %s3 = inlined_call_operand.hbm [shape: bf16[98,256,256], index: 3, kind: input, shape index: {}]
  %s4 = inlined_call_operand.vmem [shape: f32[98,3,256], index: 4, kind: input, shape index: {}]
  %s5 = inlined_call_operand.hbm [shape: bf16[256,128], index: 5, kind: input, shape index: {}]
  %s6 = inlined_call_operand.hbm [shape: f32[1,128], index: 6, kind: input, shape index: {}]
  %s7 = inlined_call_operand.hbm [shape: f32[8,128], index: 7, kind: output, shape index: {}]
  %s8 = sld [smem:[#allocation0]]
  $region93: #{tpu_custom_call.1} parent=0
    _
  %s10 = ssub.s32 1, %s8
  %s11 = scalar_select 0, %s10, %s8
  $region1: #{tpu_custom_call.1} parent=0
    #allocation3 [shape = 'u8[28672]{0}', space=vmem, size = 0x7000, scoped, tag = 'input window, operand 0, single buffered']
    #allocation4 [shape = 's32[2]{0}', space=sflag, size = 0x8, scoped, tag = 'scoped memory for tpu_custom_call.1']
    #allocation5 [shape = 's32[2]{0}', space=sflag, size = 0x8, scoped, tag = 'scoped memory for tpu_custom_call.1']
    #allocation6 [shape = 'u8[401408]{0}', space=vmem, size = 0x62000, scoped, tag = 'input window, operand 1, single buffered']
    #allocation7 [shape = 's32[1]{0}', space=sflag, size = 0x4, scoped, tag = 'scoped memory for tpu_custom_call.1']
    #allocation8 [shape = 'u8[4096]{0}', space=vmem, size = 0x1000, scoped, tag = 'input window, operand 2, single buffered']
    #allocation9 [shape = 'u8[3670016]{0}', space=vmem, size = 0x380000, scoped, tag = 'input window, operand 3']
    #allocation10 [shape = 's32[2]{0}', space=sflag, size = 0x8, scoped, tag = 'scoped memory for tpu_custom_call.1']
    #allocation11 [shape = 'u8[65536]{0}', space=vmem, size = 0x10000, scoped, tag = 'input window, operand 5, single buffered']
    #allocation12 [shape = 'u8[512]{0}', space=vmem, size = 0x400, scoped, tag = 'input window, operand 6, single buffered']
    #allocation13 [shape = 's32[1]{0}', space=sflag, size = 0x4, scoped, tag = 'scoped memory for tpu_custom_call.1']
    #allocation14 [shape = 'u8[4096]{0}', space=vmem, size = 0x1000, scoped, tag = 'output window, operand 0, single buffered']
    %12 = vsyncpa [#allocation4], 0
    %13 = vsyncpa [#allocation7], 0
    %14 = vsyncpa [#allocation10], 0
    %s15 = scalar_lea.sflag [#allocation10], 1
    %16 = vsyncpa %s15, 0
    %17 = vsyncpa [#allocation13], 0
    %18 = vsyncpa [#allocation5], 0
    loop: start=0, step=1, limit=9
    $region2: #{tpu_custom_call.1} parent=1 // loop_pre_header
      _
    $region3: #{tpu_custom_call.1} parent=1 // loop_header
      %s20 = sphi 0, %s24
      %p21 = scmp.ge.s32.totalorder %s20, 9
      %s28 = sphi 0, %s28
      %s30 = sphi 0, %s28
      %s31 = sphi 0, %s30
      %s45 = sphi 0, %s31
      %s49 = sphi 0, %s49
      %s51 = sphi 0, %s49
      %s52 = sphi 0, %s51
      %s66 = sphi 0, %s52
      %s70 = sphi 0, %s70
      %s72 = sphi 0, %s70
      %s73 = sphi 0, %s72
      %s87 = sphi 0, %s73
      %s93 = sphi 0, %s95
      %s96 = sphi 0, %s93
      %s97 = sphi 0, %s96
      %s113 = sphi 0, %s97
      %s119 = sphi 0, %s121
      %s122 = sphi 0, %s119
      %s123 = sphi 0, %s122
      %s139 = sphi 0, %s123
      %s143 = sphi 0, %s143
      %s145 = sphi 0, %s143
      %s146 = sphi 0, %s145
      %s160 = sphi 0, %s146
      %s164 = sphi 0, %s164
      %s166 = sphi 0, %s164
      %s167 = sphi 0, %s166
      %s181 = sphi 0, %s167
      %s185 = sphi 0, %s185
      %s187 = sphi 0, %s185
      %s188 = sphi 0, %s187
      %s202 = sphi 0, %s188
    $region4: #{tpu_custom_call.1} parent=1 // loop_header_branch
      %23 = sbr.rel (%p21) target = $region8
    $region5: #{tpu_custom_call.1} parent=1 // loop_body
      %s25 = ssub.s32 %s20, 1
      %s26 = ssub.s32 %s20, 2
      %s27 = sadd.s32 %s20, 1
      %s29 = sadd.s32 %s28, 1
      %p32 = scmp.eq.s32.totalorder %s20, 6
      %p33 = scmp.ne.s32.totalorder %s28, %s30
      %p34 = scmp.eq.s32.totalorder %s20, 0
      %p35 = por %p33, %p34
      %p36 = scmp.ne.s32.totalorder %s28, %s30
      %p37 = scmp.eq.s32.totalorder %s25, 6
      %p38 = por %p36, %p37
      %p39 = scmp.ne.s32.totalorder %s30, %s31
      %p40 = scmp.eq.s32.totalorder %s25, 0
      %p41 = por %p39, %p40
      %p42 = scmp.ne.s32.totalorder %s30, %s31
      %p43 = scmp.eq.s32.totalorder %s26, 6
      %p44 = por %p42, %p43
      %p46 = scmp.ne.s32.totalorder %s31, %s45
      %p47 = scmp.eq.s32.totalorder %s26, 0
      %p48 = por %p46, %p47
      %s50 = sadd.s32 %s49, 1
      %p53 = scmp.eq.s32.totalorder %s20, 6
      %p54 = scmp.ne.s32.totalorder %s49, %s51
      %p55 = scmp.eq.s32.totalorder %s20, 0
      %p56 = por %p54, %p55
      %p57 = scmp.ne.s32.totalorder %s49, %s51
      %p58 = scmp.eq.s32.totalorder %s25, 6
      %p59 = por %p57, %p58
      %p60 = scmp.ne.s32.totalorder %s51, %s52
      %p61 = scmp.eq.s32.totalorder %s25, 0
      %p62 = por %p60, %p61
      %p63 = scmp.ne.s32.totalorder %s51, %s52
      %p64 = scmp.eq.s32.totalorder %s26, 6
      %p65 = por %p63, %p64
      %p67 = scmp.ne.s32.totalorder %s52, %s66
      %p68 = scmp.eq.s32.totalorder %s26, 0
      %p69 = por %p67, %p68
      %s71 = sadd.s32 %s70, 1
      %p74 = scmp.eq.s32.totalorder %s20, 6
      %p75 = scmp.ne.s32.totalorder %s70, %s72
      %p76 = scmp.eq.s32.totalorder %s20, 0
      %p77 = por %p75, %p76
      %p78 = scmp.ne.s32.totalorder %s70, %s72
      %p79 = scmp.eq.s32.totalorder %s25, 6
      %p80 = por %p78, %p79
      %p81 = scmp.ne.s32.totalorder %s72, %s73
      %p82 = scmp.eq.s32.totalorder %s25, 0
      %p83 = por %p81, %p82
      %p84 = scmp.ne.s32.totalorder %s72, %s73
      %p85 = scmp.eq.s32.totalorder %s26, 6
      %p86 = por %p84, %p85
      %p88 = scmp.ne.s32.totalorder %s73, %s87
      %p89 = scmp.eq.s32.totalorder %s26, 0
      %p90 = por %p88, %p89
      %s91 = ssub.s32 %s20, %s27
      %p92 = scmp.eq.s32.totalorder %s91, 0
      %s94 = sadd.s32 %s93, 1
      %s95 = scalar_select %p92, %s93, %s94
      %p98 = pneg %p92
      %p99 = scmp.eq.s32.totalorder %s20, 6
      %p100 = por %p98, %p99
      %p101 = scmp.ne.s32.totalorder %s93, %s96
      %p102 = scmp.eq.s32.totalorder %s20, 0
      %p103 = por %p101, %p102
      %p104 = scmp.ne.s32.totalorder %s93, %s96
      %p105 = scmp.eq.s32.totalorder %s25, 6
      %p106 = por %p104, %p105
      %p107 = scmp.ne.s32.totalorder %s96, %s97
      %p108 = scmp.eq.s32.totalorder %s25, 0
      %p109 = por %p107, %p108
      %p110 = scmp.ne.s32.totalorder %s96, %s97
      %p111 = scmp.eq.s32.totalorder %s26, 6
      %p112 = por %p110, %p111
      %p114 = scmp.ne.s32.totalorder %s97, %s113
      %p115 = scmp.eq.s32.totalorder %s26, 0
      %p116 = por %p114, %p115
      %s117 = ssub.s32 %s20, %s27
      %p118 = scmp.eq.s32.totalorder %s117, 0
      %s120 = sadd.s32 %s119, 1
      %s121 = scalar_select %p118, %s119, %s120
      %p124 = pneg %p118
      %p125 = scmp.eq.s32.totalorder %s20, 6
      %p126 = por %p124, %p125
      %p127 = scmp.ne.s32.totalorder %s119, %s122
      %p128 = scmp.eq.s32.totalorder %s20, 0
      %p129 = por %p127, %p128
      %p130 = scmp.ne.s32.totalorder %s119, %s122
      %p131 = scmp.eq.s32.totalorder %s25, 6
      %p132 = por %p130, %p131
      %p133 = scmp.ne.s32.totalorder %s122, %s123
      %p134 = scmp.eq.s32.totalorder %s25, 0
      %p135 = por %p133, %p134
      %p136 = scmp.ne.s32.totalorder %s122, %s123
      %p137 = scmp.eq.s32.totalorder %s26, 6
      %p138 = por %p136, %p137
      %p140 = scmp.ne.s32.totalorder %s123, %s139
      %p141 = scmp.eq.s32.totalorder %s26, 0
      %p142 = por %p140, %p141
      %s144 = sadd.s32 %s143, 1
      %p147 = scmp.eq.s32.totalorder %s20, 6
      %p148 = scmp.ne.s32.totalorder %s143, %s145
      %p149 = scmp.eq.s32.totalorder %s20, 0
      %p150 = por %p148, %p149
      %p151 = scmp.ne.s32.totalorder %s143, %s145
      %p152 = scmp.eq.s32.totalorder %s25, 6
      %p153 = por %p151, %p152
      %p154 = scmp.ne.s32.totalorder %s145, %s146
      %p155 = scmp.eq.s32.totalorder %s25, 0
      %p156 = por %p154, %p155
      %p157 = scmp.ne.s32.totalorder %s145, %s146
      %p158 = scmp.eq.s32.totalorder %s26, 6
      %p159 = por %p157, %p158
      %p161 = scmp.ne.s32.totalorder %s146, %s160
      %p162 = scmp.eq.s32.totalorder %s26, 0
      %p163 = por %p161, %p162
      %s165 = sadd.s32 %s164, 1
      %p168 = scmp.eq.s32.totalorder %s20, 6
      %p169 = scmp.ne.s32.totalorder %s164, %s166
      %p170 = scmp.eq.s32.totalorder %s20, 0
      %p171 = por %p169, %p170
      %p172 = scmp.ne.s32.totalorder %s164, %s166
      %p173 = scmp.eq.s32.totalorder %s25, 6
      %p174 = por %p172, %p173
      %p175 = scmp.ne.s32.totalorder %s166, %s167
      %p176 = scmp.eq.s32.totalorder %s25, 0
      %p177 = por %p175, %p176
      %p178 = scmp.ne.s32.totalorder %s166, %s167
      %p179 = scmp.eq.s32.totalorder %s26, 6
      %p180 = por %p178, %p179
      %p182 = scmp.ne.s32.totalorder %s167, %s181
      %p183 = scmp.eq.s32.totalorder %s26, 0
      %p184 = por %p182, %p183
      %s186 = sadd.s32 %s185, 1
      %p189 = scmp.eq.s32.totalorder %s20, 6
      %p190 = scmp.ne.s32.totalorder %s185, %s187
      %p191 = scmp.eq.s32.totalorder %s20, 0
      %p192 = por %p190, %p191
      %p193 = scmp.ne.s32.totalorder %s185, %s187
      %p194 = scmp.eq.s32.totalorder %s25, 6
      %p195 = por %p193, %p194
      %p196 = scmp.ne.s32.totalorder %s187, %s188
      %p197 = scmp.eq.s32.totalorder %s25, 0
      %p198 = por %p196, %p197
      %p199 = scmp.ne.s32.totalorder %s187, %s188
      %p200 = scmp.eq.s32.totalorder %s26, 6
      %p201 = por %p199, %p200
      %p203 = scmp.ne.s32.totalorder %s188, %s202
      %p204 = scmp.eq.s32.totalorder %s26, 0
      %p205 = por %p203, %p204
      %p206 = scmp.le.s32.totalorder 1, %s20
      %p207 = scmp.lt.s32.totalorder %s20, 8
      %p208 = pnand %p206, %p207
      %p209 = pneg %p208
      // Predicated region
      $region9: #{tpu_custom_call.1} parent=5 // pred_check
        _
      $region10: #{tpu_custom_call.1} parent=5 // pred_check_branch
        %211 = sbr.rel (%p208) target = $region12
      $region11: #{tpu_custom_call.1} parent=5 // pred_region
        %s212 = ssub.s32 %s20, 1
        // Predicated region
        $region13: #{tpu_custom_call.1} parent=11 // pred_check
          %p213 = pneg %p41
        $region14: #{tpu_custom_call.1} parent=11 // pred_check_branch
          %215 = sbr.rel (%p213) target = $region16
        $region15: #{tpu_custom_call.1} parent=11 // pred_region
          %s217 = ssub.s32 896, 896
          %218 = vsyncadd [#allocation4], %s217
          %s220 = sshll.u32 [#allocation3], 4
          %s221 = int_to_ptr.vmem [resolvable:$true] %s220
          %223 = dma.hbm_to_vmem [thread:$0]  %s0, 896, %s221, [#allocation4]
        $region16: #{tpu_custom_call.1} parent=11 // pred_fallthru
          _
        // Predicated region
        $region17: #{tpu_custom_call.1} parent=11 // pred_check
          %p224 = pneg %p62
        $region18: #{tpu_custom_call.1} parent=11 // pred_check_branch
          %226 = sbr.rel (%p224) target = $region20
        $region19: #{tpu_custom_call.1} parent=11 // pred_region
          %s228 = ssub.s32 12544, 12544
          %229 = vsyncadd [#allocation7], %s228
          %s230 = sshll.u32 [#allocation6], 4
          %s231 = int_to_ptr.vmem [resolvable:$true] %s230
          %236 = dma.hbm_to_vmem [thread:$0]  %s1, 12544, %s231, [#allocation7], 128, 128, 8
        $region20: #{tpu_custom_call.1} parent=11 // pred_fallthru
          _
        // Predicated region
        $region21: #{tpu_custom_call.1} parent=11 // pred_check
          %p237 = pneg %p83
        $region22: #{tpu_custom_call.1} parent=11 // pred_check_branch
          %239 = sbr.rel (%p237) target = $region24
        $region23: #{tpu_custom_call.1} parent=11 // pred_region
          %s241 = ssub.s32 128, 128
          %242 = vsyncadd [#allocation7], %s241
          %s244 = sshll.u32 [#allocation8], 4
          %s245 = int_to_ptr.vmem [resolvable:$true] %s244
          %247 = dma.hbm_to_vmem [thread:$0]  %s2, 128, %s245, [#allocation7]
        $region24: #{tpu_custom_call.1} parent=11 // pred_fallthru
          _
        // Predicated region
        $region25: #{tpu_custom_call.1} parent=11 // pred_check
          %p248 = pneg %p156
        $region26: #{tpu_custom_call.1} parent=11 // pred_check_branch
          %250 = sbr.rel (%p248) target = $region28
        $region27: #{tpu_custom_call.1} parent=11 // pred_region
          %s252 = ssub.s32 2048, 2048
          %253 = vsyncadd [#allocation10], %s252
          %s254 = sshll.u32 [#allocation11], 4
          %s255 = int_to_ptr.vmem [resolvable:$true] %s254
          %260 = dma.hbm_to_vmem [thread:$0]  %s5, 2048, %s255, [#allocation10], 64, 64, 4
        $region28: #{tpu_custom_call.1} parent=11 // pred_fallthru
          _
        // Predicated region
        $region29: #{tpu_custom_call.1} parent=11 // pred_check
          %p261 = pneg %p177
        $region30: #{tpu_custom_call.1} parent=11 // pred_check_branch
          %263 = sbr.rel (%p261) target = $region32
        $region31: #{tpu_custom_call.1} parent=11 // pred_region
          %s265 = ssub.s32 16, 16
          %266 = vsyncadd [#allocation13], %s265
          %s268 = sshll.u32 [#allocation12], 4
          %s269 = int_to_ptr.vmem [resolvable:$true] %s268
          %271 = dma.hbm_to_vmem [thread:$0]  %s6, 16, %s269, [#allocation13]
        $region32: #{tpu_custom_call.1} parent=11 // pred_fallthru
          _
      $region12: #{tpu_custom_call.1} parent=5 // pred_fallthru
        _
      %p272 = scmp.lt.s32.totalorder %s20, 7
      // Predicated region
      $region33: #{tpu_custom_call.1} parent=5 // pred_check
        %p273 = pneg %p272
      $region34: #{tpu_custom_call.1} parent=5 // pred_check_branch
        %275 = sbr.rel (%p273) target = $region36
      $region35: #{tpu_custom_call.1} parent=5 // pred_region
        // Predicated region
        $region37: #{tpu_custom_call.1} parent=35 // pred_check
          %p276 = pneg %p103
        $region38: #{tpu_custom_call.1} parent=35 // pred_check_branch
          %278 = sbr.rel (%p276) target = $region40
        $region39: #{tpu_custom_call.1} parent=35 // pred_region
          %s279 = sand.u32 %s20, 1
          %s280 = scalar_lea.sflag [#allocation10], %s279
          %s281 = sand.u32 %s93, 1
          %s282 = smul.addr %s281, 3584
          %s283 = scalar_lea.vmem [#allocation9], %s282
          %s284 = smul.u32 14, %s20
          %s286 = ssub.s32 57344, 57344
          %287 = vsyncadd %s280, %s286
          %s288 = smul.addr %s284, 64
          %s289 = smul.addr %s288, 64
          %s290 = scalar_lea.hbm %s3, %s289
          %s291 = sshll.u32 %s283, 4
          %s292 = int_to_ptr.vmem [resolvable:$true] %s291
          %297 = dma.hbm_to_vmem [thread:$0]  %s290, 57344, %s292, %s280, 128, 128, 8
        $region40: #{tpu_custom_call.1} parent=35 // pred_fallthru
          _
        // Predicated region
        $region41: #{tpu_custom_call.1} parent=35 // pred_check
          %p298 = pneg %p129
        $region42: #{tpu_custom_call.1} parent=35 // pred_check_branch
          %300 = sbr.rel (%p298) target = $region44
        $region43: #{tpu_custom_call.1} parent=35 // pred_region
          %s301 = smul.u32 14, %s20
          %p302 = scmp.lt.s32.totalorder %s301, 97
          %s303 = scalar_select %p302, %s301, 97
          %s304 = smul.addr %s303, 2
          %s305 = smul.addr %s304, 4
          %s306 = scalar_lea.vmem %s4, %s305
          %s307 = smul.u32 14, %s20
        $region44: #{tpu_custom_call.1} parent=35 // pred_fallthru
          _
      $region36: #{tpu_custom_call.1} parent=5 // pred_fallthru
        _
      %p308 = scmp.le.s32.totalorder 1, %s20
      %p309 = scmp.lt.s32.totalorder %s20, 8
      %p310 = pnand %p308, %p309
      %p311 = pneg %p310
      // Predicated region
      $region45: #{tpu_custom_call.1} parent=5 // pred_check
        _
      $region46: #{tpu_custom_call.1} parent=5 // pred_check_branch
        %313 = sbr.rel (%p310) target = $region48
      $region47: #{tpu_custom_call.1} parent=5 // pred_region
        %s314 = ssub.s32 %s20, 1
        // Predicated region
        $region49: #{tpu_custom_call.1} parent=47 // pred_check
          %p315 = pneg %p41
        $region50: #{tpu_custom_call.1} parent=47 // pred_check_branch
          %317 = sbr.rel (%p315) target = $region52
        $region51: #{tpu_custom_call.1} parent=47 // pred_region
          %318 = dma.done [#allocation4], 896
        $region52: #{tpu_custom_call.1} parent=47 // pred_fallthru
          _
        // Predicated region
        $region53: #{tpu_custom_call.1} parent=47 // pred_check
          %p319 = pneg %p62
        $region54: #{tpu_custom_call.1} parent=47 // pred_check_branch
          %321 = sbr.rel (%p319) target = $region56
        $region55: #{tpu_custom_call.1} parent=47 // pred_region
          %322 = dma.done [#allocation7], 12544
        $region56: #{tpu_custom_call.1} parent=47 // pred_fallthru
          _
        // Predicated region
        $region57: #{tpu_custom_call.1} parent=47 // pred_check
          %p323 = pneg %p83
        $region58: #{tpu_custom_call.1} parent=47 // pred_check_branch
          %325 = sbr.rel (%p323) target = $region60
        $region59: #{tpu_custom_call.1} parent=47 // pred_region
          %326 = dma.done [#allocation7], 128
        $region60: #{tpu_custom_call.1} parent=47 // pred_fallthru
          _
        %s327 = sand.u32 %s25, 1
        %s328 = scalar_lea.sflag [#allocation10], %s327
        %s329 = sand.u32 %s96, 1
        %s330 = smul.addr %s329, 3584
        %s331 = scalar_lea.vmem [#allocation9], %s330
        // Predicated region
        $region61: #{tpu_custom_call.1} parent=47 // pred_check
          %p332 = pneg %p109
        $region62: #{tpu_custom_call.1} parent=47 // pred_check_branch
          %334 = sbr.rel (%p332) target = $region64
        $region63: #{tpu_custom_call.1} parent=47 // pred_region
          %335 = dma.done %s328, 57344
        $region64: #{tpu_custom_call.1} parent=47 // pred_fallthru
          _
        // Predicated region
        $region65: #{tpu_custom_call.1} parent=47 // pred_check
          %p336 = pneg %p156
        $region66: #{tpu_custom_call.1} parent=47 // pred_check_branch
          %338 = sbr.rel (%p336) target = $region68
        $region67: #{tpu_custom_call.1} parent=47 // pred_region
          %339 = dma.done [#allocation10], 2048
        $region68: #{tpu_custom_call.1} parent=47 // pred_fallthru
          _
        // Predicated region
        $region69: #{tpu_custom_call.1} parent=47 // pred_check
          %p340 = pneg %p177
        $region70: #{tpu_custom_call.1} parent=47 // pred_check_branch
          %342 = sbr.rel (%p340) target = $region72
        $region71: #{tpu_custom_call.1} parent=47 // pred_region
          %343 = dma.done [#allocation13], 16
        $region72: #{tpu_custom_call.1} parent=47 // pred_fallthru
          _
        %p344 = pneg %p41
        %p345 = pneg %p38
        %p346 = pneg %p62
        %p347 = pneg %p59
        %p348 = pneg %p83
        %p349 = pneg %p80
        %s350 = sand.u32 %s25, 1
        %s351 = scalar_lea.sflag [#allocation10], %s350
        %s352 = sand.u32 %s96, 1
        %s353 = smul.addr %s352, 3584
        %s354 = scalar_lea.vmem [#allocation9], %s353
        %p355 = pneg %p109
        %p356 = pneg %p106
        %s357 = smul.u32 14, %s25
        %p358 = scmp.lt.s32.totalorder %s357, 97
        %s359 = scalar_select %p358, %s357, 97
        %s360 = smul.addr %s359, 2
        %s361 = smul.addr %s360, 4
        %s362 = scalar_lea.vmem %s4, %s361
        %p363 = pneg %p135
        %p364 = pneg %p132
        %p365 = pneg %p156
        %p366 = pneg %p153
        %p367 = pneg %p177
        %p368 = pneg %p174
        %p369 = pneg %p198
        %p370 = pneg %p195
        %s371 = smul.u32 14, %s25
        %s372 = smul.u32 14, %s25
        %p373 = scmp.lt.s32.totalorder %s372, 97
        %s374 = scalar_select %p373, %s372, 97
        %s375 = smul.addr %s374, 2
        %s376 = smul.addr %s375, 4
        %s377 = scalar_lea.vmem %s4, %s376
        %s378 = smul.u32 14, %s25
        %p380 = scmp.eq.s32.totalorder %s25, 0
        // Predicated region
        $region73: #{tpu_custom_call.1} parent=47 // pred_check
          %p381 = pneg %p380
        $region74: #{tpu_custom_call.1} parent=47 // pred_check_branch
          %383 = sbr.rel (%p381) target = $region76
        $region75: #{tpu_custom_call.1} parent=47 // pred_region
          %v384 = vld [vmem:[#allocation3] sm:$0xff]
          %v385 = vld [vmem:[#allocation3 + $0x8] sm:$0xff]
          %v386 = vld [vmem:[#allocation3 + $0x10] sm:$0xff]
          %v387 = vld [vmem:[#allocation3 + $0x18] sm:$0xff]
          %v388 = vld [vmem:[#allocation3 + $0x20] sm:$0xff]
          %v389 = vld [vmem:[#allocation3 + $0x28] sm:$0xff]
          %v390 = vld [vmem:[#allocation3 + $0x30] sm:$0xff]
          %v391 = vpack.c.bf16 %v384, %v384
          %v392 = vpack.c.bf16 %v385, %v385
          %v393 = vpack.c.bf16 %v386, %v386
          %v394 = vpack.c.bf16 %v387, %v387
          %v395 = vpack.c.bf16 %v388, %v388
          %v396 = vpack.c.bf16 %v389, %v389
          %v397 = vpack.c.bf16 %v390, %v390
          %v398 = vld [vmem:[#allocation6] sm:$0xff]
          %v399 = vld [vmem:[#allocation6 + $0x8] sm:$0xff]
          %v400 = vld [vmem:[#allocation6 + $0x10] sm:$0xff]
          %v401 = vld [vmem:[#allocation6 + $0x18] sm:$0xff]
          %v402 = vld [vmem:[#allocation6 + $0x20] sm:$0xff]
          %v403 = vld [vmem:[#allocation6 + $0x28] sm:$0xff]
          %v404 = vld [vmem:[#allocation6 + $0x30] sm:$0xff]
          %v405 = vld [vmem:[#allocation6 + $0x38] sm:$0xff]
          %v406 = vld [vmem:[#allocation6 + $0x40] sm:$0xff]
          %v407 = vld [vmem:[#allocation6 + $0x48] sm:$0xff]
          %v408 = vld [vmem:[#allocation6 + $0x50] sm:$0xff]
          %v409 = vld [vmem:[#allocation6 + $0x58] sm:$0xff]
          %v410 = vld [vmem:[#allocation6 + $0x60] sm:$0xff]
          %v411 = vld [vmem:[#allocation6 + $0x68] sm:$0xff]
          %v412 = vld [vmem:[#allocation6 + $0x70] sm:$0xff]
          %v413 = vld [vmem:[#allocation6 + $0x78] sm:$0xff]
          %v414 = vld [vmem:[#allocation6 + $0x80] sm:$0xff]
          %v415 = vld [vmem:[#allocation6 + $0x88] sm:$0xff]
          %v416 = vld [vmem:[#allocation6 + $0x90] sm:$0xff]
          %v417 = vld [vmem:[#allocation6 + $0x98] sm:$0xff]
          %v418 = vld [vmem:[#allocation6 + $0xa0] sm:$0xff]
          %v419 = vld [vmem:[#allocation6 + $0xa8] sm:$0xff]
          %v420 = vld [vmem:[#allocation6 + $0xb0] sm:$0xff]
          %v421 = vld [vmem:[#allocation6 + $0xb8] sm:$0xff]
          %v422 = vld [vmem:[#allocation6 + $0xc0] sm:$0xff]
          %v423 = vld [vmem:[#allocation6 + $0xc8] sm:$0xff]
          %v424 = vld [vmem:[#allocation6 + $0xd0] sm:$0xff]
          %v425 = vld [vmem:[#allocation6 + $0xd8] sm:$0xff]
          %v426 = vld [vmem:[#allocation6 + $0xe0] sm:$0xff]
          %v427 = vld [vmem:[#allocation6 + $0xe8] sm:$0xff]
          %v428 = vld [vmem:[#allocation6 + $0xf0] sm:$0xff]
          %v429 = vld [vmem:[#allocation6 + $0xf8] sm:$0xff]
          %v430 = vld [vmem:[#allocation6 + $0x100] sm:$0xff]
          %v431 = vld [vmem:[#allocation6 + $0x108] sm:$0xff]
          %v432 = vld [vmem:[#allocation6 + $0x110] sm:$0xff]
          %v433 = vld [vmem:[#allocation6 + $0x118] sm:$0xff]
          %v434 = vld [vmem:[#allocation6 + $0x120] sm:$0xff]
          %v435 = vld [vmem:[#allocation6 + $0x128] sm:$0xff]
          %v436 = vld [vmem:[#allocation6 + $0x130] sm:$0xff]
          %v437 = vld [vmem:[#allocation6 + $0x138] sm:$0xff]
          %v438 = vld [vmem:[#allocation6 + $0x140] sm:$0xff]
          %v439 = vld [vmem:[#allocation6 + $0x148] sm:$0xff]
          %v440 = vld [vmem:[#allocation6 + $0x150] sm:$0xff]
          %v441 = vld [vmem:[#allocation6 + $0x158] sm:$0xff]
          %v442 = vld [vmem:[#allocation6 + $0x160] sm:$0xff]
          %v443 = vld [vmem:[#allocation6 + $0x168] sm:$0xff]
          %v444 = vld [vmem:[#allocation6 + $0x170] sm:$0xff]
          %v445 = vld [vmem:[#allocation6 + $0x178] sm:$0xff]
          %v446 = vld [vmem:[#allocation6 + $0x180] sm:$0xff]
          %v447 = vld [vmem:[#allocation6 + $0x188] sm:$0xff]
          %v448 = vld [vmem:[#allocation6 + $0x190] sm:$0xff]
          %v449 = vld [vmem:[#allocation6 + $0x198] sm:$0xff]
          %v450 = vld [vmem:[#allocation6 + $0x1a0] sm:$0xff]
          %v451 = vld [vmem:[#allocation6 + $0x1a8] sm:$0xff]
          %v452 = vld [vmem:[#allocation6 + $0x1b0] sm:$0xff]
          %v453 = vld [vmem:[#allocation6 + $0x1b8] sm:$0xff]
          %v454 = vld [vmem:[#allocation6 + $0x1c0] sm:$0xff]
          %v455 = vld [vmem:[#allocation6 + $0x1c8] sm:$0xff]
          %v456 = vld [vmem:[#allocation6 + $0x1d0] sm:$0xff]
          %v457 = vld [vmem:[#allocation6 + $0x1d8] sm:$0xff]
          %v458 = vld [vmem:[#allocation6 + $0x1e0] sm:$0xff]
          %v459 = vld [vmem:[#allocation6 + $0x1e8] sm:$0xff]
          %v460 = vld [vmem:[#allocation6 + $0x1f0] sm:$0xff]
          %v461 = vld [vmem:[#allocation6 + $0x1f8] sm:$0xff]
          %v462 = vld [vmem:[#allocation6 + $0x200] sm:$0xff]
          %v463 = vld [vmem:[#allocation6 + $0x208] sm:$0xff]
          %v464 = vld [vmem:[#allocation6 + $0x210] sm:$0xff]
          %v465 = vld [vmem:[#allocation6 + $0x218] sm:$0xff]
          %v466 = vld [vmem:[#allocation6 + $0x220] sm:$0xff]
          %v467 = vld [vmem:[#allocation6 + $0x228] sm:$0xff]
          %v468 = vld [vmem:[#allocation6 + $0x230] sm:$0xff]
          %v469 = vld [vmem:[#allocation6 + $0x238] sm:$0xff]
          %v470 = vld [vmem:[#allocation6 + $0x240] sm:$0xff]
          %v471 = vld [vmem:[#allocation6 + $0x248] sm:$0xff]
          %v472 = vld [vmem:[#allocation6 + $0x250] sm:$0xff]
          %v473 = vld [vmem:[#allocation6 + $0x258] sm:$0xff]
          %v474 = vld [vmem:[#allocation6 + $0x260] sm:$0xff]
          %v475 = vld [vmem:[#allocation6 + $0x268] sm:$0xff]
          %v476 = vld [vmem:[#allocation6 + $0x270] sm:$0xff]
          %v477 = vld [vmem:[#allocation6 + $0x278] sm:$0xff]
          %v478 = vld [vmem:[#allocation6 + $0x280] sm:$0xff]
          %v479 = vld [vmem:[#allocation6 + $0x288] sm:$0xff]
          %v480 = vld [vmem:[#allocation6 + $0x290] sm:$0xff]
          %v481 = vld [vmem:[#allocation6 + $0x298] sm:$0xff]
          %v482 = vld [vmem:[#allocation6 + $0x2a0] sm:$0xff]
          %v483 = vld [vmem:[#allocation6 + $0x2a8] sm:$0xff]
          %v484 = vld [vmem:[#allocation6 + $0x2b0] sm:$0xff]
          %v485 = vld [vmem:[#allocation6 + $0x2b8] sm:$0xff]
          %v486 = vld [vmem:[#allocation6 + $0x2c0] sm:$0xff]
          %v487 = vld [vmem:[#allocation6 + $0x2c8] sm:$0xff]
          %v488 = vld [vmem:[#allocation6 + $0x2d0] sm:$0xff]
          %v489 = vld [vmem:[#allocation6 + $0x2d8] sm:$0xff]
          %v490 = vld [vmem:[#allocation6 + $0x2e0] sm:$0xff]
          %v491 = vld [vmem:[#allocation6 + $0x2e8] sm:$0xff]
          %v492 = vld [vmem:[#allocation6 + $0x2f0] sm:$0xff]
          %v493 = vld [vmem:[#allocation6 + $0x2f8] sm:$0xff]
          %v494 = vld [vmem:[#allocation6 + $0x300] sm:$0xff]
          %v495 = vld [vmem:[#allocation6 + $0x308] sm:$0xff]
          %v496 = vld [vmem:[#allocation8] sm:$0x77]
          %v498 = vlaneseq
          %v499 = vshrl.u32 %v498, 7
          %v500 = vsub.s32 0, %v499
          %v501 = vrot.slane %v496, %v500
          %v502 = vlaneseq
          %v503 = vshrl.u32 %v502, 7
          %v504 = vsub.s32 4, %v503
          %v505 = vrot.slane %v496, %v504
          %v508 = vlaneseq
          %v509 = vshrl.u32 %v508, 7
          %v510 = vsub.s32 0, %v509
          %v511 = vrot.slane %v501, %v510
          %v512 = vlaneseq
          %v513 = vshrl.u32 %v512, 7
          %v514 = vsub.s32 0, %v513
          %v515 = vrot.slane %v505, %v514
          %v614 = vunpack.c.l.b16 %v398
          %v615 = vunpack.c.h.b16 %v398
          %v616 = vunpack.c.l.b16 %v399
          %v617 = vunpack.c.h.b16 %v399
          %v618 = vunpack.c.l.b16 %v400
          %v619 = vunpack.c.h.b16 %v400
          %v620 = vunpack.c.l.b16 %v401
          %v621 = vunpack.c.h.b16 %v401
          %v622 = vunpack.c.l.b16 %v402
          %v623 = vunpack.c.h.b16 %v402
          %v624 = vunpack.c.l.b16 %v403
          %v625 = vunpack.c.h.b16 %v403
          %v626 = vunpack.c.l.b16 %v404
          %v627 = vunpack.c.h.b16 %v404
          %v628 = vunpack.c.l.b16 %v405
          %v629 = vunpack.c.h.b16 %v405
          %v630 = vunpack.c.l.b16 %v406
          %v631 = vunpack.c.h.b16 %v406
          %v632 = vunpack.c.l.b16 %v407
          %v633 = vunpack.c.h.b16 %v407
          %v634 = vunpack.c.l.b16 %v408
          %v635 = vunpack.c.h.b16 %v408
          %v636 = vunpack.c.l.b16 %v409
          %v637 = vunpack.c.h.b16 %v409
          %v638 = vunpack.c.l.b16 %v410
          %v639 = vunpack.c.h.b16 %v410
          %v640 = vunpack.c.l.b16 %v411
          %v641 = vunpack.c.h.b16 %v411
          %v642 = vunpack.c.l.b16 %v412
          %v643 = vunpack.c.h.b16 %v412
          %v644 = vunpack.c.l.b16 %v413
          %v645 = vunpack.c.h.b16 %v413
          %v646 = vunpack.c.l.b16 %v414
          %v647 = vunpack.c.h.b16 %v414
          %v648 = vunpack.c.l.b16 %v415
          %v649 = vunpack.c.h.b16 %v415
          %v650 = vunpack.c.l.b16 %v416
          %v651 = vunpack.c.h.b16 %v416
          %v652 = vunpack.c.l.b16 %v417
          %v653 = vunpack.c.h.b16 %v417
          %v654 = vunpack.c.l.b16 %v418
          %v655 = vunpack.c.h.b16 %v418
          %v656 = vunpack.c.l.b16 %v419
          %v657 = vunpack.c.h.b16 %v419
          %v658 = vunpack.c.l.b16 %v420
          %v659 = vunpack.c.h.b16 %v420
          %v660 = vunpack.c.l.b16 %v421
          %v661 = vunpack.c.h.b16 %v421
          %v662 = vunpack.c.l.b16 %v422
          %v663 = vunpack.c.h.b16 %v422
          %v664 = vunpack.c.l.b16 %v423
          %v665 = vunpack.c.h.b16 %v423
          %v666 = vunpack.c.l.b16 %v424
          %v667 = vunpack.c.h.b16 %v424
          %v668 = vunpack.c.l.b16 %v425
          %v669 = vunpack.c.h.b16 %v425
          %v670 = vunpack.c.l.b16 %v426
          %v671 = vunpack.c.h.b16 %v426
          %v672 = vunpack.c.l.b16 %v427
          %v673 = vunpack.c.h.b16 %v427
          %v674 = vunpack.c.l.b16 %v428
          %v675 = vunpack.c.h.b16 %v428
          %v676 = vunpack.c.l.b16 %v429
          %v677 = vunpack.c.h.b16 %v429
          %v678 = vunpack.c.l.b16 %v430
          %v679 = vunpack.c.h.b16 %v430
          %v680 = vunpack.c.l.b16 %v431
          %v681 = vunpack.c.h.b16 %v431
          %v682 = vunpack.c.l.b16 %v432
          %v683 = vunpack.c.h.b16 %v432
          %v684 = vunpack.c.l.b16 %v433
          %v685 = vunpack.c.h.b16 %v433
          %v686 = vunpack.c.l.b16 %v434
          %v687 = vunpack.c.h.b16 %v434
          %v688 = vunpack.c.l.b16 %v435
          %v689 = vunpack.c.h.b16 %v435
          %v690 = vunpack.c.l.b16 %v436
          %v691 = vunpack.c.h.b16 %v436
          %v692 = vunpack.c.l.b16 %v437
          %v693 = vunpack.c.h.b16 %v437
          %v694 = vunpack.c.l.b16 %v438
          %v695 = vunpack.c.h.b16 %v438
          %v696 = vunpack.c.l.b16 %v439
          %v697 = vunpack.c.h.b16 %v439
          %v698 = vunpack.c.l.b16 %v440
          %v699 = vunpack.c.h.b16 %v440
          %v700 = vunpack.c.l.b16 %v441
          %v701 = vunpack.c.h.b16 %v441
          %v702 = vunpack.c.l.b16 %v442
          %v703 = vunpack.c.h.b16 %v442
          %v704 = vunpack.c.l.b16 %v443
          %v705 = vunpack.c.h.b16 %v443
          %v706 = vunpack.c.l.b16 %v444
          %v707 = vunpack.c.h.b16 %v444
          %v708 = vunpack.c.l.b16 %v445
          %v709 = vunpack.c.h.b16 %v445
          %v710 = vunpack.c.l.b16 %v446
          %v711 = vunpack.c.h.b16 %v446
          %v712 = vunpack.c.l.b16 %v447
          %v713 = vunpack.c.h.b16 %v447
          %v714 = vunpack.c.l.b16 %v448
          %v715 = vunpack.c.h.b16 %v448
          %v716 = vunpack.c.l.b16 %v449
          %v717 = vunpack.c.h.b16 %v449
          %v718 = vunpack.c.l.b16 %v450
          %v719 = vunpack.c.h.b16 %v450
          %v720 = vunpack.c.l.b16 %v451
          %v721 = vunpack.c.h.b16 %v451
          %v722 = vunpack.c.l.b16 %v452
          %v723 = vunpack.c.h.b16 %v452
          %v724 = vunpack.c.l.b16 %v453
          %v725 = vunpack.c.h.b16 %v453
          %v726 = vunpack.c.l.b16 %v454
          %v727 = vunpack.c.h.b16 %v454
          %v728 = vunpack.c.l.b16 %v455
          %v729 = vunpack.c.h.b16 %v455
          %v730 = vunpack.c.l.b16 %v456
          %v731 = vunpack.c.h.b16 %v456
          %v732 = vunpack.c.l.b16 %v457
          %v733 = vunpack.c.h.b16 %v457
          %v734 = vunpack.c.l.b16 %v458
          %v735 = vunpack.c.h.b16 %v458
          %v736 = vunpack.c.l.b16 %v459
          %v737 = vunpack.c.h.b16 %v459
          %v738 = vunpack.c.l.b16 %v460
          %v739 = vunpack.c.h.b16 %v460
          %v740 = vunpack.c.l.b16 %v461
          %v741 = vunpack.c.h.b16 %v461
          %v742 = vunpack.c.l.b16 %v462
          %v743 = vunpack.c.h.b16 %v462
          %v744 = vunpack.c.l.b16 %v463
          %v745 = vunpack.c.h.b16 %v463
          %v746 = vunpack.c.l.b16 %v464
          %v747 = vunpack.c.h.b16 %v464
          %v748 = vunpack.c.l.b16 %v465
          %v749 = vunpack.c.h.b16 %v465
          %v750 = vunpack.c.l.b16 %v466
          %v751 = vunpack.c.h.b16 %v466
          %v752 = vunpack.c.l.b16 %v467
          %v753 = vunpack.c.h.b16 %v467
          %v754 = vunpack.c.l.b16 %v468
          %v755 = vunpack.c.h.b16 %v468
          %v756 = vunpack.c.l.b16 %v469
          %v757 = vunpack.c.h.b16 %v469
          %v758 = vunpack.c.l.b16 %v470
          %v759 = vunpack.c.h.b16 %v470
          %v760 = vunpack.c.l.b16 %v471
          %v761 = vunpack.c.h.b16 %v471
          %v762 = vunpack.c.l.b16 %v472
          %v763 = vunpack.c.h.b16 %v472
          %v764 = vunpack.c.l.b16 %v473
          %v765 = vunpack.c.h.b16 %v473
          %v766 = vunpack.c.l.b16 %v474
          %v767 = vunpack.c.h.b16 %v474
          %v768 = vunpack.c.l.b16 %v475
          %v769 = vunpack.c.h.b16 %v475
          %v770 = vunpack.c.l.b16 %v476
          %v771 = vunpack.c.h.b16 %v476
          %v772 = vunpack.c.l.b16 %v477
          %v773 = vunpack.c.h.b16 %v477
          %v774 = vunpack.c.l.b16 %v478
          %v775 = vunpack.c.h.b16 %v478
          %v776 = vunpack.c.l.b16 %v479
          %v777 = vunpack.c.h.b16 %v479
          %v778 = vunpack.c.l.b16 %v480
          %v779 = vunpack.c.h.b16 %v480
          %v780 = vunpack.c.l.b16 %v481
          %v781 = vunpack.c.h.b16 %v481
          %v782 = vunpack.c.l.b16 %v482
          %v783 = vunpack.c.h.b16 %v482
          %v784 = vunpack.c.l.b16 %v483
          %v785 = vunpack.c.h.b16 %v483
          %v786 = vunpack.c.l.b16 %v484
          %v787 = vunpack.c.h.b16 %v484
          %v788 = vunpack.c.l.b16 %v485
          %v789 = vunpack.c.h.b16 %v485
          %v790 = vunpack.c.l.b16 %v486
          %v791 = vunpack.c.h.b16 %v486
          %v792 = vunpack.c.l.b16 %v487
          %v793 = vunpack.c.h.b16 %v487
          %v794 = vunpack.c.l.b16 %v488
          %v795 = vunpack.c.h.b16 %v488
          %v796 = vunpack.c.l.b16 %v489
          %v797 = vunpack.c.h.b16 %v489
          %v798 = vunpack.c.l.b16 %v490
          %v799 = vunpack.c.h.b16 %v490
          %v800 = vunpack.c.l.b16 %v491
          %v801 = vunpack.c.h.b16 %v491
          %v802 = vunpack.c.l.b16 %v492
          %v803 = vunpack.c.h.b16 %v492
          %v804 = vunpack.c.l.b16 %v493
          %v805 = vunpack.c.h.b16 %v493
          %v806 = vunpack.c.l.b16 %v494
          %v807 = vunpack.c.h.b16 %v494
          %v808 = vunpack.c.l.b16 %v495
          %v809 = vunpack.c.h.b16 %v495
          %v810 = vpack.c.b16 %v616, %v614
          %v811 = vpack.c.b16 %v617, %v615
          %v812 = vpack.c.b16 %v620, %v618
          %v813 = vpack.c.b16 %v621, %v619
          %v814 = vpack.c.b16 %v624, %v622
          %v815 = vpack.c.b16 %v625, %v623
          %v816 = vpack.c.b16 %v628, %v626
          %v817 = vpack.c.b16 %v629, %v627
          %v818 = vpack.c.b16 %v632, %v630
          %v819 = vpack.c.b16 %v633, %v631
          %v820 = vpack.c.b16 %v636, %v634
          %v821 = vpack.c.b16 %v637, %v635
          %v822 = vpack.c.b16 %v640, %v638
          %v823 = vpack.c.b16 %v641, %v639
          %v824 = vpack.c.b16 %v644, %v642
          %v825 = vpack.c.b16 %v645, %v643
          %v826 = vpack.c.b16 %v648, %v646
          %v827 = vpack.c.b16 %v649, %v647
          %v828 = vpack.c.b16 %v652, %v650
          %v829 = vpack.c.b16 %v653, %v651
          %v830 = vpack.c.b16 %v656, %v654
          %v831 = vpack.c.b16 %v657, %v655
          %v832 = vpack.c.b16 %v660, %v658
          %v833 = vpack.c.b16 %v661, %v659
          %v834 = vpack.c.b16 %v664, %v662
          %v835 = vpack.c.b16 %v665, %v663
          %v836 = vpack.c.b16 %v668, %v666
          %v837 = vpack.c.b16 %v669, %v667
          %v838 = vpack.c.b16 %v672, %v670
          %v839 = vpack.c.b16 %v673, %v671
          %v840 = vpack.c.b16 %v676, %v674
          %v841 = vpack.c.b16 %v677, %v675
          %v842 = vpack.c.b16 %v680, %v678
          %v843 = vpack.c.b16 %v681, %v679
          %v844 = vpack.c.b16 %v684, %v682
          %v845 = vpack.c.b16 %v685, %v683
          %v846 = vpack.c.b16 %v688, %v686
          %v847 = vpack.c.b16 %v689, %v687
          %v848 = vpack.c.b16 %v692, %v690
          %v849 = vpack.c.b16 %v693, %v691
          %v850 = vpack.c.b16 %v696, %v694
          %v851 = vpack.c.b16 %v697, %v695
          %v852 = vpack.c.b16 %v700, %v698
          %v853 = vpack.c.b16 %v701, %v699
          %v854 = vpack.c.b16 %v704, %v702
          %v855 = vpack.c.b16 %v705, %v703
          %v856 = vpack.c.b16 %v708, %v706
          %v857 = vpack.c.b16 %v709, %v707
          %v858 = vpack.c.b16 %v712, %v710
          %v859 = vpack.c.b16 %v713, %v711
          %v860 = vpack.c.b16 %v716, %v714
          %v861 = vpack.c.b16 %v717, %v715
          %v862 = vpack.c.b16 %v720, %v718
          %v863 = vpack.c.b16 %v721, %v719
          %v864 = vpack.c.b16 %v724, %v722
          %v865 = vpack.c.b16 %v725, %v723
          %v866 = vpack.c.b16 %v728, %v726
          %v867 = vpack.c.b16 %v729, %v727
          %v868 = vpack.c.b16 %v732, %v730
          %v869 = vpack.c.b16 %v733, %v731
          %v870 = vpack.c.b16 %v736, %v734
          %v871 = vpack.c.b16 %v737, %v735
          %v872 = vpack.c.b16 %v740, %v738
          %v873 = vpack.c.b16 %v741, %v739
          %v874 = vpack.c.b16 %v744, %v742
          %v875 = vpack.c.b16 %v745, %v743
          %v876 = vpack.c.b16 %v748, %v746
          %v877 = vpack.c.b16 %v749, %v747
          %v878 = vpack.c.b16 %v752, %v750
          %v879 = vpack.c.b16 %v753, %v751
          %v880 = vpack.c.b16 %v756, %v754
          %v881 = vpack.c.b16 %v757, %v755
          %v882 = vpack.c.b16 %v760, %v758
          %v883 = vpack.c.b16 %v761, %v759
          %v884 = vpack.c.b16 %v764, %v762
          %v885 = vpack.c.b16 %v765, %v763
          %v886 = vpack.c.b16 %v768, %v766
          %v887 = vpack.c.b16 %v769, %v767
          %v888 = vpack.c.b16 %v772, %v770
          %v889 = vpack.c.b16 %v773, %v771
          %v890 = vpack.c.b16 %v776, %v774
          %v891 = vpack.c.b16 %v777, %v775
          %v892 = vpack.c.b16 %v780, %v778
          %v893 = vpack.c.b16 %v781, %v779
          %v894 = vpack.c.b16 %v784, %v782
          %v895 = vpack.c.b16 %v785, %v783
          %v896 = vpack.c.b16 %v788, %v786
          %v897 = vpack.c.b16 %v789, %v787
          %v898 = vpack.c.b16 %v792, %v790
          %v899 = vpack.c.b16 %v793, %v791
          %v900 = vpack.c.b16 %v796, %v794
          %v901 = vpack.c.b16 %v797, %v795
          %v902 = vpack.c.b16 %v800, %v798
          %v903 = vpack.c.b16 %v801, %v799
          %v904 = vpack.c.b16 %v804, %v802
          %v905 = vpack.c.b16 %v805, %v803
          %v906 = vpack.c.b16 %v808, %v806
          %v907 = vpack.c.b16 %v809, %v807
          %vm1006 = vcmask 130048
          %v1008 = vsel %vm1006, %v397, 0
          %1010 = vmatprep.subr.bf16.mxu0 %v811
          %1011 = vmatpush1.bf16.msra.mxu0 %v810
          %1012 = vmatprep.subr.bf16.mxu0 %v813
          %1013 = vmatpush1.bf16.msra.mxu0 %v812
          %1014 = vmatprep.subr.bf16.mxu0 %v815
          %1015 = vmatpush1.bf16.msra.mxu0 %v814
          %1016 = vmatprep.subr.bf16.mxu0 %v817
          %1017 = vmatpush1.bf16.msra.mxu0 %v816
          %1018 = vmatprep.subr.bf16.mxu0 %v819
          %1019 = vmatpush1.bf16.msra.mxu0 %v818
          %1020 = vmatprep.subr.bf16.mxu0 %v821
          %1021 = vmatpush1.bf16.msra.mxu0 %v820
          %1022 = vmatprep.subr.bf16.mxu0 %v823
          %1023 = vmatpush1.bf16.msra.mxu0 %v822
          %1024 = vmatprep.subr.bf16.mxu0 %v825
          %1025 = vmatpush1.bf16.msra.mxu0 %v824
          %1026 = vmatprep.subr.bf16.mxu0 %v827
          %1027 = vmatpush1.bf16.msra.mxu0 %v826
          %1028 = vmatprep.subr.bf16.mxu0 %v829
          %1029 = vmatpush1.bf16.msra.mxu0 %v828
          %1030 = vmatprep.subr.bf16.mxu0 %v831
          %1031 = vmatpush1.bf16.msra.mxu0 %v830
          %1032 = vmatprep.subr.bf16.mxu0 %v833
          %1033 = vmatpush1.bf16.msra.mxu0 %v832
          %1034 = vmatprep.subr.bf16.mxu0 %v835
          %1035 = vmatpush1.bf16.msra.mxu0 %v834
          %1036 = vmatprep.subr.bf16.mxu0 %v837
          %1037 = vmatpush1.bf16.msra.mxu0 %v836
          %1038 = vmatprep.subr.bf16.mxu0 %v839
          %1039 = vmatpush1.bf16.msra.mxu0 %v838
          %1040 = vmatprep.subr.bf16.mxu0 %v841
          %1041 = vmatpush1.bf16.msra.mxu0 %v840
          %1042 = vmatprep.mubr.bf16.mxu0 %v392
          %1043 = vmatmul.mubr.bf16.gmra.mrb[0].mxu0 %v391
          %v1044 = vpop.f32.mrb[0].mxu0
          %v1045 = vadd.f32 %v511, %v1044
          %v1046 = vpop.f32.mrb[0].mxu0
          %v1047 = vadd.f32 %v515, %v1046
          %v1048 = vpop.f32.mrb[0].mxu0
          %v1049 = vpop.f32.mrb[0].mxu0
          %1050 = vdwg.mxu0
          %1051 = vmatprep.subr.bf16.mxu0 %v843
          %1052 = vmatpush1.bf16.msra.mxu0 %v842
          %1053 = vmatprep.subr.bf16.mxu0 %v845
          %1054 = vmatpush1.bf16.msra.mxu0 %v844
          %1055 = vmatprep.subr.bf16.mxu0 %v847
          %1056 = vmatpush1.bf16.msra.mxu0 %v846
          %1057 = vmatprep.subr.bf16.mxu0 %v849
          %1058 = vmatpush1.bf16.msra.mxu0 %v848
          %1059 = vmatprep.subr.bf16.mxu0 %v851
          %1060 = vmatpush1.bf16.msra.mxu0 %v850
          %1061 = vmatprep.subr.bf16.mxu0 %v853
          %1062 = vmatpush1.bf16.msra.mxu0 %v852
          %1063 = vmatprep.subr.bf16.mxu0 %v855
          %1064 = vmatpush1.bf16.msra.mxu0 %v854
          %1065 = vmatprep.subr.bf16.mxu0 %v857
          %1066 = vmatpush1.bf16.msra.mxu0 %v856
          %1067 = vmatprep.subr.bf16.mxu0 %v859
          %1068 = vmatpush1.bf16.msra.mxu0 %v858
          %1069 = vmatprep.subr.bf16.mxu0 %v861
          %1070 = vmatpush1.bf16.msra.mxu0 %v860
          %1071 = vmatprep.subr.bf16.mxu0 %v863
          %1072 = vmatpush1.bf16.msra.mxu0 %v862
          %1073 = vmatprep.subr.bf16.mxu0 %v865
          %1074 = vmatpush1.bf16.msra.mxu0 %v864
          %1075 = vmatprep.subr.bf16.mxu0 %v867
          %1076 = vmatpush1.bf16.msra.mxu0 %v866
          %1077 = vmatprep.subr.bf16.mxu0 %v869
          %1078 = vmatpush1.bf16.msra.mxu0 %v868
          %1079 = vmatprep.subr.bf16.mxu0 %v871
          %1080 = vmatpush1.bf16.msra.mxu0 %v870
          %1081 = vmatprep.subr.bf16.mxu0 %v873
          %1082 = vmatpush1.bf16.msra.mxu0 %v872
          %1083 = vmatprep.mubr.bf16.mxu0 %v394
          %1084 = vmatmul.mubr.bf16.gmra.mrb[0].mxu0 %v393
          %v1085 = vpop.f32.mrb[0].mxu0
          %v1086 = vadd.f32 %v1045, %v1085
          %v1087 = vpop.f32.mrb[0].mxu0
          %v1088 = vadd.f32 %v1047, %v1087
          %v1089 = vpop.f32.mrb[0].mxu0
          %v1090 = vpop.f32.mrb[0].mxu0
          %1091 = vdwg.mxu0
          %1092 = vmatprep.subr.bf16.mxu0 %v875
          %1093 = vmatpush1.bf16.msra.mxu0 %v874
          %1094 = vmatprep.subr.bf16.mxu0 %v877
          %1095 = vmatpush1.bf16.msra.mxu0 %v876
          %1096 = vmatprep.subr.bf16.mxu0 %v879
          %1097 = vmatpush1.bf16.msra.mxu0 %v878
          %1098 = vmatprep.subr.bf16.mxu0 %v881
          %1099 = vmatpush1.bf16.msra.mxu0 %v880
          %1100 = vmatprep.subr.bf16.mxu0 %v883
          %1101 = vmatpush1.bf16.msra.mxu0 %v882
          %1102 = vmatprep.subr.bf16.mxu0 %v885
          %1103 = vmatpush1.bf16.msra.mxu0 %v884
          %1104 = vmatprep.subr.bf16.mxu0 %v887
          %1105 = vmatpush1.bf16.msra.mxu0 %v886
          %1106 = vmatprep.subr.bf16.mxu0 %v889
          %1107 = vmatpush1.bf16.msra.mxu0 %v888
          %1108 = vmatprep.subr.bf16.mxu0 %v891
          %1109 = vmatpush1.bf16.msra.mxu0 %v890
          %1110 = vmatprep.subr.bf16.mxu0 %v893
          %1111 = vmatpush1.bf16.msra.mxu0 %v892
          %1112 = vmatprep.subr.bf16.mxu0 %v895
          %1113 = vmatpush1.bf16.msra.mxu0 %v894
          %1114 = vmatprep.subr.bf16.mxu0 %v897
          %1115 = vmatpush1.bf16.msra.mxu0 %v896
          %1116 = vmatprep.subr.bf16.mxu0 %v899
          %1117 = vmatpush1.bf16.msra.mxu0 %v898
          %1118 = vmatprep.subr.bf16.mxu0 %v901
          %1119 = vmatpush1.bf16.msra.mxu0 %v900
          %1120 = vmatprep.subr.bf16.mxu0 %v903
          %1121 = vmatpush1.bf16.msra.mxu0 %v902
          %1122 = vmatprep.subr.bf16.mxu0 %v905
          %1123 = vmatpush1.bf16.msra.mxu0 %v904
          %1124 = vmatprep.mubr.bf16.mxu0 %v396
          %1125 = vmatmul.mubr.bf16.gmra.mrb[0].mxu0 %v395
          %v1126 = vpop.f32.mrb[0].mxu0
          %v1127 = vadd.f32 %v1086, %v1126
          %v1128 = vpop.f32.mrb[0].mxu0
          %v1129 = vadd.f32 %v1088, %v1128
          %v1130 = vpop.f32.mrb[0].mxu0
          %v1131 = vpop.f32.mrb[0].mxu0
          %1132 = vdwg.mxu0
          %1133 = vmatprep.subr.bf16.mxu0 %v907
          %1134 = vmatpush1.bf16.msra.mxu0 %v906
          %1135 = vmatprep.subr.bf16.mxu0 0
          %1136 = vmatpush1.bf16.msra.mxu0 0
          %1137 = vmatprep.subr.bf16.mxu0 0
          %1138 = vmatpush1.bf16.msra.mxu0 0
          %1139 = vmatprep.subr.bf16.mxu0 0
          %1140 = vmatpush1.bf16.msra.mxu0 0
          %1141 = vmatprep.subr.bf16.mxu0 0
          %1142 = vmatpush1.bf16.msra.mxu0 0
          %1143 = vmatprep.subr.bf16.mxu0 0
          %1144 = vmatpush1.bf16.msra.mxu0 0
          %1145 = vmatprep.subr.bf16.mxu0 0
          %1146 = vmatpush1.bf16.msra.mxu0 0
          %1147 = vmatprep.subr.bf16.mxu0 0
          %1148 = vmatpush1.bf16.msra.mxu0 0
          %1149 = vmatprep.subr.bf16.mxu0 0
          %1150 = vmatpush1.bf16.msra.mxu0 0
          %1151 = vmatprep.subr.bf16.mxu0 0
          %1152 = vmatpush1.bf16.msra.mxu0 0
          %1153 = vmatprep.subr.bf16.mxu0 0
          %1154 = vmatpush1.bf16.msra.mxu0 0
          %1155 = vmatprep.subr.bf16.mxu0 0
          %1156 = vmatpush1.bf16.msra.mxu0 0
          %1157 = vmatprep.subr.bf16.mxu0 0
          %1158 = vmatpush1.bf16.msra.mxu0 0
          %1159 = vmatprep.subr.bf16.mxu0 0
          %1160 = vmatpush1.bf16.msra.mxu0 0
          %1161 = vmatprep.subr.bf16.mxu0 0
          %1162 = vmatpush1.bf16.msra.mxu0 0
          %1163 = vmatprep.subr.bf16.mxu0 0
          %1164 = vmatpush1.bf16.msra.mxu0 0
          %1165 = vmatprep.mubr.bf16.mxu0 0
          %1166 = vmatmul.mubr.bf16.gmra.mrb[0].mxu0 %v1008
          %v1167 = vpop.f32.mrb[0].mxu0
          %v1168 = vadd.f32 %v1127, %v1167
          %v1169 = vpop.f32.mrb[0].mxu0
          %v1170 = vadd.f32 %v1129, %v1169
          %v1171 = vpop.f32.mrb[0].mxu0
          %v1172 = vpop.f32.mrb[0].mxu0
          %1173 = vdwg.mxu0
          %v1174 = vmax.f32 %v1168, 0.0
          %v1175 = vmax.f32 %v1170, 0.0
          %v1176 = vrot.slane %v1174, 4
          %v1177 = vadd.f32 %v1174, %v1176
          %v1178 = vrot.slane %v1177, 2
          %v1179 = vadd.f32 %v1177, %v1178
          %v1180 = vrot.slane %v1179, 1
          %v1181 = vadd.f32 %v1179, %v1180
          %v1182 = vrot.slane %v1175, 4
          %v1183 = vadd.f32 %v1175, %v1182
          %v1184 = vrot.slane %v1183, 2
          %v1185 = vadd.f32 %v1183, %v1184
          %v1186 = vrot.slane %v1185, 1
          %v1187 = vadd.f32 %v1185, %v1186
          %v1188 = vmul.f32 %v1174, %v1174
          %v1189 = vmul.f32 %v1175, %v1175
          %v1190 = vrot.slane %v1188, 4
          %v1191 = vadd.f32 %v1188, %v1190
          %v1192 = vrot.slane %v1191, 2
          %v1193 = vadd.f32 %v1191, %v1192
          %v1194 = vrot.slane %v1193, 1
          %v1195 = vadd.f32 %v1193, %v1194
          %v1196 = vrot.slane %v1189, 4
          %v1197 = vadd.f32 %v1189, %v1196
          %v1198 = vrot.slane %v1197, 2
          %v1199 = vadd.f32 %v1197, %v1198
          %v1200 = vrot.slane %v1199, 1
          %v1201 = vadd.f32 %v1199, %v1200
          %v1202 = vmul.f32 %v1181, 0.125
          %v1203 = vmul.f32 %v1187, 0.125
          %v1204 = vmul.f32 %v1195, 0.125
          %v1205 = vmul.f32 %v1201, 0.125
          %v1206 = vmul.f32 %v1202, %v1202
          %v1207 = vmul.f32 %v1203, %v1203
          %v1208 = vsub.f32 %v1204, %v1206
          %v1209 = vsub.f32 %v1205, %v1207
          %v1210 = vmax.f32 %v1208, 0.0
          %v1211 = vmax.f32 %v1209, 0.0
          %v1212 = vadd.f32 %v1210, 1e-05
          %v1213 = vadd.f32 %v1211, 1e-05
          %v1214 = vrsqrt.pop %v1212
          %v1215 = vrsqrt.pop %v1213
          %v1218 = vcombine.low %v1214, %v1215
          %v1219 = vrot.slane %v1218, 7
          %v1221 = vmul.f32 %v496, %v1219
          %v1223 = vlaneseq
          %v1224 = vshrl.u32 %v1223, 7
          %v1225 = vsub.s32 1, %v1224
          %v1226 = vrot.slane %v1221, %v1225
          %v1227 = vlaneseq
          %v1228 = vshrl.u32 %v1227, 7
          %v1229 = vsub.s32 5, %v1228
          %v1230 = vrot.slane %v1221, %v1229
          %v1233 = vmul.f32 %v1202, %v1226
          %v1234 = vmul.f32 %v1203, %v1230
          %v1237 = vcombine.low %v1233, %v1234
          %v1238 = vrot.slane %v1237, 6
          %v1240 = vsub.f32 %v496, %v1238
          %v1241 = vlaneseq
          %v1242 = vshrl.u32 %v1241, 7
          %v1243 = vsub.s32 1, %v1242
          %v1244 = vrot.slane %v1226, %v1243
          %v1245 = vlaneseq
          %v1246 = vshrl.u32 %v1245, 7
          %v1247 = vsub.s32 1, %v1246
          %v1248 = vrot.slane %v1230, %v1247
          %v1249 = vmul.f32 %v1174, %v1244
          %v1250 = vmul.f32 %v1175, %v1248
          %v1252 = vlaneseq
          %v1253 = vshrl.u32 %v1252, 7
          %v1254 = vsub.s32 2, %v1253
          %v1255 = vrot.slane %v1240, %v1254
          %v1256 = vlaneseq
          %v1257 = vshrl.u32 %v1256, 7
          %v1258 = vsub.s32 6, %v1257
          %v1259 = vrot.slane %v1240, %v1258
          %v1262 = vlaneseq
          %v1263 = vshrl.u32 %v1262, 7
          %v1264 = vsub.s32 2, %v1263
          %v1265 = vrot.slane %v1255, %v1264
          %v1266 = vlaneseq
          %v1267 = vshrl.u32 %v1266, 7
          %v1268 = vsub.s32 2, %v1267
          %v1269 = vrot.slane %v1259, %v1268
          %v1270 = vadd.f32 %v1249, %v1265
          %v1271 = vadd.f32 %v1250, %v1269
          %1272 = vst [vmem:[#allocation2] sm:$0xff] %v1270
          %1273 = vst [vmem:[#allocation2 + $0x8] sm:$0xff] %v1271
        $region76: #{tpu_custom_call.1} parent=47 // pred_fallthru
          _
        %v1274 = vld [vmem:[#allocation2] sm:$0xff]
        %v1275 = vld [vmem:[#allocation2 + $0x8] sm:$0xff]
        %v1276 = vpack.c.bf16 %v1274, %v1274
        %v1277 = vpack.c.bf16 %v1275, %v1275
        %v1278 = vld [vmem:[%s331] sm:$0xff]
        %v1279 = vld [vmem:[%s331 + $0x8] sm:$0xff]
        %v1280 = vld [vmem:[%s331 + $0x10] sm:$0xff]
        %v1281 = vld [vmem:[%s331 + $0x18] sm:$0xff]
        %v1282 = vld [vmem:[%s331 + $0x20] sm:$0xff]
        %v1283 = vld [vmem:[%s331 + $0x28] sm:$0xff]
        %v1284 = vld [vmem:[%s331 + $0x30] sm:$0xff]
        %v1285 = vld [vmem:[%s331 + $0x38] sm:$0xff]
        %v1286 = vld [vmem:[%s331 + $0x40] sm:$0xff]
        %v1287 = vld [vmem:[%s331 + $0x48] sm:$0xff]
        %v1288 = vld [vmem:[%s331 + $0x50] sm:$0xff]
        %v1289 = vld [vmem:[%s331 + $0x58] sm:$0xff]
        %v1290 = vld [vmem:[%s331 + $0x60] sm:$0xff]
        %v1291 = vld [vmem:[%s331 + $0x68] sm:$0xff]
        %v1292 = vld [vmem:[%s331 + $0x70] sm:$0xff]
        %v1293 = vld [vmem:[%s331 + $0x78] sm:$0xff]
        %v1294 = vld [vmem:[%s331 + $0x80] sm:$0xff]
        %v1295 = vld [vmem:[%s331 + $0x88] sm:$0xff]
        %v1296 = vld [vmem:[%s331 + $0x90] sm:$0xff]
        %v1297 = vld [vmem:[%s331 + $0x98] sm:$0xff]
        %v1298 = vld [vmem:[%s331 + $0xa0] sm:$0xff]
        %v1299 = vld [vmem:[%s331 + $0xa8] sm:$0xff]
        %v1300 = vld [vmem:[%s331 + $0xb0] sm:$0xff]
        %v1301 = vld [vmem:[%s331 + $0xb8] sm:$0xff]
        %v1302 = vld [vmem:[%s331 + $0xc0] sm:$0xff]
        %v1303 = vld [vmem:[%s331 + $0xc8] sm:$0xff]
        %v1304 = vld [vmem:[%s331 + $0xd0] sm:$0xff]
        %v1305 = vld [vmem:[%s331 + $0xd8] sm:$0xff]
        %v1306 = vld [vmem:[%s331 + $0xe0] sm:$0xff]
        %v1307 = vld [vmem:[%s331 + $0xe8] sm:$0xff]
        %v1308 = vld [vmem:[%s331 + $0xf0] sm:$0xff]
        %v1309 = vld [vmem:[%s331 + $0xf8] sm:$0xff]
        %v1310 = vld [vmem:[%s377] sm:$0x77]
        %v1312 = vlaneseq
        %v1313 = vshrl.u32 %v1312, 7
        %v1314 = vsub.s32 0, %v1313
        %v1315 = vrot.slane %v1310, %v1314
        %v1316 = vlaneseq
        %v1317 = vshrl.u32 %v1316, 7
        %v1318 = vsub.s32 4, %v1317
        %v1319 = vrot.slane %v1310, %v1318
        %v1322 = vlaneseq
        %v1323 = vshrl.u32 %v1322, 7
        %v1324 = vsub.s32 0, %v1323
        %v1325 = vrot.slane %v1315, %v1324
        %v1326 = vlaneseq
        %v1327 = vshrl.u32 %v1326, 7
        %v1328 = vsub.s32 0, %v1327
        %v1329 = vrot.slane %v1319, %v1328
        %v1362 = vunpack.c.l.b16 %v1278
        %v1363 = vunpack.c.h.b16 %v1278
        %v1364 = vunpack.c.l.b16 %v1279
        %v1365 = vunpack.c.h.b16 %v1279
        %v1366 = vunpack.c.l.b16 %v1280
        %v1367 = vunpack.c.h.b16 %v1280
        %v1368 = vunpack.c.l.b16 %v1281
        %v1369 = vunpack.c.h.b16 %v1281
        %v1370 = vunpack.c.l.b16 %v1282
        %v1371 = vunpack.c.h.b16 %v1282
        %v1372 = vunpack.c.l.b16 %v1283
        %v1373 = vunpack.c.h.b16 %v1283
        %v1374 = vunpack.c.l.b16 %v1284
        %v1375 = vunpack.c.h.b16 %v1284
        %v1376 = vunpack.c.l.b16 %v1285
        %v1377 = vunpack.c.h.b16 %v1285
        %v1378 = vunpack.c.l.b16 %v1286
        %v1379 = vunpack.c.h.b16 %v1286
        %v1380 = vunpack.c.l.b16 %v1287
        %v1381 = vunpack.c.h.b16 %v1287
        %v1382 = vunpack.c.l.b16 %v1288
        %v1383 = vunpack.c.h.b16 %v1288
        %v1384 = vunpack.c.l.b16 %v1289
        %v1385 = vunpack.c.h.b16 %v1289
        %v1386 = vunpack.c.l.b16 %v1290
        %v1387 = vunpack.c.h.b16 %v1290
        %v1388 = vunpack.c.l.b16 %v1291
        %v1389 = vunpack.c.h.b16 %v1291
        %v1390 = vunpack.c.l.b16 %v1292
        %v1391 = vunpack.c.h.b16 %v1292
        %v1392 = vunpack.c.l.b16 %v1293
        %v1393 = vunpack.c.h.b16 %v1293
        %v1394 = vunpack.c.l.b16 %v1294
        %v1395 = vunpack.c.h.b16 %v1294
        %v1396 = vunpack.c.l.b16 %v1295
        %v1397 = vunpack.c.h.b16 %v1295
        %v1398 = vunpack.c.l.b16 %v1296
        %v1399 = vunpack.c.h.b16 %v1296
        %v1400 = vunpack.c.l.b16 %v1297
        %v1401 = vunpack.c.h.b16 %v1297
        %v1402 = vunpack.c.l.b16 %v1298
        %v1403 = vunpack.c.h.b16 %v1298
        %v1404 = vunpack.c.l.b16 %v1299
        %v1405 = vunpack.c.h.b16 %v1299
        %v1406 = vunpack.c.l.b16 %v1300
        %v1407 = vunpack.c.h.b16 %v1300
        %v1408 = vunpack.c.l.b16 %v1301
        %v1409 = vunpack.c.h.b16 %v1301
        %v1410 = vunpack.c.l.b16 %v1302
        %v1411 = vunpack.c.h.b16 %v1302
        %v1412 = vunpack.c.l.b16 %v1303
        %v1413 = vunpack.c.h.b16 %v1303
        %v1414 = vunpack.c.l.b16 %v1304
        %v1415 = vunpack.c.h.b16 %v1304
        %v1416 = vunpack.c.l.b16 %v1305
        %v1417 = vunpack.c.h.b16 %v1305
        %v1418 = vunpack.c.l.b16 %v1306
        %v1419 = vunpack.c.h.b16 %v1306
        %v1420 = vunpack.c.l.b16 %v1307
        %v1421 = vunpack.c.h.b16 %v1307
        %v1422 = vunpack.c.l.b16 %v1308
        %v1423 = vunpack.c.h.b16 %v1308
        %v1424 = vunpack.c.l.b16 %v1309
        %v1425 = vunpack.c.h.b16 %v1309
        %v1426 = vpack.c.b16 %v1364, %v1362
        %v1427 = vpack.c.b16 %v1365, %v1363
        %v1428 = vpack.c.b16 %v1368, %v1366
        %v1429 = vpack.c.b16 %v1369, %v1367
        %v1430 = vpack.c.b16 %v1372, %v1370
        %v1431 = vpack.c.b16 %v1373, %v1371
        %v1432 = vpack.c.b16 %v1376, %v1374
        %v1433 = vpack.c.b16 %v1377, %v1375
        %v1434 = vpack.c.b16 %v1380, %v1378
        %v1435 = vpack.c.b16 %v1381, %v1379
        %v1436 = vpack.c.b16 %v1384, %v1382
        %v1437 = vpack.c.b16 %v1385, %v1383
        %v1438 = vpack.c.b16 %v1388, %v1386
        %v1439 = vpack.c.b16 %v1389, %v1387
        %v1440 = vpack.c.b16 %v1392, %v1390
        %v1441 = vpack.c.b16 %v1393, %v1391
        %v1442 = vpack.c.b16 %v1396, %v1394
        %v1443 = vpack.c.b16 %v1397, %v1395
        %v1444 = vpack.c.b16 %v1400, %v1398
        %v1445 = vpack.c.b16 %v1401, %v1399
        %v1446 = vpack.c.b16 %v1404, %v1402
        %v1447 = vpack.c.b16 %v1405, %v1403
        %v1448 = vpack.c.b16 %v1408, %v1406
        %v1449 = vpack.c.b16 %v1409, %v1407
        %v1450 = vpack.c.b16 %v1412, %v1410
        %v1451 = vpack.c.b16 %v1413, %v1411
        %v1452 = vpack.c.b16 %v1416, %v1414
        %v1453 = vpack.c.b16 %v1417, %v1415
        %v1454 = vpack.c.b16 %v1420, %v1418
        %v1455 = vpack.c.b16 %v1421, %v1419
        %v1456 = vpack.c.b16 %v1424, %v1422
        %v1457 = vpack.c.b16 %v1425, %v1423
        %1490 = vmatprep.subr.bf16.mxu0 %v1427
        %1491 = vmatpush1.bf16.msra.mxu0 %v1426
        %1492 = vmatprep.subr.bf16.mxu0 %v1429
        %1493 = vmatpush1.bf16.msra.mxu0 %v1428
        %1494 = vmatprep.subr.bf16.mxu0 %v1431
        %1495 = vmatpush1.bf16.msra.mxu0 %v1430
        %1496 = vmatprep.subr.bf16.mxu0 %v1433
        %1497 = vmatpush1.bf16.msra.mxu0 %v1432
        %1498 = vmatprep.subr.bf16.mxu0 %v1435
        %1499 = vmatpush1.bf16.msra.mxu0 %v1434
        %1500 = vmatprep.subr.bf16.mxu0 %v1437
        %1501 = vmatpush1.bf16.msra.mxu0 %v1436
        %1502 = vmatprep.subr.bf16.mxu0 %v1439
        %1503 = vmatpush1.bf16.msra.mxu0 %v1438
        %1504 = vmatprep.subr.bf16.mxu0 %v1441
        %1505 = vmatpush1.bf16.msra.mxu0 %v1440
        %1506 = vmatprep.subr.bf16.mxu0 %v1443
        %1507 = vmatpush1.bf16.msra.mxu0 %v1442
        %1508 = vmatprep.subr.bf16.mxu0 %v1445
        %1509 = vmatpush1.bf16.msra.mxu0 %v1444
        %1510 = vmatprep.subr.bf16.mxu0 %v1447
        %1511 = vmatpush1.bf16.msra.mxu0 %v1446
        %1512 = vmatprep.subr.bf16.mxu0 %v1449
        %1513 = vmatpush1.bf16.msra.mxu0 %v1448
        %1514 = vmatprep.subr.bf16.mxu0 %v1451
        %1515 = vmatpush1.bf16.msra.mxu0 %v1450
        %1516 = vmatprep.subr.bf16.mxu0 %v1453
        %1517 = vmatpush1.bf16.msra.mxu0 %v1452
        %1518 = vmatprep.subr.bf16.mxu0 %v1455
        %1519 = vmatpush1.bf16.msra.mxu0 %v1454
        %1520 = vmatprep.subr.bf16.mxu0 %v1457
        %1521 = vmatpush1.bf16.msra.mxu0 %v1456
        %1522 = vmatprep.mubr.bf16.mxu0 %v1277
        %1523 = vmatmul.mubr.bf16.gmra.mrb[0].mxu0 %v1276
        %v1524 = vpop.f32.mrb[0].mxu0
        %v1525 = vadd.f32 %v1325, %v1524
        %v1526 = vpop.f32.mrb[0].mxu0
        %v1527 = vadd.f32 %v1329, %v1526
        %v1528 = vpop.f32.mrb[0].mxu0
        %v1529 = vpop.f32.mrb[0].mxu0
        %1530 = vdwg.mxu0
        %v1531 = vmax.f32 %v1525, 0.0
        %v1532 = vmax.f32 %v1527, 0.0
        %v1533 = vrot.slane %v1531, 4
        %v1534 = vadd.f32 %v1531, %v1533
        %v1535 = vrot.slane %v1534, 2
        %v1536 = vadd.f32 %v1534, %v1535
        %v1537 = vrot.slane %v1536, 1
        %v1538 = vadd.f32 %v1536, %v1537
        %v1539 = vrot.slane %v1532, 4
        %v1540 = vadd.f32 %v1532, %v1539
        %v1541 = vrot.slane %v1540, 2
        %v1542 = vadd.f32 %v1540, %v1541
        %v1543 = vrot.slane %v1542, 1
        %v1544 = vadd.f32 %v1542, %v1543
        %v1545 = vmul.f32 %v1531, %v1531
        %v1546 = vmul.f32 %v1532, %v1532
        %v1547 = vrot.slane %v1545, 4
        %v1548 = vadd.f32 %v1545, %v1547
        %v1549 = vrot.slane %v1548, 2
        %v1550 = vadd.f32 %v1548, %v1549
        %v1551 = vrot.slane %v1550, 1
        %v1552 = vadd.f32 %v1550, %v1551
        %v1553 = vrot.slane %v1546, 4
        %v1554 = vadd.f32 %v1546, %v1553
        %v1555 = vrot.slane %v1554, 2
        %v1556 = vadd.f32 %v1554, %v1555
        %v1557 = vrot.slane %v1556, 1
        %v1558 = vadd.f32 %v1556, %v1557
        %v1559 = vmul.f32 %v1538, 0.125
        %v1560 = vmul.f32 %v1544, 0.125
        %v1561 = vmul.f32 %v1552, 0.125
        %v1562 = vmul.f32 %v1558, 0.125
        %v1563 = vmul.f32 %v1559, %v1559
        %v1564 = vmul.f32 %v1560, %v1560
        %v1565 = vsub.f32 %v1561, %v1563
        %v1566 = vsub.f32 %v1562, %v1564
        %v1567 = vmax.f32 %v1565, 0.0
        %v1568 = vmax.f32 %v1566, 0.0
        %v1569 = vadd.f32 %v1567, 1e-05
        %v1570 = vadd.f32 %v1568, 1e-05
        %v1571 = vrsqrt.pop %v1569
        %v1572 = vrsqrt.pop %v1570
        %v1575 = vcombine.low %v1571, %v1572
        %v1576 = vrot.slane %v1575, 7
        %v1578 = vmul.f32 %v1310, %v1576
        %v1580 = vlaneseq
        %v1581 = vshrl.u32 %v1580, 7
        %v1582 = vsub.s32 1, %v1581
        %v1583 = vrot.slane %v1578, %v1582
        %v1584 = vlaneseq
        %v1585 = vshrl.u32 %v1584, 7
        %v1586 = vsub.s32 5, %v1585
        %v1587 = vrot.slane %v1578, %v1586
        %v1590 = vmul.f32 %v1559, %v1583
        %v1591 = vmul.f32 %v1560, %v1587
        %v1594 = vcombine.low %v1590, %v1591
        %v1595 = vrot.slane %v1594, 6
        %v1597 = vsub.f32 %v1310, %v1595
        %v1598 = vlaneseq
        %v1599 = vshrl.u32 %v1598, 7
        %v1600 = vsub.s32 1, %v1599
        %v1601 = vrot.slane %v1583, %v1600
        %v1602 = vlaneseq
        %v1603 = vshrl.u32 %v1602, 7
        %v1604 = vsub.s32 1, %v1603
        %v1605 = vrot.slane %v1587, %v1604
        %v1606 = vmul.f32 %v1531, %v1601
        %v1607 = vmul.f32 %v1532, %v1605
        %v1609 = vlaneseq
        %v1610 = vshrl.u32 %v1609, 7
        %v1611 = vsub.s32 2, %v1610
        %v1612 = vrot.slane %v1597, %v1611
        %v1613 = vlaneseq
        %v1614 = vshrl.u32 %v1613, 7
        %v1615 = vsub.s32 6, %v1614
        %v1616 = vrot.slane %v1597, %v1615
        %v1619 = vlaneseq
        %v1620 = vshrl.u32 %v1619, 7
        %v1621 = vsub.s32 2, %v1620
        %v1622 = vrot.slane %v1612, %v1621
        %v1623 = vlaneseq
        %v1624 = vshrl.u32 %v1623, 7
        %v1625 = vsub.s32 2, %v1624
        %v1626 = vrot.slane %v1616, %v1625
        %v1627 = vadd.f32 %v1606, %v1622
        %v1628 = vadd.f32 %v1607, %v1626
        %v1629 = vpack.c.bf16 %v1627, %v1627
        %v1630 = vpack.c.bf16 %v1628, %v1628
        %s1631 = scalar_lea.vmem %s331, 256 [#allocation9]
        %v1632 = vld [vmem:[%s1631] sm:$0xff]
        %v1633 = vld [vmem:[%s1631 + $0x8] sm:$0xff]
        %v1634 = vld [vmem:[%s1631 + $0x10] sm:$0xff]
        %v1635 = vld [vmem:[%s1631 + $0x18] sm:$0xff]
        %v1636 = vld [vmem:[%s1631 + $0x20] sm:$0xff]
        %v1637 = vld [vmem:[%s1631 + $0x28] sm:$0xff]
        %v1638 = vld [vmem:[%s1631 + $0x30] sm:$0xff]
        %v1639 = vld [vmem:[%s1631 + $0x38] sm:$0xff]
        %v1640 = vld [vmem:[%s1631 + $0x40] sm:$0xff]
        %v1641 = vld [vmem:[%s1631 + $0x48] sm:$0xff]
        %v1642 = vld [vmem:[%s1631 + $0x50] sm:$0xff]
        %v1643 = vld [vmem:[%s1631 + $0x58] sm:$0xff]
        %v1644 = vld [vmem:[%s1631 + $0x60] sm:$0xff]
        %v1645 = vld [vmem:[%s1631 + $0x68] sm:$0xff]
        %v1646 = vld [vmem:[%s1631 + $0x70] sm:$0xff]
        %v1647 = vld [vmem:[%s1631 + $0x78] sm:$0xff]
        %v1648 = vld [vmem:[%s1631 + $0x80] sm:$0xff]
        %v1649 = vld [vmem:[%s1631 + $0x88] sm:$0xff]
        %v1650 = vld [vmem:[%s1631 + $0x90] sm:$0xff]
        %v1651 = vld [vmem:[%s1631 + $0x98] sm:$0xff]
        %v1652 = vld [vmem:[%s1631 + $0xa0] sm:$0xff]
        %v1653 = vld [vmem:[%s1631 + $0xa8] sm:$0xff]
        %v1654 = vld [vmem:[%s1631 + $0xb0] sm:$0xff]
        %v1655 = vld [vmem:[%s1631 + $0xb8] sm:$0xff]
        %v1656 = vld [vmem:[%s1631 + $0xc0] sm:$0xff]
        %v1657 = vld [vmem:[%s1631 + $0xc8] sm:$0xff]
        %v1658 = vld [vmem:[%s1631 + $0xd0] sm:$0xff]
        %v1659 = vld [vmem:[%s1631 + $0xd8] sm:$0xff]
        %v1660 = vld [vmem:[%s1631 + $0xe0] sm:$0xff]
        %v1661 = vld [vmem:[%s1631 + $0xe8] sm:$0xff]
        %v1662 = vld [vmem:[%s1631 + $0xf0] sm:$0xff]
        %v1663 = vld [vmem:[%s1631 + $0xf8] sm:$0xff]
        %s1664 = scalar_lea.vmem %s377, 8
        %v1665 = vld [vmem:[%s1664] sm:$0x77]
        %v1667 = vlaneseq
        %v1668 = vshrl.u32 %v1667, 7
        %v1669 = vsub.s32 0, %v1668
        %v1670 = vrot.slane %v1665, %v1669
        %v1671 = vlaneseq
        %v1672 = vshrl.u32 %v1671, 7
        %v1673 = vsub.s32 4, %v1672
        %v1674 = vrot.slane %v1665, %v1673
        %v1677 = vlaneseq
        %v1678 = vshrl.u32 %v1677, 7
        %v1679 = vsub.s32 0, %v1678
        %v1680 = vrot.slane %v1670, %v1679
        %v1681 = vlaneseq
        %v1682 = vshrl.u32 %v1681, 7
        %v1683 = vsub.s32 0, %v1682
        %v1684 = vrot.slane %v1674, %v1683
        %v1717 = vunpack.c.l.b16 %v1632
        %v1718 = vunpack.c.h.b16 %v1632
        %v1719 = vunpack.c.l.b16 %v1633
        %v1720 = vunpack.c.h.b16 %v1633
        %v1721 = vunpack.c.l.b16 %v1634
        %v1722 = vunpack.c.h.b16 %v1634
        %v1723 = vunpack.c.l.b16 %v1635
        %v1724 = vunpack.c.h.b16 %v1635
        %v1725 = vunpack.c.l.b16 %v1636
        %v1726 = vunpack.c.h.b16 %v1636
        %v1727 = vunpack.c.l.b16 %v1637
        %v1728 = vunpack.c.h.b16 %v1637
        %v1729 = vunpack.c.l.b16 %v1638
        %v1730 = vunpack.c.h.b16 %v1638
        %v1731 = vunpack.c.l.b16 %v1639
        %v1732 = vunpack.c.h.b16 %v1639
        %v1733 = vunpack.c.l.b16 %v1640
        %v1734 = vunpack.c.h.b16 %v1640
        %v1735 = vunpack.c.l.b16 %v1641
        %v1736 = vunpack.c.h.b16 %v1641
        %v1737 = vunpack.c.l.b16 %v1642
        %v1738 = vunpack.c.h.b16 %v1642
        %v1739 = vunpack.c.l.b16 %v1643
        %v1740 = vunpack.c.h.b16 %v1643
        %v1741 = vunpack.c.l.b16 %v1644
        %v1742 = vunpack.c.h.b16 %v1644
        %v1743 = vunpack.c.l.b16 %v1645
        %v1744 = vunpack.c.h.b16 %v1645
        %v1745 = vunpack.c.l.b16 %v1646
        %v1746 = vunpack.c.h.b16 %v1646
        %v1747 = vunpack.c.l.b16 %v1647
        %v1748 = vunpack.c.h.b16 %v1647
        %v1749 = vunpack.c.l.b16 %v1648
        %v1750 = vunpack.c.h.b16 %v1648
        %v1751 = vunpack.c.l.b16 %v1649
        %v1752 = vunpack.c.h.b16 %v1649
        %v1753 = vunpack.c.l.b16 %v1650
        %v1754 = vunpack.c.h.b16 %v1650
        %v1755 = vunpack.c.l.b16 %v1651
        %v1756 = vunpack.c.h.b16 %v1651
        %v1757 = vunpack.c.l.b16 %v1652
        %v1758 = vunpack.c.h.b16 %v1652
        %v1759 = vunpack.c.l.b16 %v1653
        %v1760 = vunpack.c.h.b16 %v1653
        %v1761 = vunpack.c.l.b16 %v1654
        %v1762 = vunpack.c.h.b16 %v1654
        %v1763 = vunpack.c.l.b16 %v1655
        %v1764 = vunpack.c.h.b16 %v1655
        %v1765 = vunpack.c.l.b16 %v1656
        %v1766 = vunpack.c.h.b16 %v1656
        %v1767 = vunpack.c.l.b16 %v1657
        %v1768 = vunpack.c.h.b16 %v1657
        %v1769 = vunpack.c.l.b16 %v1658
        %v1770 = vunpack.c.h.b16 %v1658
        %v1771 = vunpack.c.l.b16 %v1659
        %v1772 = vunpack.c.h.b16 %v1659
        %v1773 = vunpack.c.l.b16 %v1660
        %v1774 = vunpack.c.h.b16 %v1660
        %v1775 = vunpack.c.l.b16 %v1661
        %v1776 = vunpack.c.h.b16 %v1661
        %v1777 = vunpack.c.l.b16 %v1662
        %v1778 = vunpack.c.h.b16 %v1662
        %v1779 = vunpack.c.l.b16 %v1663
        %v1780 = vunpack.c.h.b16 %v1663
        %v1781 = vpack.c.b16 %v1719, %v1717
        %v1782 = vpack.c.b16 %v1720, %v1718
        %v1783 = vpack.c.b16 %v1723, %v1721
        %v1784 = vpack.c.b16 %v1724, %v1722
        %v1785 = vpack.c.b16 %v1727, %v1725
        %v1786 = vpack.c.b16 %v1728, %v1726
        %v1787 = vpack.c.b16 %v1731, %v1729
        %v1788 = vpack.c.b16 %v1732, %v1730
        %v1789 = vpack.c.b16 %v1735, %v1733
        %v1790 = vpack.c.b16 %v1736, %v1734
        %v1791 = vpack.c.b16 %v1739, %v1737
        %v1792 = vpack.c.b16 %v1740, %v1738
        %v1793 = vpack.c.b16 %v1743, %v1741
        %v1794 = vpack.c.b16 %v1744, %v1742
        %v1795 = vpack.c.b16 %v1747, %v1745
        %v1796 = vpack.c.b16 %v1748, %v1746
        %v1797 = vpack.c.b16 %v1751, %v1749
        %v1798 = vpack.c.b16 %v1752, %v1750
        %v1799 = vpack.c.b16 %v1755, %v1753
        %v1800 = vpack.c.b16 %v1756, %v1754
        %v1801 = vpack.c.b16 %v1759, %v1757
        %v1802 = vpack.c.b16 %v1760, %v1758
        %v1803 = vpack.c.b16 %v1763, %v1761
        %v1804 = vpack.c.b16 %v1764, %v1762
        %v1805 = vpack.c.b16 %v1767, %v1765
        %v1806 = vpack.c.b16 %v1768, %v1766
        %v1807 = vpack.c.b16 %v1771, %v1769
        %v1808 = vpack.c.b16 %v1772, %v1770
        %v1809 = vpack.c.b16 %v1775, %v1773
        %v1810 = vpack.c.b16 %v1776, %v1774
        %v1811 = vpack.c.b16 %v1779, %v1777
        %v1812 = vpack.c.b16 %v1780, %v1778
        %1845 = vmatprep.subr.bf16.mxu0 %v1782
        %1846 = vmatpush1.bf16.msra.mxu0 %v1781
        %1847 = vmatprep.subr.bf16.mxu0 %v1784
        %1848 = vmatpush1.bf16.msra.mxu0 %v1783
        %1849 = vmatprep.subr.bf16.mxu0 %v1786
        %1850 = vmatpush1.bf16.msra.mxu0 %v1785
        %1851 = vmatprep.subr.bf16.mxu0 %v1788
        %1852 = vmatpush1.bf16.msra.mxu0 %v1787
        %1853 = vmatprep.subr.bf16.mxu0 %v1790
        %1854 = vmatpush1.bf16.msra.mxu0 %v1789
        %1855 = vmatprep.subr.bf16.mxu0 %v1792
        %1856 = vmatpush1.bf16.msra.mxu0 %v1791
        %1857 = vmatprep.subr.bf16.mxu0 %v1794
        %1858 = vmatpush1.bf16.msra.mxu0 %v1793
        %1859 = vmatprep.subr.bf16.mxu0 %v1796
        %1860 = vmatpush1.bf16.msra.mxu0 %v1795
        %1861 = vmatprep.subr.bf16.mxu0 %v1798
        %1862 = vmatpush1.bf16.msra.mxu0 %v1797
        %1863 = vmatprep.subr.bf16.mxu0 %v1800
        %1864 = vmatpush1.bf16.msra.mxu0 %v1799
        %1865 = vmatprep.subr.bf16.mxu0 %v1802
        %1866 = vmatpush1.bf16.msra.mxu0 %v1801
        %1867 = vmatprep.subr.bf16.mxu0 %v1804
        %1868 = vmatpush1.bf16.msra.mxu0 %v1803
        %1869 = vmatprep.subr.bf16.mxu0 %v1806
        %1870 = vmatpush1.bf16.msra.mxu0 %v1805
        %1871 = vmatprep.subr.bf16.mxu0 %v1808
        %1872 = vmatpush1.bf16.msra.mxu0 %v1807
        %1873 = vmatprep.subr.bf16.mxu0 %v1810
        %1874 = vmatpush1.bf16.msra.mxu0 %v1809
        %1875 = vmatprep.subr.bf16.mxu0 %v1812
        %1876 = vmatpush1.bf16.msra.mxu0 %v1811
        %1877 = vmatprep.mubr.bf16.mxu0 %v1630
        %1878 = vmatmul.mubr.bf16.gmra.mrb[0].mxu0 %v1629
        %v1879 = vpop.f32.mrb[0].mxu0
        %v1880 = vadd.f32 %v1680, %v1879
        %v1881 = vpop.f32.mrb[0].mxu0
        %v1882 = vadd.f32 %v1684, %v1881
        %v1883 = vpop.f32.mrb[0].mxu0
        %v1884 = vpop.f32.mrb[0].mxu0
        %1885 = vdwg.mxu0
        %v1886 = vmax.f32 %v1880, 0.0
        %v1887 = vmax.f32 %v1882, 0.0
        %v1888 = vrot.slane %v1886, 4
        %v1889 = vadd.f32 %v1886, %v1888
        %v1890 = vrot.slane %v1889, 2
        %v1891 = vadd.f32 %v1889, %v1890
        %v1892 = vrot.slane %v1891, 1
        %v1893 = vadd.f32 %v1891, %v1892
        %v1894 = vrot.slane %v1887, 4
        %v1895 = vadd.f32 %v1887, %v1894
        %v1896 = vrot.slane %v1895, 2
        %v1897 = vadd.f32 %v1895, %v1896
        %v1898 = vrot.slane %v1897, 1
        %v1899 = vadd.f32 %v1897, %v1898
        %v1900 = vmul.f32 %v1886, %v1886
        %v1901 = vmul.f32 %v1887, %v1887
        %v1902 = vrot.slane %v1900, 4
        %v1903 = vadd.f32 %v1900, %v1902
        %v1904 = vrot.slane %v1903, 2
        %v1905 = vadd.f32 %v1903, %v1904
        %v1906 = vrot.slane %v1905, 1
        %v1907 = vadd.f32 %v1905, %v1906
        %v1908 = vrot.slane %v1901, 4
        %v1909 = vadd.f32 %v1901, %v1908
        %v1910 = vrot.slane %v1909, 2
        %v1911 = vadd.f32 %v1909, %v1910
        %v1912 = vrot.slane %v1911, 1
        %v1913 = vadd.f32 %v1911, %v1912
        %v1914 = vmul.f32 %v1893, 0.125
        %v1915 = vmul.f32 %v1899, 0.125
        %v1916 = vmul.f32 %v1907, 0.125
        %v1917 = vmul.f32 %v1913, 0.125
        %v1918 = vmul.f32 %v1914, %v1914
        %v1919 = vmul.f32 %v1915, %v1915
        %v1920 = vsub.f32 %v1916, %v1918
        %v1921 = vsub.f32 %v1917, %v1919
        %v1922 = vmax.f32 %v1920, 0.0
        %v1923 = vmax.f32 %v1921, 0.0
        %v1924 = vadd.f32 %v1922, 1e-05
        %v1925 = vadd.f32 %v1923, 1e-05
        %v1926 = vrsqrt.pop %v1924
        %v1927 = vrsqrt.pop %v1925
        %v1930 = vcombine.low %v1926, %v1927
        %v1931 = vrot.slane %v1930, 7
        %v1933 = vmul.f32 %v1665, %v1931
        %v1935 = vlaneseq
        %v1936 = vshrl.u32 %v1935, 7
        %v1937 = vsub.s32 1, %v1936
        %v1938 = vrot.slane %v1933, %v1937
        %v1939 = vlaneseq
        %v1940 = vshrl.u32 %v1939, 7
        %v1941 = vsub.s32 5, %v1940
        %v1942 = vrot.slane %v1933, %v1941
        %v1945 = vmul.f32 %v1914, %v1938
        %v1946 = vmul.f32 %v1915, %v1942
        %v1949 = vcombine.low %v1945, %v1946
        %v1950 = vrot.slane %v1949, 6
        %v1952 = vsub.f32 %v1665, %v1950
        %v1953 = vlaneseq
        %v1954 = vshrl.u32 %v1953, 7
        %v1955 = vsub.s32 1, %v1954
        %v1956 = vrot.slane %v1938, %v1955
        %v1957 = vlaneseq
        %v1958 = vshrl.u32 %v1957, 7
        %v1959 = vsub.s32 1, %v1958
        %v1960 = vrot.slane %v1942, %v1959
        %v1961 = vmul.f32 %v1886, %v1956
        %v1962 = vmul.f32 %v1887, %v1960
        %v1964 = vlaneseq
        %v1965 = vshrl.u32 %v1964, 7
        %v1966 = vsub.s32 2, %v1965
        %v1967 = vrot.slane %v1952, %v1966
        %v1968 = vlaneseq
        %v1969 = vshrl.u32 %v1968, 7
        %v1970 = vsub.s32 6, %v1969
        %v1971 = vrot.slane %v1952, %v1970
        %v1974 = vlaneseq
        %v1975 = vshrl.u32 %v1974, 7
        %v1976 = vsub.s32 2, %v1975
        %v1977 = vrot.slane %v1967, %v1976
        %v1978 = vlaneseq
        %v1979 = vshrl.u32 %v1978, 7
        %v1980 = vsub.s32 2, %v1979
        %v1981 = vrot.slane %v1971, %v1980
        %v1982 = vadd.f32 %v1961, %v1977
        %v1983 = vadd.f32 %v1962, %v1981
        %v1984 = vpack.c.bf16 %v1982, %v1982
        %v1985 = vpack.c.bf16 %v1983, %v1983
        %s1986 = scalar_lea.vmem %s331, 512 [#allocation9]
        %v1987 = vld [vmem:[%s1986] sm:$0xff]
        %v1988 = vld [vmem:[%s1986 + $0x8] sm:$0xff]
        %v1989 = vld [vmem:[%s1986 + $0x10] sm:$0xff]
        %v1990 = vld [vmem:[%s1986 + $0x18] sm:$0xff]
        %v1991 = vld [vmem:[%s1986 + $0x20] sm:$0xff]
        %v1992 = vld [vmem:[%s1986 + $0x28] sm:$0xff]
        %v1993 = vld [vmem:[%s1986 + $0x30] sm:$0xff]
        %v1994 = vld [vmem:[%s1986 + $0x38] sm:$0xff]
        %v1995 = vld [vmem:[%s1986 + $0x40] sm:$0xff]
        %v1996 = vld [vmem:[%s1986 + $0x48] sm:$0xff]
        %v1997 = vld [vmem:[%s1986 + $0x50] sm:$0xff]
        %v1998 = vld [vmem:[%s1986 + $0x58] sm:$0xff]
        %v1999 = vld [vmem:[%s1986 + $0x60] sm:$0xff]
        %v2000 = vld [vmem:[%s1986 + $0x68] sm:$0xff]
        %v2001 = vld [vmem:[%s1986 + $0x70] sm:$0xff]
        %v2002 = vld [vmem:[%s1986 + $0x78] sm:$0xff]
        %v2003 = vld [vmem:[%s1986 + $0x80] sm:$0xff]
        %v2004 = vld [vmem:[%s1986 + $0x88] sm:$0xff]
        %v2005 = vld [vmem:[%s1986 + $0x90] sm:$0xff]
        %v2006 = vld [vmem:[%s1986 + $0x98] sm:$0xff]
        %v2007 = vld [vmem:[%s1986 + $0xa0] sm:$0xff]
        %v2008 = vld [vmem:[%s1986 + $0xa8] sm:$0xff]
        %v2009 = vld [vmem:[%s1986 + $0xb0] sm:$0xff]
        %v2010 = vld [vmem:[%s1986 + $0xb8] sm:$0xff]
        %v2011 = vld [vmem:[%s1986 + $0xc0] sm:$0xff]
        %v2012 = vld [vmem:[%s1986 + $0xc8] sm:$0xff]
        %v2013 = vld [vmem:[%s1986 + $0xd0] sm:$0xff]
        %v2014 = vld [vmem:[%s1986 + $0xd8] sm:$0xff]
        %v2015 = vld [vmem:[%s1986 + $0xe0] sm:$0xff]
        %v2016 = vld [vmem:[%s1986 + $0xe8] sm:$0xff]
        %v2017 = vld [vmem:[%s1986 + $0xf0] sm:$0xff]
        %v2018 = vld [vmem:[%s1986 + $0xf8] sm:$0xff]
        %s2019 = scalar_lea.vmem %s377, 16
        %v2020 = vld [vmem:[%s2019] sm:$0x77]
        %v2022 = vlaneseq
        %v2023 = vshrl.u32 %v2022, 7
        %v2024 = vsub.s32 0, %v2023
        %v2025 = vrot.slane %v2020, %v2024
        %v2026 = vlaneseq
        %v2027 = vshrl.u32 %v2026, 7
        %v2028 = vsub.s32 4, %v2027
        %v2029 = vrot.slane %v2020, %v2028
        %v2032 = vlaneseq
        %v2033 = vshrl.u32 %v2032, 7
        %v2034 = vsub.s32 0, %v2033
        %v2035 = vrot.slane %v2025, %v2034
        %v2036 = vlaneseq
        %v2037 = vshrl.u32 %v2036, 7
        %v2038 = vsub.s32 0, %v2037
        %v2039 = vrot.slane %v2029, %v2038
        %v2072 = vunpack.c.l.b16 %v1987
        %v2073 = vunpack.c.h.b16 %v1987
        %v2074 = vunpack.c.l.b16 %v1988
        %v2075 = vunpack.c.h.b16 %v1988
        %v2076 = vunpack.c.l.b16 %v1989
        %v2077 = vunpack.c.h.b16 %v1989
        %v2078 = vunpack.c.l.b16 %v1990
        %v2079 = vunpack.c.h.b16 %v1990
        %v2080 = vunpack.c.l.b16 %v1991
        %v2081 = vunpack.c.h.b16 %v1991
        %v2082 = vunpack.c.l.b16 %v1992
        %v2083 = vunpack.c.h.b16 %v1992
        %v2084 = vunpack.c.l.b16 %v1993
        %v2085 = vunpack.c.h.b16 %v1993
        %v2086 = vunpack.c.l.b16 %v1994
        %v2087 = vunpack.c.h.b16 %v1994
        %v2088 = vunpack.c.l.b16 %v1995
        %v2089 = vunpack.c.h.b16 %v1995
        %v2090 = vunpack.c.l.b16 %v1996
        %v2091 = vunpack.c.h.b16 %v1996
        %v2092 = vunpack.c.l.b16 %v1997
        %v2093 = vunpack.c.h.b16 %v1997
        %v2094 = vunpack.c.l.b16 %v1998
        %v2095 = vunpack.c.h.b16 %v1998
        %v2096 = vunpack.c.l.b16 %v1999
        %v2097 = vunpack.c.h.b16 %v1999
        %v2098 = vunpack.c.l.b16 %v2000
        %v2099 = vunpack.c.h.b16 %v2000
        %v2100 = vunpack.c.l.b16 %v2001
        %v2101 = vunpack.c.h.b16 %v2001
        %v2102 = vunpack.c.l.b16 %v2002
        %v2103 = vunpack.c.h.b16 %v2002
        %v2104 = vunpack.c.l.b16 %v2003
        %v2105 = vunpack.c.h.b16 %v2003
        %v2106 = vunpack.c.l.b16 %v2004
        %v2107 = vunpack.c.h.b16 %v2004
        %v2108 = vunpack.c.l.b16 %v2005
        %v2109 = vunpack.c.h.b16 %v2005
        %v2110 = vunpack.c.l.b16 %v2006
        %v2111 = vunpack.c.h.b16 %v2006
        %v2112 = vunpack.c.l.b16 %v2007
        %v2113 = vunpack.c.h.b16 %v2007
        %v2114 = vunpack.c.l.b16 %v2008
        %v2115 = vunpack.c.h.b16 %v2008
        %v2116 = vunpack.c.l.b16 %v2009
        %v2117 = vunpack.c.h.b16 %v2009
        %v2118 = vunpack.c.l.b16 %v2010
        %v2119 = vunpack.c.h.b16 %v2010
        %v2120 = vunpack.c.l.b16 %v2011
        %v2121 = vunpack.c.h.b16 %v2011
        %v2122 = vunpack.c.l.b16 %v2012
        %v2123 = vunpack.c.h.b16 %v2012
        %v2124 = vunpack.c.l.b16 %v2013
        %v2125 = vunpack.c.h.b16 %v2013
        %v2126 = vunpack.c.l.b16 %v2014
        %v2127 = vunpack.c.h.b16 %v2014
        %v2128 = vunpack.c.l.b16 %v2015
        %v2129 = vunpack.c.h.b16 %v2015
        %v2130 = vunpack.c.l.b16 %v2016
        %v2131 = vunpack.c.h.b16 %v2016
        %v2132 = vunpack.c.l.b16 %v2017
        %v2133 = vunpack.c.h.b16 %v2017
        %v2134 = vunpack.c.l.b16 %v2018
        %v2135 = vunpack.c.h.b16 %v2018
        %v2136 = vpack.c.b16 %v2074, %v2072
        %v2137 = vpack.c.b16 %v2075, %v2073
        %v2138 = vpack.c.b16 %v2078, %v2076
        %v2139 = vpack.c.b16 %v2079, %v2077
        %v2140 = vpack.c.b16 %v2082, %v2080
        %v2141 = vpack.c.b16 %v2083, %v2081
        %v2142 = vpack.c.b16 %v2086, %v2084
        %v2143 = vpack.c.b16 %v2087, %v2085
        %v2144 = vpack.c.b16 %v2090, %v2088
        %v2145 = vpack.c.b16 %v2091, %v2089
        %v2146 = vpack.c.b16 %v2094, %v2092
        %v2147 = vpack.c.b16 %v2095, %v2093
        %v2148 = vpack.c.b16 %v2098, %v2096
        %v2149 = vpack.c.b16 %v2099, %v2097
        %v2150 = vpack.c.b16 %v2102, %v2100
        %v2151 = vpack.c.b16 %v2103, %v2101
        %v2152 = vpack.c.b16 %v2106, %v2104
        %v2153 = vpack.c.b16 %v2107, %v2105
        %v2154 = vpack.c.b16 %v2110, %v2108
        %v2155 = vpack.c.b16 %v2111, %v2109
        %v2156 = vpack.c.b16 %v2114, %v2112
        %v2157 = vpack.c.b16 %v2115, %v2113
        %v2158 = vpack.c.b16 %v2118, %v2116
        %v2159 = vpack.c.b16 %v2119, %v2117
        %v2160 = vpack.c.b16 %v2122, %v2120
        %v2161 = vpack.c.b16 %v2123, %v2121
        %v2162 = vpack.c.b16 %v2126, %v2124
        %v2163 = vpack.c.b16 %v2127, %v2125
        %v2164 = vpack.c.b16 %v2130, %v2128
        %v2165 = vpack.c.b16 %v2131, %v2129
        %v2166 = vpack.c.b16 %v2134, %v2132
        %v2167 = vpack.c.b16 %v2135, %v2133
        %2200 = vmatprep.subr.bf16.mxu0 %v2137
        %2201 = vmatpush1.bf16.msra.mxu0 %v2136
        %2202 = vmatprep.subr.bf16.mxu0 %v2139
        %2203 = vmatpush1.bf16.msra.mxu0 %v2138
        %2204 = vmatprep.subr.bf16.mxu0 %v2141
        %2205 = vmatpush1.bf16.msra.mxu0 %v2140
        %2206 = vmatprep.subr.bf16.mxu0 %v2143
        %2207 = vmatpush1.bf16.msra.mxu0 %v2142
        %2208 = vmatprep.subr.bf16.mxu0 %v2145
        %2209 = vmatpush1.bf16.msra.mxu0 %v2144
        %2210 = vmatprep.subr.bf16.mxu0 %v2147
        %2211 = vmatpush1.bf16.msra.mxu0 %v2146
        %2212 = vmatprep.subr.bf16.mxu0 %v2149
        %2213 = vmatpush1.bf16.msra.mxu0 %v2148
        %2214 = vmatprep.subr.bf16.mxu0 %v2151
        %2215 = vmatpush1.bf16.msra.mxu0 %v2150
        %2216 = vmatprep.subr.bf16.mxu0 %v2153
        %2217 = vmatpush1.bf16.msra.mxu0 %v2152
        %2218 = vmatprep.subr.bf16.mxu0 %v2155
        %2219 = vmatpush1.bf16.msra.mxu0 %v2154
        %2220 = vmatprep.subr.bf16.mxu0 %v2157
        %2221 = vmatpush1.bf16.msra.mxu0 %v2156
        %2222 = vmatprep.subr.bf16.mxu0 %v2159
        %2223 = vmatpush1.bf16.msra.mxu0 %v2158
        %2224 = vmatprep.subr.bf16.mxu0 %v2161
        %2225 = vmatpush1.bf16.msra.mxu0 %v2160
        %2226 = vmatprep.subr.bf16.mxu0 %v2163
        %2227 = vmatpush1.bf16.msra.mxu0 %v2162
        %2228 = vmatprep.subr.bf16.mxu0 %v2165
        %2229 = vmatpush1.bf16.msra.mxu0 %v2164
        %2230 = vmatprep.subr.bf16.mxu0 %v2167
        %2231 = vmatpush1.bf16.msra.mxu0 %v2166
        %2232 = vmatprep.mubr.bf16.mxu0 %v1985
        %2233 = vmatmul.mubr.bf16.gmra.mrb[0].mxu0 %v1984
        %v2234 = vpop.f32.mrb[0].mxu0
        %v2235 = vadd.f32 %v2035, %v2234
        %v2236 = vpop.f32.mrb[0].mxu0
        %v2237 = vadd.f32 %v2039, %v2236
        %v2238 = vpop.f32.mrb[0].mxu0
        %v2239 = vpop.f32.mrb[0].mxu0
        %2240 = vdwg.mxu0
        %v2241 = vmax.f32 %v2235, 0.0
        %v2242 = vmax.f32 %v2237, 0.0
        %v2243 = vrot.slane %v2241, 4
        %v2244 = vadd.f32 %v2241, %v2243
        %v2245 = vrot.slane %v2244, 2
        %v2246 = vadd.f32 %v2244, %v2245
        %v2247 = vrot.slane %v2246, 1
        %v2248 = vadd.f32 %v2246, %v2247
        %v2249 = vrot.slane %v2242, 4
        %v2250 = vadd.f32 %v2242, %v2249
        %v2251 = vrot.slane %v2250, 2
        %v2252 = vadd.f32 %v2250, %v2251
        %v2253 = vrot.slane %v2252, 1
        %v2254 = vadd.f32 %v2252, %v2253
        %v2255 = vmul.f32 %v2241, %v2241
        %v2256 = vmul.f32 %v2242, %v2242
        %v2257 = vrot.slane %v2255, 4
        %v2258 = vadd.f32 %v2255, %v2257
        %v2259 = vrot.slane %v2258, 2
        %v2260 = vadd.f32 %v2258, %v2259
        %v2261 = vrot.slane %v2260, 1
        %v2262 = vadd.f32 %v2260, %v2261
        %v2263 = vrot.slane %v2256, 4
        %v2264 = vadd.f32 %v2256, %v2263
        %v2265 = vrot.slane %v2264, 2
        %v2266 = vadd.f32 %v2264, %v2265
        %v2267 = vrot.slane %v2266, 1
        %v2268 = vadd.f32 %v2266, %v2267
        %v2269 = vmul.f32 %v2248, 0.125
        %v2270 = vmul.f32 %v2254, 0.125
        %v2271 = vmul.f32 %v2262, 0.125
        %v2272 = vmul.f32 %v2268, 0.125
        %v2273 = vmul.f32 %v2269, %v2269
        %v2274 = vmul.f32 %v2270, %v2270
        %v2275 = vsub.f32 %v2271, %v2273
        %v2276 = vsub.f32 %v2272, %v2274
        %v2277 = vmax.f32 %v2275, 0.0
        %v2278 = vmax.f32 %v2276, 0.0
        %v2279 = vadd.f32 %v2277, 1e-05
        %v2280 = vadd.f32 %v2278, 1e-05
        %v2281 = vrsqrt.pop %v2279
        %v2282 = vrsqrt.pop %v2280
        %v2285 = vcombine.low %v2281, %v2282
        %v2286 = vrot.slane %v2285, 7
        %v2288 = vmul.f32 %v2020, %v2286
        %v2290 = vlaneseq
        %v2291 = vshrl.u32 %v2290, 7
        %v2292 = vsub.s32 1, %v2291
        %v2293 = vrot.slane %v2288, %v2292
        %v2294 = vlaneseq
        %v2295 = vshrl.u32 %v2294, 7
        %v2296 = vsub.s32 5, %v2295
        %v2297 = vrot.slane %v2288, %v2296
        %v2300 = vmul.f32 %v2269, %v2293
        %v2301 = vmul.f32 %v2270, %v2297
        %v2304 = vcombine.low %v2300, %v2301
        %v2305 = vrot.slane %v2304, 6
        %v2307 = vsub.f32 %v2020, %v2305
        %v2308 = vlaneseq
        %v2309 = vshrl.u32 %v2308, 7
        %v2310 = vsub.s32 1, %v2309
        %v2311 = vrot.slane %v2293, %v2310
        %v2312 = vlaneseq
        %v2313 = vshrl.u32 %v2312, 7
        %v2314 = vsub.s32 1, %v2313
        %v2315 = vrot.slane %v2297, %v2314
        %v2316 = vmul.f32 %v2241, %v2311
        %v2317 = vmul.f32 %v2242, %v2315
        %v2319 = vlaneseq
        %v2320 = vshrl.u32 %v2319, 7
        %v2321 = vsub.s32 2, %v2320
        %v2322 = vrot.slane %v2307, %v2321
        %v2323 = vlaneseq
        %v2324 = vshrl.u32 %v2323, 7
        %v2325 = vsub.s32 6, %v2324
        %v2326 = vrot.slane %v2307, %v2325
        %v2329 = vlaneseq
        %v2330 = vshrl.u32 %v2329, 7
        %v2331 = vsub.s32 2, %v2330
        %v2332 = vrot.slane %v2322, %v2331
        %v2333 = vlaneseq
        %v2334 = vshrl.u32 %v2333, 7
        %v2335 = vsub.s32 2, %v2334
        %v2336 = vrot.slane %v2326, %v2335
        %v2337 = vadd.f32 %v2316, %v2332
        %v2338 = vadd.f32 %v2317, %v2336
        %v2339 = vpack.c.bf16 %v2337, %v2337
        %v2340 = vpack.c.bf16 %v2338, %v2338
        %s2341 = scalar_lea.vmem %s331, 768 [#allocation9]
        %v2342 = vld [vmem:[%s2341] sm:$0xff]
        %v2343 = vld [vmem:[%s2341 + $0x8] sm:$0xff]
        %v2344 = vld [vmem:[%s2341 + $0x10] sm:$0xff]
        %v2345 = vld [vmem:[%s2341 + $0x18] sm:$0xff]
        %v2346 = vld [vmem:[%s2341 + $0x20] sm:$0xff]
        %v2347 = vld [vmem:[%s2341 + $0x28] sm:$0xff]
        %v2348 = vld [vmem:[%s2341 + $0x30] sm:$0xff]
        %v2349 = vld [vmem:[%s2341 + $0x38] sm:$0xff]
        %v2350 = vld [vmem:[%s2341 + $0x40] sm:$0xff]
        %v2351 = vld [vmem:[%s2341 + $0x48] sm:$0xff]
        %v2352 = vld [vmem:[%s2341 + $0x50] sm:$0xff]
        %v2353 = vld [vmem:[%s2341 + $0x58] sm:$0xff]
        %v2354 = vld [vmem:[%s2341 + $0x60] sm:$0xff]
        %v2355 = vld [vmem:[%s2341 + $0x68] sm:$0xff]
        %v2356 = vld [vmem:[%s2341 + $0x70] sm:$0xff]
        %v2357 = vld [vmem:[%s2341 + $0x78] sm:$0xff]
        %v2358 = vld [vmem:[%s2341 + $0x80] sm:$0xff]
        %v2359 = vld [vmem:[%s2341 + $0x88] sm:$0xff]
        %v2360 = vld [vmem:[%s2341 + $0x90] sm:$0xff]
        %v2361 = vld [vmem:[%s2341 + $0x98] sm:$0xff]
        %v2362 = vld [vmem:[%s2341 + $0xa0] sm:$0xff]
        %v2363 = vld [vmem:[%s2341 + $0xa8] sm:$0xff]
        %v2364 = vld [vmem:[%s2341 + $0xb0] sm:$0xff]
        %v2365 = vld [vmem:[%s2341 + $0xb8] sm:$0xff]
        %v2366 = vld [vmem:[%s2341 + $0xc0] sm:$0xff]
        %v2367 = vld [vmem:[%s2341 + $0xc8] sm:$0xff]
        %v2368 = vld [vmem:[%s2341 + $0xd0] sm:$0xff]
        %v2369 = vld [vmem:[%s2341 + $0xd8] sm:$0xff]
        %v2370 = vld [vmem:[%s2341 + $0xe0] sm:$0xff]
        %v2371 = vld [vmem:[%s2341 + $0xe8] sm:$0xff]
        %v2372 = vld [vmem:[%s2341 + $0xf0] sm:$0xff]
        %v2373 = vld [vmem:[%s2341 + $0xf8] sm:$0xff]
        %s2374 = scalar_lea.vmem %s377, 24
        %v2375 = vld [vmem:[%s2374] sm:$0x77]
        %v2377 = vlaneseq
        %v2378 = vshrl.u32 %v2377, 7
        %v2379 = vsub.s32 0, %v2378
        %v2380 = vrot.slane %v2375, %v2379
        %v2381 = vlaneseq
        %v2382 = vshrl.u32 %v2381, 7
        %v2383 = vsub.s32 4, %v2382
        %v2384 = vrot.slane %v2375, %v2383
        %v2387 = vlaneseq
        %v2388 = vshrl.u32 %v2387, 7
        %v2389 = vsub.s32 0, %v2388
        %v2390 = vrot.slane %v2380, %v2389
        %v2391 = vlaneseq
        %v2392 = vshrl.u32 %v2391, 7
        %v2393 = vsub.s32 0, %v2392
        %v2394 = vrot.slane %v2384, %v2393
        %v2427 = vunpack.c.l.b16 %v2342
        %v2428 = vunpack.c.h.b16 %v2342
        %v2429 = vunpack.c.l.b16 %v2343
        %v2430 = vunpack.c.h.b16 %v2343
        %v2431 = vunpack.c.l.b16 %v2344
        %v2432 = vunpack.c.h.b16 %v2344
        %v2433 = vunpack.c.l.b16 %v2345
        %v2434 = vunpack.c.h.b16 %v2345
        %v2435 = vunpack.c.l.b16 %v2346
        %v2436 = vunpack.c.h.b16 %v2346
        %v2437 = vunpack.c.l.b16 %v2347
        %v2438 = vunpack.c.h.b16 %v2347
        %v2439 = vunpack.c.l.b16 %v2348
        %v2440 = vunpack.c.h.b16 %v2348
        %v2441 = vunpack.c.l.b16 %v2349
        %v2442 = vunpack.c.h.b16 %v2349
        %v2443 = vunpack.c.l.b16 %v2350
        %v2444 = vunpack.c.h.b16 %v2350
        %v2445 = vunpack.c.l.b16 %v2351
        %v2446 = vunpack.c.h.b16 %v2351
        %v2447 = vunpack.c.l.b16 %v2352
        %v2448 = vunpack.c.h.b16 %v2352
        %v2449 = vunpack.c.l.b16 %v2353
        %v2450 = vunpack.c.h.b16 %v2353
        %v2451 = vunpack.c.l.b16 %v2354
        %v2452 = vunpack.c.h.b16 %v2354
        %v2453 = vunpack.c.l.b16 %v2355
        %v2454 = vunpack.c.h.b16 %v2355
        %v2455 = vunpack.c.l.b16 %v2356
        %v2456 = vunpack.c.h.b16 %v2356
        %v2457 = vunpack.c.l.b16 %v2357
        %v2458 = vunpack.c.h.b16 %v2357
        %v2459 = vunpack.c.l.b16 %v2358
        %v2460 = vunpack.c.h.b16 %v2358
        %v2461 = vunpack.c.l.b16 %v2359
        %v2462 = vunpack.c.h.b16 %v2359
        %v2463 = vunpack.c.l.b16 %v2360
        %v2464 = vunpack.c.h.b16 %v2360
        %v2465 = vunpack.c.l.b16 %v2361
        %v2466 = vunpack.c.h.b16 %v2361
        %v2467 = vunpack.c.l.b16 %v2362
        %v2468 = vunpack.c.h.b16 %v2362
        %v2469 = vunpack.c.l.b16 %v2363
        %v2470 = vunpack.c.h.b16 %v2363
        %v2471 = vunpack.c.l.b16 %v2364
        %v2472 = vunpack.c.h.b16 %v2364
        %v2473 = vunpack.c.l.b16 %v2365
        %v2474 = vunpack.c.h.b16 %v2365
        %v2475 = vunpack.c.l.b16 %v2366
        %v2476 = vunpack.c.h.b16 %v2366
        %v2477 = vunpack.c.l.b16 %v2367
        %v2478 = vunpack.c.h.b16 %v2367
        %v2479 = vunpack.c.l.b16 %v2368
        %v2480 = vunpack.c.h.b16 %v2368
        %v2481 = vunpack.c.l.b16 %v2369
        %v2482 = vunpack.c.h.b16 %v2369
        %v2483 = vunpack.c.l.b16 %v2370
        %v2484 = vunpack.c.h.b16 %v2370
        %v2485 = vunpack.c.l.b16 %v2371
        %v2486 = vunpack.c.h.b16 %v2371
        %v2487 = vunpack.c.l.b16 %v2372
        %v2488 = vunpack.c.h.b16 %v2372
        %v2489 = vunpack.c.l.b16 %v2373
        %v2490 = vunpack.c.h.b16 %v2373
        %v2491 = vpack.c.b16 %v2429, %v2427
        %v2492 = vpack.c.b16 %v2430, %v2428
        %v2493 = vpack.c.b16 %v2433, %v2431
        %v2494 = vpack.c.b16 %v2434, %v2432
        %v2495 = vpack.c.b16 %v2437, %v2435
        %v2496 = vpack.c.b16 %v2438, %v2436
        %v2497 = vpack.c.b16 %v2441, %v2439
        %v2498 = vpack.c.b16 %v2442, %v2440
        %v2499 = vpack.c.b16 %v2445, %v2443
        %v2500 = vpack.c.b16 %v2446, %v2444
        %v2501 = vpack.c.b16 %v2449, %v2447
        %v2502 = vpack.c.b16 %v2450, %v2448
        %v2503 = vpack.c.b16 %v2453, %v2451
        %v2504 = vpack.c.b16 %v2454, %v2452
        %v2505 = vpack.c.b16 %v2457, %v2455
        %v2506 = vpack.c.b16 %v2458, %v2456
        %v2507 = vpack.c.b16 %v2461, %v2459
        %v2508 = vpack.c.b16 %v2462, %v2460
        %v2509 = vpack.c.b16 %v2465, %v2463
        %v2510 = vpack.c.b16 %v2466, %v2464
        %v2511 = vpack.c.b16 %v2469, %v2467
        %v2512 = vpack.c.b16 %v2470, %v2468
        %v2513 = vpack.c.b16 %v2473, %v2471
        %v2514 = vpack.c.b16 %v2474, %v2472
        %v2515 = vpack.c.b16 %v2477, %v2475
        %v2516 = vpack.c.b16 %v2478, %v2476
        %v2517 = vpack.c.b16 %v2481, %v2479
        %v2518 = vpack.c.b16 %v2482, %v2480
        %v2519 = vpack.c.b16 %v2485, %v2483
        %v2520 = vpack.c.b16 %v2486, %v2484
        %v2521 = vpack.c.b16 %v2489, %v2487
        %v2522 = vpack.c.b16 %v2490, %v2488
        %2555 = vmatprep.subr.bf16.mxu0 %v2492
        %2556 = vmatpush1.bf16.msra.mxu0 %v2491
        %2557 = vmatprep.subr.bf16.mxu0 %v2494
        %2558 = vmatpush1.bf16.msra.mxu0 %v2493
        %2559 = vmatprep.subr.bf16.mxu0 %v2496
        %2560 = vmatpush1.bf16.msra.mxu0 %v2495
        %2561 = vmatprep.subr.bf16.mxu0 %v2498
        %2562 = vmatpush1.bf16.msra.mxu0 %v2497
        %2563 = vmatprep.subr.bf16.mxu0 %v2500
        %2564 = vmatpush1.bf16.msra.mxu0 %v2499
        %2565 = vmatprep.subr.bf16.mxu0 %v2502
        %2566 = vmatpush1.bf16.msra.mxu0 %v2501
        %2567 = vmatprep.subr.bf16.mxu0 %v2504
        %2568 = vmatpush1.bf16.msra.mxu0 %v2503
        %2569 = vmatprep.subr.bf16.mxu0 %v2506
        %2570 = vmatpush1.bf16.msra.mxu0 %v2505
        %2571 = vmatprep.subr.bf16.mxu0 %v2508
        %2572 = vmatpush1.bf16.msra.mxu0 %v2507
        %2573 = vmatprep.subr.bf16.mxu0 %v2510
        %2574 = vmatpush1.bf16.msra.mxu0 %v2509
        %2575 = vmatprep.subr.bf16.mxu0 %v2512
        %2576 = vmatpush1.bf16.msra.mxu0 %v2511
        %2577 = vmatprep.subr.bf16.mxu0 %v2514
        %2578 = vmatpush1.bf16.msra.mxu0 %v2513
        %2579 = vmatprep.subr.bf16.mxu0 %v2516
        %2580 = vmatpush1.bf16.msra.mxu0 %v2515
        %2581 = vmatprep.subr.bf16.mxu0 %v2518
        %2582 = vmatpush1.bf16.msra.mxu0 %v2517
        %2583 = vmatprep.subr.bf16.mxu0 %v2520
        %2584 = vmatpush1.bf16.msra.mxu0 %v2519
        %2585 = vmatprep.subr.bf16.mxu0 %v2522
        %2586 = vmatpush1.bf16.msra.mxu0 %v2521
        %2587 = vmatprep.mubr.bf16.mxu0 %v2340
        %2588 = vmatmul.mubr.bf16.gmra.mrb[0].mxu0 %v2339
        %v2589 = vpop.f32.mrb[0].mxu0
        %v2590 = vadd.f32 %v2390, %v2589
        %v2591 = vpop.f32.mrb[0].mxu0
        %v2592 = vadd.f32 %v2394, %v2591
        %v2593 = vpop.f32.mrb[0].mxu0
        %v2594 = vpop.f32.mrb[0].mxu0
        %2595 = vdwg.mxu0
        %v2596 = vmax.f32 %v2590, 0.0
        %v2597 = vmax.f32 %v2592, 0.0
        %v2598 = vrot.slane %v2596, 4
        %v2599 = vadd.f32 %v2596, %v2598
        %v2600 = vrot.slane %v2599, 2
        %v2601 = vadd.f32 %v2599, %v2600
        %v2602 = vrot.slane %v2601, 1
        %v2603 = vadd.f32 %v2601, %v2602
        %v2604 = vrot.slane %v2597, 4
        %v2605 = vadd.f32 %v2597, %v2604
        %v2606 = vrot.slane %v2605, 2
        %v2607 = vadd.f32 %v2605, %v2606
        %v2608 = vrot.slane %v2607, 1
        %v2609 = vadd.f32 %v2607, %v2608
        %v2610 = vmul.f32 %v2596, %v2596
        %v2611 = vmul.f32 %v2597, %v2597
        %v2612 = vrot.slane %v2610, 4
        %v2613 = vadd.f32 %v2610, %v2612
        %v2614 = vrot.slane %v2613, 2
        %v2615 = vadd.f32 %v2613, %v2614
        %v2616 = vrot.slane %v2615, 1
        %v2617 = vadd.f32 %v2615, %v2616
        %v2618 = vrot.slane %v2611, 4
        %v2619 = vadd.f32 %v2611, %v2618
        %v2620 = vrot.slane %v2619, 2
        %v2621 = vadd.f32 %v2619, %v2620
        %v2622 = vrot.slane %v2621, 1
        %v2623 = vadd.f32 %v2621, %v2622
        %v2624 = vmul.f32 %v2603, 0.125
        %v2625 = vmul.f32 %v2609, 0.125
        %v2626 = vmul.f32 %v2617, 0.125
        %v2627 = vmul.f32 %v2623, 0.125
        %v2628 = vmul.f32 %v2624, %v2624
        %v2629 = vmul.f32 %v2625, %v2625
        %v2630 = vsub.f32 %v2626, %v2628
        %v2631 = vsub.f32 %v2627, %v2629
        %v2632 = vmax.f32 %v2630, 0.0
        %v2633 = vmax.f32 %v2631, 0.0
        %v2634 = vadd.f32 %v2632, 1e-05
        %v2635 = vadd.f32 %v2633, 1e-05
        %v2636 = vrsqrt.pop %v2634
        %v2637 = vrsqrt.pop %v2635
        %v2640 = vcombine.low %v2636, %v2637
        %v2641 = vrot.slane %v2640, 7
        %v2643 = vmul.f32 %v2375, %v2641
        %v2645 = vlaneseq
        %v2646 = vshrl.u32 %v2645, 7
        %v2647 = vsub.s32 1, %v2646
        %v2648 = vrot.slane %v2643, %v2647
        %v2649 = vlaneseq
        %v2650 = vshrl.u32 %v2649, 7
        %v2651 = vsub.s32 5, %v2650
        %v2652 = vrot.slane %v2643, %v2651
        %v2655 = vmul.f32 %v2624, %v2648
        %v2656 = vmul.f32 %v2625, %v2652
        %v2659 = vcombine.low %v2655, %v2656
        %v2660 = vrot.slane %v2659, 6
        %v2662 = vsub.f32 %v2375, %v2660
        %v2663 = vlaneseq
        %v2664 = vshrl.u32 %v2663, 7
        %v2665 = vsub.s32 1, %v2664
        %v2666 = vrot.slane %v2648, %v2665
        %v2667 = vlaneseq
        %v2668 = vshrl.u32 %v2667, 7
        %v2669 = vsub.s32 1, %v2668
        %v2670 = vrot.slane %v2652, %v2669
        %v2671 = vmul.f32 %v2596, %v2666
        %v2672 = vmul.f32 %v2597, %v2670
        %v2674 = vlaneseq
        %v2675 = vshrl.u32 %v2674, 7
        %v2676 = vsub.s32 2, %v2675
        %v2677 = vrot.slane %v2662, %v2676
        %v2678 = vlaneseq
        %v2679 = vshrl.u32 %v2678, 7
        %v2680 = vsub.s32 6, %v2679
        %v2681 = vrot.slane %v2662, %v2680
        %v2684 = vlaneseq
        %v2685 = vshrl.u32 %v2684, 7
        %v2686 = vsub.s32 2, %v2685
        %v2687 = vrot.slane %v2677, %v2686
        %v2688 = vlaneseq
        %v2689 = vshrl.u32 %v2688, 7
        %v2690 = vsub.s32 2, %v2689
        %v2691 = vrot.slane %v2681, %v2690
        %v2692 = vadd.f32 %v2671, %v2687
        %v2693 = vadd.f32 %v2672, %v2691
        %v2694 = vpack.c.bf16 %v2692, %v2692
        %v2695 = vpack.c.bf16 %v2693, %v2693
        %s2696 = scalar_lea.vmem %s331, 1024 [#allocation9]
        %v2697 = vld [vmem:[%s2696] sm:$0xff]
        %v2698 = vld [vmem:[%s2696 + $0x8] sm:$0xff]
        %v2699 = vld [vmem:[%s2696 + $0x10] sm:$0xff]
        %v2700 = vld [vmem:[%s2696 + $0x18] sm:$0xff]
        %v2701 = vld [vmem:[%s2696 + $0x20] sm:$0xff]
        %v2702 = vld [vmem:[%s2696 + $0x28] sm:$0xff]
        %v2703 = vld [vmem:[%s2696 + $0x30] sm:$0xff]
        %v2704 = vld [vmem:[%s2696 + $0x38] sm:$0xff]
        %v2705 = vld [vmem:[%s2696 + $0x40] sm:$0xff]
        %v2706 = vld [vmem:[%s2696 + $0x48] sm:$0xff]
        %v2707 = vld [vmem:[%s2696 + $0x50] sm:$0xff]
        %v2708 = vld [vmem:[%s2696 + $0x58] sm:$0xff]
        %v2709 = vld [vmem:[%s2696 + $0x60] sm:$0xff]
        %v2710 = vld [vmem:[%s2696 + $0x68] sm:$0xff]
        %v2711 = vld [vmem:[%s2696 + $0x70] sm:$0xff]
        %v2712 = vld [vmem:[%s2696 + $0x78] sm:$0xff]
        %v2713 = vld [vmem:[%s2696 + $0x80] sm:$0xff]
        %v2714 = vld [vmem:[%s2696 + $0x88] sm:$0xff]
        %v2715 = vld [vmem:[%s2696 + $0x90] sm:$0xff]
        %v2716 = vld [vmem:[%s2696 + $0x98] sm:$0xff]
        %v2717 = vld [vmem:[%s2696 + $0xa0] sm:$0xff]
        %v2718 = vld [vmem:[%s2696 + $0xa8] sm:$0xff]
        %v2719 = vld [vmem:[%s2696 + $0xb0] sm:$0xff]
        %v2720 = vld [vmem:[%s2696 + $0xb8] sm:$0xff]
        %v2721 = vld [vmem:[%s2696 + $0xc0] sm:$0xff]
        %v2722 = vld [vmem:[%s2696 + $0xc8] sm:$0xff]
        %v2723 = vld [vmem:[%s2696 + $0xd0] sm:$0xff]
        %v2724 = vld [vmem:[%s2696 + $0xd8] sm:$0xff]
        %v2725 = vld [vmem:[%s2696 + $0xe0] sm:$0xff]
        %v2726 = vld [vmem:[%s2696 + $0xe8] sm:$0xff]
        %v2727 = vld [vmem:[%s2696 + $0xf0] sm:$0xff]
        %v2728 = vld [vmem:[%s2696 + $0xf8] sm:$0xff]
        %s2729 = scalar_lea.vmem %s377, 32
        %v2730 = vld [vmem:[%s2729] sm:$0x77]
        %v2732 = vlaneseq
        %v2733 = vshrl.u32 %v2732, 7
        %v2734 = vsub.s32 0, %v2733
        %v2735 = vrot.slane %v2730, %v2734
        %v2736 = vlaneseq
        %v2737 = vshrl.u32 %v2736, 7
        %v2738 = vsub.s32 4, %v2737
        %v2739 = vrot.slane %v2730, %v2738
        %v2742 = vlaneseq
        %v2743 = vshrl.u32 %v2742, 7
        %v2744 = vsub.s32 0, %v2743
        %v2745 = vrot.slane %v2735, %v2744
        %v2746 = vlaneseq
        %v2747 = vshrl.u32 %v2746, 7
        %v2748 = vsub.s32 0, %v2747
        %v2749 = vrot.slane %v2739, %v2748
        %v2782 = vunpack.c.l.b16 %v2697
        %v2783 = vunpack.c.h.b16 %v2697
        %v2784 = vunpack.c.l.b16 %v2698
        %v2785 = vunpack.c.h.b16 %v2698
        %v2786 = vunpack.c.l.b16 %v2699
        %v2787 = vunpack.c.h.b16 %v2699
        %v2788 = vunpack.c.l.b16 %v2700
        %v2789 = vunpack.c.h.b16 %v2700
        %v2790 = vunpack.c.l.b16 %v2701
        %v2791 = vunpack.c.h.b16 %v2701
        %v2792 = vunpack.c.l.b16 %v2702
        %v2793 = vunpack.c.h.b16 %v2702
        %v2794 = vunpack.c.l.b16 %v2703
        %v2795 = vunpack.c.h.b16 %v2703
        %v2796 = vunpack.c.l.b16 %v2704
        %v2797 = vunpack.c.h.b16 %v2704
        %v2798 = vunpack.c.l.b16 %v2705
        %v2799 = vunpack.c.h.b16 %v2705
        %v2800 = vunpack.c.l.b16 %v2706
        %v2801 = vunpack.c.h.b16 %v2706
        %v2802 = vunpack.c.l.b16 %v2707
        %v2803 = vunpack.c.h.b16 %v2707
        %v2804 = vunpack.c.l.b16 %v2708
        %v2805 = vunpack.c.h.b16 %v2708
        %v2806 = vunpack.c.l.b16 %v2709
        %v2807 = vunpack.c.h.b16 %v2709
        %v2808 = vunpack.c.l.b16 %v2710
        %v2809 = vunpack.c.h.b16 %v2710
        %v2810 = vunpack.c.l.b16 %v2711
        %v2811 = vunpack.c.h.b16 %v2711
        %v2812 = vunpack.c.l.b16 %v2712
        %v2813 = vunpack.c.h.b16 %v2712
        %v2814 = vunpack.c.l.b16 %v2713
        %v2815 = vunpack.c.h.b16 %v2713
        %v2816 = vunpack.c.l.b16 %v2714
        %v2817 = vunpack.c.h.b16 %v2714
        %v2818 = vunpack.c.l.b16 %v2715
        %v2819 = vunpack.c.h.b16 %v2715
        %v2820 = vunpack.c.l.b16 %v2716
        %v2821 = vunpack.c.h.b16 %v2716
        %v2822 = vunpack.c.l.b16 %v2717
        %v2823 = vunpack.c.h.b16 %v2717
        %v2824 = vunpack.c.l.b16 %v2718
        %v2825 = vunpack.c.h.b16 %v2718
        %v2826 = vunpack.c.l.b16 %v2719
        %v2827 = vunpack.c.h.b16 %v2719
        %v2828 = vunpack.c.l.b16 %v2720
        %v2829 = vunpack.c.h.b16 %v2720
        %v2830 = vunpack.c.l.b16 %v2721
        %v2831 = vunpack.c.h.b16 %v2721
        %v2832 = vunpack.c.l.b16 %v2722
        %v2833 = vunpack.c.h.b16 %v2722
        %v2834 = vunpack.c.l.b16 %v2723
        %v2835 = vunpack.c.h.b16 %v2723
        %v2836 = vunpack.c.l.b16 %v2724
        %v2837 = vunpack.c.h.b16 %v2724
        %v2838 = vunpack.c.l.b16 %v2725
        %v2839 = vunpack.c.h.b16 %v2725
        %v2840 = vunpack.c.l.b16 %v2726
        %v2841 = vunpack.c.h.b16 %v2726
        %v2842 = vunpack.c.l.b16 %v2727
        %v2843 = vunpack.c.h.b16 %v2727
        %v2844 = vunpack.c.l.b16 %v2728
        %v2845 = vunpack.c.h.b16 %v2728
        %v2846 = vpack.c.b16 %v2784, %v2782
        %v2847 = vpack.c.b16 %v2785, %v2783
        %v2848 = vpack.c.b16 %v2788, %v2786
        %v2849 = vpack.c.b16 %v2789, %v2787
        %v2850 = vpack.c.b16 %v2792, %v2790
        %v2851 = vpack.c.b16 %v2793, %v2791
        %v2852 = vpack.c.b16 %v2796, %v2794
        %v2853 = vpack.c.b16 %v2797, %v2795
        %v2854 = vpack.c.b16 %v2800, %v2798
        %v2855 = vpack.c.b16 %v2801, %v2799
        %v2856 = vpack.c.b16 %v2804, %v2802
        %v2857 = vpack.c.b16 %v2805, %v2803
        %v2858 = vpack.c.b16 %v2808, %v2806
        %v2859 = vpack.c.b16 %v2809, %v2807
        %v2860 = vpack.c.b16 %v2812, %v2810
        %v2861 = vpack.c.b16 %v2813, %v2811
        %v2862 = vpack.c.b16 %v2816, %v2814
        %v2863 = vpack.c.b16 %v2817, %v2815
        %v2864 = vpack.c.b16 %v2820, %v2818
        %v2865 = vpack.c.b16 %v2821, %v2819
        %v2866 = vpack.c.b16 %v2824, %v2822
        %v2867 = vpack.c.b16 %v2825, %v2823
        %v2868 = vpack.c.b16 %v2828, %v2826
        %v2869 = vpack.c.b16 %v2829, %v2827
        %v2870 = vpack.c.b16 %v2832, %v2830
        %v2871 = vpack.c.b16 %v2833, %v2831
        %v2872 = vpack.c.b16 %v2836, %v2834
        %v2873 = vpack.c.b16 %v2837, %v2835
        %v2874 = vpack.c.b16 %v2840, %v2838
        %v2875 = vpack.c.b16 %v2841, %v2839
        %v2876 = vpack.c.b16 %v2844, %v2842
        %v2877 = vpack.c.b16 %v2845, %v2843
        %2910 = vmatprep.subr.bf16.mxu0 %v2847
        %2911 = vmatpush1.bf16.msra.mxu0 %v2846
        %2912 = vmatprep.subr.bf16.mxu0 %v2849
        %2913 = vmatpush1.bf16.msra.mxu0 %v2848
        %2914 = vmatprep.subr.bf16.mxu0 %v2851
        %2915 = vmatpush1.bf16.msra.mxu0 %v2850
        %2916 = vmatprep.subr.bf16.mxu0 %v2853
        %2917 = vmatpush1.bf16.msra.mxu0 %v2852
        %2918 = vmatprep.subr.bf16.mxu0 %v2855
        %2919 = vmatpush1.bf16.msra.mxu0 %v2854
        %2920 = vmatprep.subr.bf16.mxu0 %v2857
        %2921 = vmatpush1.bf16.msra.mxu0 %v2856
        %2922 = vmatprep.subr.bf16.mxu0 %v2859
        %2923 = vmatpush1.bf16.msra.mxu0 %v2858
        %2924 = vmatprep.subr.bf16.mxu0 %v2861
        %2925 = vmatpush1.bf16.msra.mxu0 %v2860
        %2926 = vmatprep.subr.bf16.mxu0 %v2863
        %2927 = vmatpush1.bf16.msra.mxu0 %v2862
        %2928 = vmatprep.subr.bf16.mxu0 %v2865
        %2929 = vmatpush1.bf16.msra.mxu0 %v2864
        %2930 = vmatprep.subr.bf16.mxu0 %v2867
        %2931 = vmatpush1.bf16.msra.mxu0 %v2866
        %2932 = vmatprep.subr.bf16.mxu0 %v2869
        %2933 = vmatpush1.bf16.msra.mxu0 %v2868
        %2934 = vmatprep.subr.bf16.mxu0 %v2871
        %2935 = vmatpush1.bf16.msra.mxu0 %v2870
        %2936 = vmatprep.subr.bf16.mxu0 %v2873
        %2937 = vmatpush1.bf16.msra.mxu0 %v2872
        %2938 = vmatprep.subr.bf16.mxu0 %v2875
        %2939 = vmatpush1.bf16.msra.mxu0 %v2874
        %2940 = vmatprep.subr.bf16.mxu0 %v2877
        %2941 = vmatpush1.bf16.msra.mxu0 %v2876
        %2942 = vmatprep.mubr.bf16.mxu0 %v2695
        %2943 = vmatmul.mubr.bf16.gmra.mrb[0].mxu0 %v2694
        %v2944 = vpop.f32.mrb[0].mxu0
        %v2945 = vadd.f32 %v2745, %v2944
        %v2946 = vpop.f32.mrb[0].mxu0
        %v2947 = vadd.f32 %v2749, %v2946
        %v2948 = vpop.f32.mrb[0].mxu0
        %v2949 = vpop.f32.mrb[0].mxu0
        %2950 = vdwg.mxu0
        %v2951 = vmax.f32 %v2945, 0.0
        %v2952 = vmax.f32 %v2947, 0.0
        %v2953 = vrot.slane %v2951, 4
        %v2954 = vadd.f32 %v2951, %v2953
        %v2955 = vrot.slane %v2954, 2
        %v2956 = vadd.f32 %v2954, %v2955
        %v2957 = vrot.slane %v2956, 1
        %v2958 = vadd.f32 %v2956, %v2957
        %v2959 = vrot.slane %v2952, 4
        %v2960 = vadd.f32 %v2952, %v2959
        %v2961 = vrot.slane %v2960, 2
        %v2962 = vadd.f32 %v2960, %v2961
        %v2963 = vrot.slane %v2962, 1
        %v2964 = vadd.f32 %v2962, %v2963
        %v2965 = vmul.f32 %v2951, %v2951
        %v2966 = vmul.f32 %v2952, %v2952
        %v2967 = vrot.slane %v2965, 4
        %v2968 = vadd.f32 %v2965, %v2967
        %v2969 = vrot.slane %v2968, 2
        %v2970 = vadd.f32 %v2968, %v2969
        %v2971 = vrot.slane %v2970, 1
        %v2972 = vadd.f32 %v2970, %v2971
        %v2973 = vrot.slane %v2966, 4
        %v2974 = vadd.f32 %v2966, %v2973
        %v2975 = vrot.slane %v2974, 2
        %v2976 = vadd.f32 %v2974, %v2975
        %v2977 = vrot.slane %v2976, 1
        %v2978 = vadd.f32 %v2976, %v2977
        %v2979 = vmul.f32 %v2958, 0.125
        %v2980 = vmul.f32 %v2964, 0.125
        %v2981 = vmul.f32 %v2972, 0.125
        %v2982 = vmul.f32 %v2978, 0.125
        %v2983 = vmul.f32 %v2979, %v2979
        %v2984 = vmul.f32 %v2980, %v2980
        %v2985 = vsub.f32 %v2981, %v2983
        %v2986 = vsub.f32 %v2982, %v2984
        %v2987 = vmax.f32 %v2985, 0.0
        %v2988 = vmax.f32 %v2986, 0.0
        %v2989 = vadd.f32 %v2987, 1e-05
        %v2990 = vadd.f32 %v2988, 1e-05
        %v2991 = vrsqrt.pop %v2989
        %v2992 = vrsqrt.pop %v2990
        %v2995 = vcombine.low %v2991, %v2992
        %v2996 = vrot.slane %v2995, 7
        %v2998 = vmul.f32 %v2730, %v2996
        %v3000 = vlaneseq
        %v3001 = vshrl.u32 %v3000, 7
        %v3002 = vsub.s32 1, %v3001
        %v3003 = vrot.slane %v2998, %v3002
        %v3004 = vlaneseq
        %v3005 = vshrl.u32 %v3004, 7
        %v3006 = vsub.s32 5, %v3005
        %v3007 = vrot.slane %v2998, %v3006
        %v3010 = vmul.f32 %v2979, %v3003
        %v3011 = vmul.f32 %v2980, %v3007
        %v3014 = vcombine.low %v3010, %v3011
        %v3015 = vrot.slane %v3014, 6
        %v3017 = vsub.f32 %v2730, %v3015
        %v3018 = vlaneseq
        %v3019 = vshrl.u32 %v3018, 7
        %v3020 = vsub.s32 1, %v3019
        %v3021 = vrot.slane %v3003, %v3020
        %v3022 = vlaneseq
        %v3023 = vshrl.u32 %v3022, 7
        %v3024 = vsub.s32 1, %v3023
        %v3025 = vrot.slane %v3007, %v3024
        %v3026 = vmul.f32 %v2951, %v3021
        %v3027 = vmul.f32 %v2952, %v3025
        %v3029 = vlaneseq
        %v3030 = vshrl.u32 %v3029, 7
        %v3031 = vsub.s32 2, %v3030
        %v3032 = vrot.slane %v3017, %v3031
        %v3033 = vlaneseq
        %v3034 = vshrl.u32 %v3033, 7
        %v3035 = vsub.s32 6, %v3034
        %v3036 = vrot.slane %v3017, %v3035
        %v3039 = vlaneseq
        %v3040 = vshrl.u32 %v3039, 7
        %v3041 = vsub.s32 2, %v3040
        %v3042 = vrot.slane %v3032, %v3041
        %v3043 = vlaneseq
        %v3044 = vshrl.u32 %v3043, 7
        %v3045 = vsub.s32 2, %v3044
        %v3046 = vrot.slane %v3036, %v3045
        %v3047 = vadd.f32 %v3026, %v3042
        %v3048 = vadd.f32 %v3027, %v3046
        %v3049 = vpack.c.bf16 %v3047, %v3047
        %v3050 = vpack.c.bf16 %v3048, %v3048
        %s3051 = scalar_lea.vmem %s331, 1280 [#allocation9]
        %v3052 = vld [vmem:[%s3051] sm:$0xff]
        %v3053 = vld [vmem:[%s3051 + $0x8] sm:$0xff]
        %v3054 = vld [vmem:[%s3051 + $0x10] sm:$0xff]
        %v3055 = vld [vmem:[%s3051 + $0x18] sm:$0xff]
        %v3056 = vld [vmem:[%s3051 + $0x20] sm:$0xff]
        %v3057 = vld [vmem:[%s3051 + $0x28] sm:$0xff]
        %v3058 = vld [vmem:[%s3051 + $0x30] sm:$0xff]
        %v3059 = vld [vmem:[%s3051 + $0x38] sm:$0xff]
        %v3060 = vld [vmem:[%s3051 + $0x40] sm:$0xff]
        %v3061 = vld [vmem:[%s3051 + $0x48] sm:$0xff]
        %v3062 = vld [vmem:[%s3051 + $0x50] sm:$0xff]
        %v3063 = vld [vmem:[%s3051 + $0x58] sm:$0xff]
        %v3064 = vld [vmem:[%s3051 + $0x60] sm:$0xff]
        %v3065 = vld [vmem:[%s3051 + $0x68] sm:$0xff]
        %v3066 = vld [vmem:[%s3051 + $0x70] sm:$0xff]
        %v3067 = vld [vmem:[%s3051 + $0x78] sm:$0xff]
        %v3068 = vld [vmem:[%s3051 + $0x80] sm:$0xff]
        %v3069 = vld [vmem:[%s3051 + $0x88] sm:$0xff]
        %v3070 = vld [vmem:[%s3051 + $0x90] sm:$0xff]
        %v3071 = vld [vmem:[%s3051 + $0x98] sm:$0xff]
        %v3072 = vld [vmem:[%s3051 + $0xa0] sm:$0xff]
        %v3073 = vld [vmem:[%s3051 + $0xa8] sm:$0xff]
        %v3074 = vld [vmem:[%s3051 + $0xb0] sm:$0xff]
        %v3075 = vld [vmem:[%s3051 + $0xb8] sm:$0xff]
        %v3076 = vld [vmem:[%s3051 + $0xc0] sm:$0xff]
        %v3077 = vld [vmem:[%s3051 + $0xc8] sm:$0xff]
        %v3078 = vld [vmem:[%s3051 + $0xd0] sm:$0xff]
        %v3079 = vld [vmem:[%s3051 + $0xd8] sm:$0xff]
        %v3080 = vld [vmem:[%s3051 + $0xe0] sm:$0xff]
        %v3081 = vld [vmem:[%s3051 + $0xe8] sm:$0xff]
        %v3082 = vld [vmem:[%s3051 + $0xf0] sm:$0xff]
        %v3083 = vld [vmem:[%s3051 + $0xf8] sm:$0xff]
        %s3084 = scalar_lea.vmem %s377, 40
        %v3085 = vld [vmem:[%s3084] sm:$0x77]
        %v3087 = vlaneseq
        %v3088 = vshrl.u32 %v3087, 7
        %v3089 = vsub.s32 0, %v3088
        %v3090 = vrot.slane %v3085, %v3089
        %v3091 = vlaneseq
        %v3092 = vshrl.u32 %v3091, 7
        %v3093 = vsub.s32 4, %v3092
        %v3094 = vrot.slane %v3085, %v3093
        %v3097 = vlaneseq
        %v3098 = vshrl.u32 %v3097, 7
        %v3099 = vsub.s32 0, %v3098
        %v3100 = vrot.slane %v3090, %v3099
        %v3101 = vlaneseq
        %v3102 = vshrl.u32 %v3101, 7
        %v3103 = vsub.s32 0, %v3102
        %v3104 = vrot.slane %v3094, %v3103
        %v3137 = vunpack.c.l.b16 %v3052
        %v3138 = vunpack.c.h.b16 %v3052
        %v3139 = vunpack.c.l.b16 %v3053
        %v3140 = vunpack.c.h.b16 %v3053
        %v3141 = vunpack.c.l.b16 %v3054
        %v3142 = vunpack.c.h.b16 %v3054
        %v3143 = vunpack.c.l.b16 %v3055
        %v3144 = vunpack.c.h.b16 %v3055
        %v3145 = vunpack.c.l.b16 %v3056
        %v3146 = vunpack.c.h.b16 %v3056
        %v3147 = vunpack.c.l.b16 %v3057
        %v3148 = vunpack.c.h.b16 %v3057
        %v3149 = vunpack.c.l.b16 %v3058
        %v3150 = vunpack.c.h.b16 %v3058
        %v3151 = vunpack.c.l.b16 %v3059
        %v3152 = vunpack.c.h.b16 %v3059
        %v3153 = vunpack.c.l.b16 %v3060
        %v3154 = vunpack.c.h.b16 %v3060
        %v3155 = vunpack.c.l.b16 %v3061
        %v3156 = vunpack.c.h.b16 %v3061
        %v3157 = vunpack.c.l.b16 %v3062
        %v3158 = vunpack.c.h.b16 %v3062
        %v3159 = vunpack.c.l.b16 %v3063
        %v3160 = vunpack.c.h.b16 %v3063
        %v3161 = vunpack.c.l.b16 %v3064
        %v3162 = vunpack.c.h.b16 %v3064
        %v3163 = vunpack.c.l.b16 %v3065
        %v3164 = vunpack.c.h.b16 %v3065
        %v3165 = vunpack.c.l.b16 %v3066
        %v3166 = vunpack.c.h.b16 %v3066
        %v3167 = vunpack.c.l.b16 %v3067
        %v3168 = vunpack.c.h.b16 %v3067
        %v3169 = vunpack.c.l.b16 %v3068
        %v3170 = vunpack.c.h.b16 %v3068
        %v3171 = vunpack.c.l.b16 %v3069
        %v3172 = vunpack.c.h.b16 %v3069
        %v3173 = vunpack.c.l.b16 %v3070
        %v3174 = vunpack.c.h.b16 %v3070
        %v3175 = vunpack.c.l.b16 %v3071
        %v3176 = vunpack.c.h.b16 %v3071
        %v3177 = vunpack.c.l.b16 %v3072
        %v3178 = vunpack.c.h.b16 %v3072
        %v3179 = vunpack.c.l.b16 %v3073
        %v3180 = vunpack.c.h.b16 %v3073
        %v3181 = vunpack.c.l.b16 %v3074
        %v3182 = vunpack.c.h.b16 %v3074
        %v3183 = vunpack.c.l.b16 %v3075
        %v3184 = vunpack.c.h.b16 %v3075
        %v3185 = vunpack.c.l.b16 %v3076
        %v3186 = vunpack.c.h.b16 %v3076
        %v3187 = vunpack.c.l.b16 %v3077
        %v3188 = vunpack.c.h.b16 %v3077
        %v3189 = vunpack.c.l.b16 %v3078
        %v3190 = vunpack.c.h.b16 %v3078
        %v3191 = vunpack.c.l.b16 %v3079
        %v3192 = vunpack.c.h.b16 %v3079
        %v3193 = vunpack.c.l.b16 %v3080
        %v3194 = vunpack.c.h.b16 %v3080
        %v3195 = vunpack.c.l.b16 %v3081
        %v3196 = vunpack.c.h.b16 %v3081
        %v3197 = vunpack.c.l.b16 %v3082
        %v3198 = vunpack.c.h.b16 %v3082
        %v3199 = vunpack.c.l.b16 %v3083
        %v3200 = vunpack.c.h.b16 %v3083
        %v3201 = vpack.c.b16 %v3139, %v3137
        %v3202 = vpack.c.b16 %v3140, %v3138
        %v3203 = vpack.c.b16 %v3143, %v3141
        %v3204 = vpack.c.b16 %v3144, %v3142
        %v3205 = vpack.c.b16 %v3147, %v3145
        %v3206 = vpack.c.b16 %v3148, %v3146
        %v3207 = vpack.c.b16 %v3151, %v3149
        %v3208 = vpack.c.b16 %v3152, %v3150
        %v3209 = vpack.c.b16 %v3155, %v3153
        %v3210 = vpack.c.b16 %v3156, %v3154
        %v3211 = vpack.c.b16 %v3159, %v3157
        %v3212 = vpack.c.b16 %v3160, %v3158
        %v3213 = vpack.c.b16 %v3163, %v3161
        %v3214 = vpack.c.b16 %v3164, %v3162
        %v3215 = vpack.c.b16 %v3167, %v3165
        %v3216 = vpack.c.b16 %v3168, %v3166
        %v3217 = vpack.c.b16 %v3171, %v3169
        %v3218 = vpack.c.b16 %v3172, %v3170
        %v3219 = vpack.c.b16 %v3175, %v3173
        %v3220 = vpack.c.b16 %v3176, %v3174
        %v3221 = vpack.c.b16 %v3179, %v3177
        %v3222 = vpack.c.b16 %v3180, %v3178
        %v3223 = vpack.c.b16 %v3183, %v3181
        %v3224 = vpack.c.b16 %v3184, %v3182
        %v3225 = vpack.c.b16 %v3187, %v3185
        %v3226 = vpack.c.b16 %v3188, %v3186
        %v3227 = vpack.c.b16 %v3191, %v3189
        %v3228 = vpack.c.b16 %v3192, %v3190
        %v3229 = vpack.c.b16 %v3195, %v3193
        %v3230 = vpack.c.b16 %v3196, %v3194
        %v3231 = vpack.c.b16 %v3199, %v3197
        %v3232 = vpack.c.b16 %v3200, %v3198
        %3265 = vmatprep.subr.bf16.mxu0 %v3202
        %3266 = vmatpush1.bf16.msra.mxu0 %v3201
        %3267 = vmatprep.subr.bf16.mxu0 %v3204
        %3268 = vmatpush1.bf16.msra.mxu0 %v3203
        %3269 = vmatprep.subr.bf16.mxu0 %v3206
        %3270 = vmatpush1.bf16.msra.mxu0 %v3205
        %3271 = vmatprep.subr.bf16.mxu0 %v3208
        %3272 = vmatpush1.bf16.msra.mxu0 %v3207
        %3273 = vmatprep.subr.bf16.mxu0 %v3210
        %3274 = vmatpush1.bf16.msra.mxu0 %v3209
        %3275 = vmatprep.subr.bf16.mxu0 %v3212
        %3276 = vmatpush1.bf16.msra.mxu0 %v3211
        %3277 = vmatprep.subr.bf16.mxu0 %v3214
        %3278 = vmatpush1.bf16.msra.mxu0 %v3213
        %3279 = vmatprep.subr.bf16.mxu0 %v3216
        %3280 = vmatpush1.bf16.msra.mxu0 %v3215
        %3281 = vmatprep.subr.bf16.mxu0 %v3218
        %3282 = vmatpush1.bf16.msra.mxu0 %v3217
        %3283 = vmatprep.subr.bf16.mxu0 %v3220
        %3284 = vmatpush1.bf16.msra.mxu0 %v3219
        %3285 = vmatprep.subr.bf16.mxu0 %v3222
        %3286 = vmatpush1.bf16.msra.mxu0 %v3221
        %3287 = vmatprep.subr.bf16.mxu0 %v3224
        %3288 = vmatpush1.bf16.msra.mxu0 %v3223
        %3289 = vmatprep.subr.bf16.mxu0 %v3226
        %3290 = vmatpush1.bf16.msra.mxu0 %v3225
        %3291 = vmatprep.subr.bf16.mxu0 %v3228
        %3292 = vmatpush1.bf16.msra.mxu0 %v3227
        %3293 = vmatprep.subr.bf16.mxu0 %v3230
        %3294 = vmatpush1.bf16.msra.mxu0 %v3229
        %3295 = vmatprep.subr.bf16.mxu0 %v3232
        %3296 = vmatpush1.bf16.msra.mxu0 %v3231
        %3297 = vmatprep.mubr.bf16.mxu0 %v3050
        %3298 = vmatmul.mubr.bf16.gmra.mrb[0].mxu0 %v3049
        %v3299 = vpop.f32.mrb[0].mxu0
        %v3300 = vadd.f32 %v3100, %v3299
        %v3301 = vpop.f32.mrb[0].mxu0
        %v3302 = vadd.f32 %v3104, %v3301
        %v3303 = vpop.f32.mrb[0].mxu0
        %v3304 = vpop.f32.mrb[0].mxu0
        %3305 = vdwg.mxu0
        %v3306 = vmax.f32 %v3300, 0.0
        %v3307 = vmax.f32 %v3302, 0.0
        %v3308 = vrot.slane %v3306, 4
        %v3309 = vadd.f32 %v3306, %v3308
        %v3310 = vrot.slane %v3309, 2
        %v3311 = vadd.f32 %v3309, %v3310
        %v3312 = vrot.slane %v3311, 1
        %v3313 = vadd.f32 %v3311, %v3312
        %v3314 = vrot.slane %v3307, 4
        %v3315 = vadd.f32 %v3307, %v3314
        %v3316 = vrot.slane %v3315, 2
        %v3317 = vadd.f32 %v3315, %v3316
        %v3318 = vrot.slane %v3317, 1
        %v3319 = vadd.f32 %v3317, %v3318
        %v3320 = vmul.f32 %v3306, %v3306
        %v3321 = vmul.f32 %v3307, %v3307
        %v3322 = vrot.slane %v3320, 4
        %v3323 = vadd.f32 %v3320, %v3322
        %v3324 = vrot.slane %v3323, 2
        %v3325 = vadd.f32 %v3323, %v3324
        %v3326 = vrot.slane %v3325, 1
        %v3327 = vadd.f32 %v3325, %v3326
        %v3328 = vrot.slane %v3321, 4
        %v3329 = vadd.f32 %v3321, %v3328
        %v3330 = vrot.slane %v3329, 2
        %v3331 = vadd.f32 %v3329, %v3330
        %v3332 = vrot.slane %v3331, 1
        %v3333 = vadd.f32 %v3331, %v3332
        %v3334 = vmul.f32 %v3313, 0.125
        %v3335 = vmul.f32 %v3319, 0.125
        %v3336 = vmul.f32 %v3327, 0.125
        %v3337 = vmul.f32 %v3333, 0.125
        %v3338 = vmul.f32 %v3334, %v3334
        %v3339 = vmul.f32 %v3335, %v3335
        %v3340 = vsub.f32 %v3336, %v3338
        %v3341 = vsub.f32 %v3337, %v3339
        %v3342 = vmax.f32 %v3340, 0.0
        %v3343 = vmax.f32 %v3341, 0.0
        %v3344 = vadd.f32 %v3342, 1e-05
        %v3345 = vadd.f32 %v3343, 1e-05
        %v3346 = vrsqrt.pop %v3344
        %v3347 = vrsqrt.pop %v3345
        %v3350 = vcombine.low %v3346, %v3347
        %v3351 = vrot.slane %v3350, 7
        %v3353 = vmul.f32 %v3085, %v3351
        %v3355 = vlaneseq
        %v3356 = vshrl.u32 %v3355, 7
        %v3357 = vsub.s32 1, %v3356
        %v3358 = vrot.slane %v3353, %v3357
        %v3359 = vlaneseq
        %v3360 = vshrl.u32 %v3359, 7
        %v3361 = vsub.s32 5, %v3360
        %v3362 = vrot.slane %v3353, %v3361
        %v3365 = vmul.f32 %v3334, %v3358
        %v3366 = vmul.f32 %v3335, %v3362
        %v3369 = vcombine.low %v3365, %v3366
        %v3370 = vrot.slane %v3369, 6
        %v3372 = vsub.f32 %v3085, %v3370
        %v3373 = vlaneseq
        %v3374 = vshrl.u32 %v3373, 7
        %v3375 = vsub.s32 1, %v3374
        %v3376 = vrot.slane %v3358, %v3375
        %v3377 = vlaneseq
        %v3378 = vshrl.u32 %v3377, 7
        %v3379 = vsub.s32 1, %v3378
        %v3380 = vrot.slane %v3362, %v3379
        %v3381 = vmul.f32 %v3306, %v3376
        %v3382 = vmul.f32 %v3307, %v3380
        %v3384 = vlaneseq
        %v3385 = vshrl.u32 %v3384, 7
        %v3386 = vsub.s32 2, %v3385
        %v3387 = vrot.slane %v3372, %v3386
        %v3388 = vlaneseq
        %v3389 = vshrl.u32 %v3388, 7
        %v3390 = vsub.s32 6, %v3389
        %v3391 = vrot.slane %v3372, %v3390
        %v3394 = vlaneseq
        %v3395 = vshrl.u32 %v3394, 7
        %v3396 = vsub.s32 2, %v3395
        %v3397 = vrot.slane %v3387, %v3396
        %v3398 = vlaneseq
        %v3399 = vshrl.u32 %v3398, 7
        %v3400 = vsub.s32 2, %v3399
        %v3401 = vrot.slane %v3391, %v3400
        %v3402 = vadd.f32 %v3381, %v3397
        %v3403 = vadd.f32 %v3382, %v3401
        %v3404 = vpack.c.bf16 %v3402, %v3402
        %v3405 = vpack.c.bf16 %v3403, %v3403
        %s3406 = scalar_lea.vmem %s331, 1536 [#allocation9]
        %v3407 = vld [vmem:[%s3406] sm:$0xff]
        %v3408 = vld [vmem:[%s3406 + $0x8] sm:$0xff]
        %v3409 = vld [vmem:[%s3406 + $0x10] sm:$0xff]
        %v3410 = vld [vmem:[%s3406 + $0x18] sm:$0xff]
        %v3411 = vld [vmem:[%s3406 + $0x20] sm:$0xff]
        %v3412 = vld [vmem:[%s3406 + $0x28] sm:$0xff]
        %v3413 = vld [vmem:[%s3406 + $0x30] sm:$0xff]
        %v3414 = vld [vmem:[%s3406 + $0x38] sm:$0xff]
        %v3415 = vld [vmem:[%s3406 + $0x40] sm:$0xff]
        %v3416 = vld [vmem:[%s3406 + $0x48] sm:$0xff]
        %v3417 = vld [vmem:[%s3406 + $0x50] sm:$0xff]
        %v3418 = vld [vmem:[%s3406 + $0x58] sm:$0xff]
        %v3419 = vld [vmem:[%s3406 + $0x60] sm:$0xff]
        %v3420 = vld [vmem:[%s3406 + $0x68] sm:$0xff]
        %v3421 = vld [vmem:[%s3406 + $0x70] sm:$0xff]
        %v3422 = vld [vmem:[%s3406 + $0x78] sm:$0xff]
        %v3423 = vld [vmem:[%s3406 + $0x80] sm:$0xff]
        %v3424 = vld [vmem:[%s3406 + $0x88] sm:$0xff]
        %v3425 = vld [vmem:[%s3406 + $0x90] sm:$0xff]
        %v3426 = vld [vmem:[%s3406 + $0x98] sm:$0xff]
        %v3427 = vld [vmem:[%s3406 + $0xa0] sm:$0xff]
        %v3428 = vld [vmem:[%s3406 + $0xa8] sm:$0xff]
        %v3429 = vld [vmem:[%s3406 + $0xb0] sm:$0xff]
        %v3430 = vld [vmem:[%s3406 + $0xb8] sm:$0xff]
        %v3431 = vld [vmem:[%s3406 + $0xc0] sm:$0xff]
        %v3432 = vld [vmem:[%s3406 + $0xc8] sm:$0xff]
        %v3433 = vld [vmem:[%s3406 + $0xd0] sm:$0xff]
        %v3434 = vld [vmem:[%s3406 + $0xd8] sm:$0xff]
        %v3435 = vld [vmem:[%s3406 + $0xe0] sm:$0xff]
        %v3436 = vld [vmem:[%s3406 + $0xe8] sm:$0xff]
        %v3437 = vld [vmem:[%s3406 + $0xf0] sm:$0xff]
        %v3438 = vld [vmem:[%s3406 + $0xf8] sm:$0xff]
        %s3439 = scalar_lea.vmem %s377, 48
        %v3440 = vld [vmem:[%s3439] sm:$0x77]
        %v3442 = vlaneseq
        %v3443 = vshrl.u32 %v3442, 7
        %v3444 = vsub.s32 0, %v3443
        %v3445 = vrot.slane %v3440, %v3444
        %v3446 = vlaneseq
        %v3447 = vshrl.u32 %v3446, 7
        %v3448 = vsub.s32 4, %v3447
        %v3449 = vrot.slane %v3440, %v3448
        %v3452 = vlaneseq
        %v3453 = vshrl.u32 %v3452, 7
        %v3454 = vsub.s32 0, %v3453
        %v3455 = vrot.slane %v3445, %v3454
        %v3456 = vlaneseq
        %v3457 = vshrl.u32 %v3456, 7
        %v3458 = vsub.s32 0, %v3457
        %v3459 = vrot.slane %v3449, %v3458
        %v3492 = vunpack.c.l.b16 %v3407
        %v3493 = vunpack.c.h.b16 %v3407
        %v3494 = vunpack.c.l.b16 %v3408
        %v3495 = vunpack.c.h.b16 %v3408
        %v3496 = vunpack.c.l.b16 %v3409
        %v3497 = vunpack.c.h.b16 %v3409
        %v3498 = vunpack.c.l.b16 %v3410
        %v3499 = vunpack.c.h.b16 %v3410
        %v3500 = vunpack.c.l.b16 %v3411
        %v3501 = vunpack.c.h.b16 %v3411
        %v3502 = vunpack.c.l.b16 %v3412
        %v3503 = vunpack.c.h.b16 %v3412
        %v3504 = vunpack.c.l.b16 %v3413
        %v3505 = vunpack.c.h.b16 %v3413
        %v3506 = vunpack.c.l.b16 %v3414
        %v3507 = vunpack.c.h.b16 %v3414
        %v3508 = vunpack.c.l.b16 %v3415
        %v3509 = vunpack.c.h.b16 %v3415
        %v3510 = vunpack.c.l.b16 %v3416
        %v3511 = vunpack.c.h.b16 %v3416
        %v3512 = vunpack.c.l.b16 %v3417
        %v3513 = vunpack.c.h.b16 %v3417
        %v3514 = vunpack.c.l.b16 %v3418
        %v3515 = vunpack.c.h.b16 %v3418
        %v3516 = vunpack.c.l.b16 %v3419
        %v3517 = vunpack.c.h.b16 %v3419
        %v3518 = vunpack.c.l.b16 %v3420
        %v3519 = vunpack.c.h.b16 %v3420
        %v3520 = vunpack.c.l.b16 %v3421
        %v3521 = vunpack.c.h.b16 %v3421
        %v3522 = vunpack.c.l.b16 %v3422
        %v3523 = vunpack.c.h.b16 %v3422
        %v3524 = vunpack.c.l.b16 %v3423
        %v3525 = vunpack.c.h.b16 %v3423
        %v3526 = vunpack.c.l.b16 %v3424
        %v3527 = vunpack.c.h.b16 %v3424
        %v3528 = vunpack.c.l.b16 %v3425
        %v3529 = vunpack.c.h.b16 %v3425
        %v3530 = vunpack.c.l.b16 %v3426
        %v3531 = vunpack.c.h.b16 %v3426
        %v3532 = vunpack.c.l.b16 %v3427
        %v3533 = vunpack.c.h.b16 %v3427
        %v3534 = vunpack.c.l.b16 %v3428
        %v3535 = vunpack.c.h.b16 %v3428
        %v3536 = vunpack.c.l.b16 %v3429
        %v3537 = vunpack.c.h.b16 %v3429
        %v3538 = vunpack.c.l.b16 %v3430
        %v3539 = vunpack.c.h.b16 %v3430
        %v3540 = vunpack.c.l.b16 %v3431
        %v3541 = vunpack.c.h.b16 %v3431
        %v3542 = vunpack.c.l.b16 %v3432
        %v3543 = vunpack.c.h.b16 %v3432
        %v3544 = vunpack.c.l.b16 %v3433
        %v3545 = vunpack.c.h.b16 %v3433
        %v3546 = vunpack.c.l.b16 %v3434
        %v3547 = vunpack.c.h.b16 %v3434
        %v3548 = vunpack.c.l.b16 %v3435
        %v3549 = vunpack.c.h.b16 %v3435
        %v3550 = vunpack.c.l.b16 %v3436
        %v3551 = vunpack.c.h.b16 %v3436
        %v3552 = vunpack.c.l.b16 %v3437
        %v3553 = vunpack.c.h.b16 %v3437
        %v3554 = vunpack.c.l.b16 %v3438
        %v3555 = vunpack.c.h.b16 %v3438
        %v3556 = vpack.c.b16 %v3494, %v3492
        %v3557 = vpack.c.b16 %v3495, %v3493
        %v3558 = vpack.c.b16 %v3498, %v3496
        %v3559 = vpack.c.b16 %v3499, %v3497
        %v3560 = vpack.c.b16 %v3502, %v3500
        %v3561 = vpack.c.b16 %v3503, %v3501
        %v3562 = vpack.c.b16 %v3506, %v3504
        %v3563 = vpack.c.b16 %v3507, %v3505
        %v3564 = vpack.c.b16 %v3510, %v3508
        %v3565 = vpack.c.b16 %v3511, %v3509
        %v3566 = vpack.c.b16 %v3514, %v3512
        %v3567 = vpack.c.b16 %v3515, %v3513
        %v3568 = vpack.c.b16 %v3518, %v3516
        %v3569 = vpack.c.b16 %v3519, %v3517
        %v3570 = vpack.c.b16 %v3522, %v3520
        %v3571 = vpack.c.b16 %v3523, %v3521
        %v3572 = vpack.c.b16 %v3526, %v3524
        %v3573 = vpack.c.b16 %v3527, %v3525
        %v3574 = vpack.c.b16 %v3530, %v3528
        %v3575 = vpack.c.b16 %v3531, %v3529
        %v3576 = vpack.c.b16 %v3534, %v3532
        %v3577 = vpack.c.b16 %v3535, %v3533
        %v3578 = vpack.c.b16 %v3538, %v3536
        %v3579 = vpack.c.b16 %v3539, %v3537
        %v3580 = vpack.c.b16 %v3542, %v3540
        %v3581 = vpack.c.b16 %v3543, %v3541
        %v3582 = vpack.c.b16 %v3546, %v3544
        %v3583 = vpack.c.b16 %v3547, %v3545
        %v3584 = vpack.c.b16 %v3550, %v3548
        %v3585 = vpack.c.b16 %v3551, %v3549
        %v3586 = vpack.c.b16 %v3554, %v3552
        %v3587 = vpack.c.b16 %v3555, %v3553
        %3620 = vmatprep.subr.bf16.mxu0 %v3557
        %3621 = vmatpush1.bf16.msra.mxu0 %v3556
        %3622 = vmatprep.subr.bf16.mxu0 %v3559
        %3623 = vmatpush1.bf16.msra.mxu0 %v3558
        %3624 = vmatprep.subr.bf16.mxu0 %v3561
        %3625 = vmatpush1.bf16.msra.mxu0 %v3560
        %3626 = vmatprep.subr.bf16.mxu0 %v3563
        %3627 = vmatpush1.bf16.msra.mxu0 %v3562
        %3628 = vmatprep.subr.bf16.mxu0 %v3565
        %3629 = vmatpush1.bf16.msra.mxu0 %v3564
        %3630 = vmatprep.subr.bf16.mxu0 %v3567
        %3631 = vmatpush1.bf16.msra.mxu0 %v3566
        %3632 = vmatprep.subr.bf16.mxu0 %v3569
        %3633 = vmatpush1.bf16.msra.mxu0 %v3568
        %3634 = vmatprep.subr.bf16.mxu0 %v3571
        %3635 = vmatpush1.bf16.msra.mxu0 %v3570
        %3636 = vmatprep.subr.bf16.mxu0 %v3573
        %3637 = vmatpush1.bf16.msra.mxu0 %v3572
        %3638 = vmatprep.subr.bf16.mxu0 %v3575
        %3639 = vmatpush1.bf16.msra.mxu0 %v3574
        %3640 = vmatprep.subr.bf16.mxu0 %v3577
        %3641 = vmatpush1.bf16.msra.mxu0 %v3576
        %3642 = vmatprep.subr.bf16.mxu0 %v3579
        %3643 = vmatpush1.bf16.msra.mxu0 %v3578
        %3644 = vmatprep.subr.bf16.mxu0 %v3581
        %3645 = vmatpush1.bf16.msra.mxu0 %v3580
        %3646 = vmatprep.subr.bf16.mxu0 %v3583
        %3647 = vmatpush1.bf16.msra.mxu0 %v3582
        %3648 = vmatprep.subr.bf16.mxu0 %v3585
        %3649 = vmatpush1.bf16.msra.mxu0 %v3584
        %3650 = vmatprep.subr.bf16.mxu0 %v3587
        %3651 = vmatpush1.bf16.msra.mxu0 %v3586
        %3652 = vmatprep.mubr.bf16.mxu0 %v3405
        %3653 = vmatmul.mubr.bf16.gmra.mrb[0].mxu0 %v3404
        %v3654 = vpop.f32.mrb[0].mxu0
        %v3655 = vadd.f32 %v3455, %v3654
        %v3656 = vpop.f32.mrb[0].mxu0
        %v3657 = vadd.f32 %v3459, %v3656
        %v3658 = vpop.f32.mrb[0].mxu0
        %v3659 = vpop.f32.mrb[0].mxu0
        %3660 = vdwg.mxu0
        %v3661 = vmax.f32 %v3655, 0.0
        %v3662 = vmax.f32 %v3657, 0.0
        %v3663 = vrot.slane %v3661, 4
        %v3664 = vadd.f32 %v3661, %v3663
        %v3665 = vrot.slane %v3664, 2
        %v3666 = vadd.f32 %v3664, %v3665
        %v3667 = vrot.slane %v3666, 1
        %v3668 = vadd.f32 %v3666, %v3667
        %v3669 = vrot.slane %v3662, 4
        %v3670 = vadd.f32 %v3662, %v3669
        %v3671 = vrot.slane %v3670, 2
        %v3672 = vadd.f32 %v3670, %v3671
        %v3673 = vrot.slane %v3672, 1
        %v3674 = vadd.f32 %v3672, %v3673
        %v3675 = vmul.f32 %v3661, %v3661
        %v3676 = vmul.f32 %v3662, %v3662
        %v3677 = vrot.slane %v3675, 4
        %v3678 = vadd.f32 %v3675, %v3677
        %v3679 = vrot.slane %v3678, 2
        %v3680 = vadd.f32 %v3678, %v3679
        %v3681 = vrot.slane %v3680, 1
        %v3682 = vadd.f32 %v3680, %v3681
        %v3683 = vrot.slane %v3676, 4
        %v3684 = vadd.f32 %v3676, %v3683
        %v3685 = vrot.slane %v3684, 2
        %v3686 = vadd.f32 %v3684, %v3685
        %v3687 = vrot.slane %v3686, 1
        %v3688 = vadd.f32 %v3686, %v3687
        %v3689 = vmul.f32 %v3668, 0.125
        %v3690 = vmul.f32 %v3674, 0.125
        %v3691 = vmul.f32 %v3682, 0.125
        %v3692 = vmul.f32 %v3688, 0.125
        %v3693 = vmul.f32 %v3689, %v3689
        %v3694 = vmul.f32 %v3690, %v3690
        %v3695 = vsub.f32 %v3691, %v3693
        %v3696 = vsub.f32 %v3692, %v3694
        %v3697 = vmax.f32 %v3695, 0.0
        %v3698 = vmax.f32 %v3696, 0.0
        %v3699 = vadd.f32 %v3697, 1e-05
        %v3700 = vadd.f32 %v3698, 1e-05
        %v3701 = vrsqrt.pop %v3699
        %v3702 = vrsqrt.pop %v3700
        %v3705 = vcombine.low %v3701, %v3702
        %v3706 = vrot.slane %v3705, 7
        %v3708 = vmul.f32 %v3440, %v3706
        %v3710 = vlaneseq
        %v3711 = vshrl.u32 %v3710, 7
        %v3712 = vsub.s32 1, %v3711
        %v3713 = vrot.slane %v3708, %v3712
        %v3714 = vlaneseq
        %v3715 = vshrl.u32 %v3714, 7
        %v3716 = vsub.s32 5, %v3715
        %v3717 = vrot.slane %v3708, %v3716
        %v3720 = vmul.f32 %v3689, %v3713
        %v3721 = vmul.f32 %v3690, %v3717
        %v3724 = vcombine.low %v3720, %v3721
        %v3725 = vrot.slane %v3724, 6
        %v3727 = vsub.f32 %v3440, %v3725
        %v3728 = vlaneseq
        %v3729 = vshrl.u32 %v3728, 7
        %v3730 = vsub.s32 1, %v3729
        %v3731 = vrot.slane %v3713, %v3730
        %v3732 = vlaneseq
        %v3733 = vshrl.u32 %v3732, 7
        %v3734 = vsub.s32 1, %v3733
        %v3735 = vrot.slane %v3717, %v3734
        %v3736 = vmul.f32 %v3661, %v3731
        %v3737 = vmul.f32 %v3662, %v3735
        %v3739 = vlaneseq
        %v3740 = vshrl.u32 %v3739, 7
        %v3741 = vsub.s32 2, %v3740
        %v3742 = vrot.slane %v3727, %v3741
        %v3743 = vlaneseq
        %v3744 = vshrl.u32 %v3743, 7
        %v3745 = vsub.s32 6, %v3744
        %v3746 = vrot.slane %v3727, %v3745
        %v3749 = vlaneseq
        %v3750 = vshrl.u32 %v3749, 7
        %v3751 = vsub.s32 2, %v3750
        %v3752 = vrot.slane %v3742, %v3751
        %v3753 = vlaneseq
        %v3754 = vshrl.u32 %v3753, 7
        %v3755 = vsub.s32 2, %v3754
        %v3756 = vrot.slane %v3746, %v3755
        %v3757 = vadd.f32 %v3736, %v3752
        %v3758 = vadd.f32 %v3737, %v3756
        %v3759 = vpack.c.bf16 %v3757, %v3757
        %v3760 = vpack.c.bf16 %v3758, %v3758
        %s3761 = scalar_lea.vmem %s331, 1792 [#allocation9]
        %v3762 = vld [vmem:[%s3761] sm:$0xff]
        %v3763 = vld [vmem:[%s3761 + $0x8] sm:$0xff]
        %v3764 = vld [vmem:[%s3761 + $0x10] sm:$0xff]
        %v3765 = vld [vmem:[%s3761 + $0x18] sm:$0xff]
        %v3766 = vld [vmem:[%s3761 + $0x20] sm:$0xff]
        %v3767 = vld [vmem:[%s3761 + $0x28] sm:$0xff]
        %v3768 = vld [vmem:[%s3761 + $0x30] sm:$0xff]
        %v3769 = vld [vmem:[%s3761 + $0x38] sm:$0xff]
        %v3770 = vld [vmem:[%s3761 + $0x40] sm:$0xff]
        %v3771 = vld [vmem:[%s3761 + $0x48] sm:$0xff]
        %v3772 = vld [vmem:[%s3761 + $0x50] sm:$0xff]
        %v3773 = vld [vmem:[%s3761 + $0x58] sm:$0xff]
        %v3774 = vld [vmem:[%s3761 + $0x60] sm:$0xff]
        %v3775 = vld [vmem:[%s3761 + $0x68] sm:$0xff]
        %v3776 = vld [vmem:[%s3761 + $0x70] sm:$0xff]
        %v3777 = vld [vmem:[%s3761 + $0x78] sm:$0xff]
        %v3778 = vld [vmem:[%s3761 + $0x80] sm:$0xff]
        %v3779 = vld [vmem:[%s3761 + $0x88] sm:$0xff]
        %v3780 = vld [vmem:[%s3761 + $0x90] sm:$0xff]
        %v3781 = vld [vmem:[%s3761 + $0x98] sm:$0xff]
        %v3782 = vld [vmem:[%s3761 + $0xa0] sm:$0xff]
        %v3783 = vld [vmem:[%s3761 + $0xa8] sm:$0xff]
        %v3784 = vld [vmem:[%s3761 + $0xb0] sm:$0xff]
        %v3785 = vld [vmem:[%s3761 + $0xb8] sm:$0xff]
        %v3786 = vld [vmem:[%s3761 + $0xc0] sm:$0xff]
        %v3787 = vld [vmem:[%s3761 + $0xc8] sm:$0xff]
        %v3788 = vld [vmem:[%s3761 + $0xd0] sm:$0xff]
        %v3789 = vld [vmem:[%s3761 + $0xd8] sm:$0xff]
        %v3790 = vld [vmem:[%s3761 + $0xe0] sm:$0xff]
        %v3791 = vld [vmem:[%s3761 + $0xe8] sm:$0xff]
        %v3792 = vld [vmem:[%s3761 + $0xf0] sm:$0xff]
        %v3793 = vld [vmem:[%s3761 + $0xf8] sm:$0xff]
        %s3794 = scalar_lea.vmem %s377, 56
        %v3795 = vld [vmem:[%s3794] sm:$0x77]
        %v3797 = vlaneseq
        %v3798 = vshrl.u32 %v3797, 7
        %v3799 = vsub.s32 0, %v3798
        %v3800 = vrot.slane %v3795, %v3799
        %v3801 = vlaneseq
        %v3802 = vshrl.u32 %v3801, 7
        %v3803 = vsub.s32 4, %v3802
        %v3804 = vrot.slane %v3795, %v3803
        %v3807 = vlaneseq
        %v3808 = vshrl.u32 %v3807, 7
        %v3809 = vsub.s32 0, %v3808
        %v3810 = vrot.slane %v3800, %v3809
        %v3811 = vlaneseq
        %v3812 = vshrl.u32 %v3811, 7
        %v3813 = vsub.s32 0, %v3812
        %v3814 = vrot.slane %v3804, %v3813
        %v3847 = vunpack.c.l.b16 %v3762
        %v3848 = vunpack.c.h.b16 %v3762
        %v3849 = vunpack.c.l.b16 %v3763
        %v3850 = vunpack.c.h.b16 %v3763
        %v3851 = vunpack.c.l.b16 %v3764
        %v3852 = vunpack.c.h.b16 %v3764
        %v3853 = vunpack.c.l.b16 %v3765
        %v3854 = vunpack.c.h.b16 %v3765
        %v3855 = vunpack.c.l.b16 %v3766
        %v3856 = vunpack.c.h.b16 %v3766
        %v3857 = vunpack.c.l.b16 %v3767
        %v3858 = vunpack.c.h.b16 %v3767
        %v3859 = vunpack.c.l.b16 %v3768
        %v3860 = vunpack.c.h.b16 %v3768
        %v3861 = vunpack.c.l.b16 %v3769
        %v3862 = vunpack.c.h.b16 %v3769
        %v3863 = vunpack.c.l.b16 %v3770
        %v3864 = vunpack.c.h.b16 %v3770
        %v3865 = vunpack.c.l.b16 %v3771
        %v3866 = vunpack.c.h.b16 %v3771
        %v3867 = vunpack.c.l.b16 %v3772
        %v3868 = vunpack.c.h.b16 %v3772
        %v3869 = vunpack.c.l.b16 %v3773
        %v3870 = vunpack.c.h.b16 %v3773
        %v3871 = vunpack.c.l.b16 %v3774
        %v3872 = vunpack.c.h.b16 %v3774
        %v3873 = vunpack.c.l.b16 %v3775
        %v3874 = vunpack.c.h.b16 %v3775
        %v3875 = vunpack.c.l.b16 %v3776
        %v3876 = vunpack.c.h.b16 %v3776
        %v3877 = vunpack.c.l.b16 %v3777
        %v3878 = vunpack.c.h.b16 %v3777
        %v3879 = vunpack.c.l.b16 %v3778
        %v3880 = vunpack.c.h.b16 %v3778
        %v3881 = vunpack.c.l.b16 %v3779
        %v3882 = vunpack.c.h.b16 %v3779
        %v3883 = vunpack.c.l.b16 %v3780
        %v3884 = vunpack.c.h.b16 %v3780
        %v3885 = vunpack.c.l.b16 %v3781
        %v3886 = vunpack.c.h.b16 %v3781
        %v3887 = vunpack.c.l.b16 %v3782
        %v3888 = vunpack.c.h.b16 %v3782
        %v3889 = vunpack.c.l.b16 %v3783
        %v3890 = vunpack.c.h.b16 %v3783
        %v3891 = vunpack.c.l.b16 %v3784
        %v3892 = vunpack.c.h.b16 %v3784
        %v3893 = vunpack.c.l.b16 %v3785
        %v3894 = vunpack.c.h.b16 %v3785
        %v3895 = vunpack.c.l.b16 %v3786
        %v3896 = vunpack.c.h.b16 %v3786
        %v3897 = vunpack.c.l.b16 %v3787
        %v3898 = vunpack.c.h.b16 %v3787
        %v3899 = vunpack.c.l.b16 %v3788
        %v3900 = vunpack.c.h.b16 %v3788
        %v3901 = vunpack.c.l.b16 %v3789
        %v3902 = vunpack.c.h.b16 %v3789
        %v3903 = vunpack.c.l.b16 %v3790
        %v3904 = vunpack.c.h.b16 %v3790
        %v3905 = vunpack.c.l.b16 %v3791
        %v3906 = vunpack.c.h.b16 %v3791
        %v3907 = vunpack.c.l.b16 %v3792
        %v3908 = vunpack.c.h.b16 %v3792
        %v3909 = vunpack.c.l.b16 %v3793
        %v3910 = vunpack.c.h.b16 %v3793
        %v3911 = vpack.c.b16 %v3849, %v3847
        %v3912 = vpack.c.b16 %v3850, %v3848
        %v3913 = vpack.c.b16 %v3853, %v3851
        %v3914 = vpack.c.b16 %v3854, %v3852
        %v3915 = vpack.c.b16 %v3857, %v3855
        %v3916 = vpack.c.b16 %v3858, %v3856
        %v3917 = vpack.c.b16 %v3861, %v3859
        %v3918 = vpack.c.b16 %v3862, %v3860
        %v3919 = vpack.c.b16 %v3865, %v3863
        %v3920 = vpack.c.b16 %v3866, %v3864
        %v3921 = vpack.c.b16 %v3869, %v3867
        %v3922 = vpack.c.b16 %v3870, %v3868
        %v3923 = vpack.c.b16 %v3873, %v3871
        %v3924 = vpack.c.b16 %v3874, %v3872
        %v3925 = vpack.c.b16 %v3877, %v3875
        %v3926 = vpack.c.b16 %v3878, %v3876
        %v3927 = vpack.c.b16 %v3881, %v3879
        %v3928 = vpack.c.b16 %v3882, %v3880
        %v3929 = vpack.c.b16 %v3885, %v3883
        %v3930 = vpack.c.b16 %v3886, %v3884
        %v3931 = vpack.c.b16 %v3889, %v3887
        %v3932 = vpack.c.b16 %v3890, %v3888
        %v3933 = vpack.c.b16 %v3893, %v3891
        %v3934 = vpack.c.b16 %v3894, %v3892
        %v3935 = vpack.c.b16 %v3897, %v3895
        %v3936 = vpack.c.b16 %v3898, %v3896
        %v3937 = vpack.c.b16 %v3901, %v3899
        %v3938 = vpack.c.b16 %v3902, %v3900
        %v3939 = vpack.c.b16 %v3905, %v3903
        %v3940 = vpack.c.b16 %v3906, %v3904
        %v3941 = vpack.c.b16 %v3909, %v3907
        %v3942 = vpack.c.b16 %v3910, %v3908
        %3975 = vmatprep.subr.bf16.mxu0 %v3912
        %3976 = vmatpush1.bf16.msra.mxu0 %v3911
        %3977 = vmatprep.subr.bf16.mxu0 %v3914
        %3978 = vmatpush1.bf16.msra.mxu0 %v3913
        %3979 = vmatprep.subr.bf16.mxu0 %v3916
        %3980 = vmatpush1.bf16.msra.mxu0 %v3915
        %3981 = vmatprep.subr.bf16.mxu0 %v3918
        %3982 = vmatpush1.bf16.msra.mxu0 %v3917
        %3983 = vmatprep.subr.bf16.mxu0 %v3920
        %3984 = vmatpush1.bf16.msra.mxu0 %v3919
        %3985 = vmatprep.subr.bf16.mxu0 %v3922
        %3986 = vmatpush1.bf16.msra.mxu0 %v3921
        %3987 = vmatprep.subr.bf16.mxu0 %v3924
        %3988 = vmatpush1.bf16.msra.mxu0 %v3923
        %3989 = vmatprep.subr.bf16.mxu0 %v3926
        %3990 = vmatpush1.bf16.msra.mxu0 %v3925
        %3991 = vmatprep.subr.bf16.mxu0 %v3928
        %3992 = vmatpush1.bf16.msra.mxu0 %v3927
        %3993 = vmatprep.subr.bf16.mxu0 %v3930
        %3994 = vmatpush1.bf16.msra.mxu0 %v3929
        %3995 = vmatprep.subr.bf16.mxu0 %v3932
        %3996 = vmatpush1.bf16.msra.mxu0 %v3931
        %3997 = vmatprep.subr.bf16.mxu0 %v3934
        %3998 = vmatpush1.bf16.msra.mxu0 %v3933
        %3999 = vmatprep.subr.bf16.mxu0 %v3936
        %4000 = vmatpush1.bf16.msra.mxu0 %v3935
        %4001 = vmatprep.subr.bf16.mxu0 %v3938
        %4002 = vmatpush1.bf16.msra.mxu0 %v3937
        %4003 = vmatprep.subr.bf16.mxu0 %v3940
        %4004 = vmatpush1.bf16.msra.mxu0 %v3939
        %4005 = vmatprep.subr.bf16.mxu0 %v3942
        %4006 = vmatpush1.bf16.msra.mxu0 %v3941
        %4007 = vmatprep.mubr.bf16.mxu0 %v3760
        %4008 = vmatmul.mubr.bf16.gmra.mrb[0].mxu0 %v3759
        %v4009 = vpop.f32.mrb[0].mxu0
        %v4010 = vadd.f32 %v3810, %v4009
        %v4011 = vpop.f32.mrb[0].mxu0
        %v4012 = vadd.f32 %v3814, %v4011
        %v4013 = vpop.f32.mrb[0].mxu0
        %v4014 = vpop.f32.mrb[0].mxu0
        %4015 = vdwg.mxu0
        %v4016 = vmax.f32 %v4010, 0.0
        %v4017 = vmax.f32 %v4012, 0.0
        %v4018 = vrot.slane %v4016, 4
        %v4019 = vadd.f32 %v4016, %v4018
        %v4020 = vrot.slane %v4019, 2
        %v4021 = vadd.f32 %v4019, %v4020
        %v4022 = vrot.slane %v4021, 1
        %v4023 = vadd.f32 %v4021, %v4022
        %v4024 = vrot.slane %v4017, 4
        %v4025 = vadd.f32 %v4017, %v4024
        %v4026 = vrot.slane %v4025, 2
        %v4027 = vadd.f32 %v4025, %v4026
        %v4028 = vrot.slane %v4027, 1
        %v4029 = vadd.f32 %v4027, %v4028
        %v4030 = vmul.f32 %v4016, %v4016
        %v4031 = vmul.f32 %v4017, %v4017
        %v4032 = vrot.slane %v4030, 4
        %v4033 = vadd.f32 %v4030, %v4032
        %v4034 = vrot.slane %v4033, 2
        %v4035 = vadd.f32 %v4033, %v4034
        %v4036 = vrot.slane %v4035, 1
        %v4037 = vadd.f32 %v4035, %v4036
        %v4038 = vrot.slane %v4031, 4
        %v4039 = vadd.f32 %v4031, %v4038
        %v4040 = vrot.slane %v4039, 2
        %v4041 = vadd.f32 %v4039, %v4040
        %v4042 = vrot.slane %v4041, 1
        %v4043 = vadd.f32 %v4041, %v4042
        %v4044 = vmul.f32 %v4023, 0.125
        %v4045 = vmul.f32 %v4029, 0.125
        %v4046 = vmul.f32 %v4037, 0.125
        %v4047 = vmul.f32 %v4043, 0.125
        %v4048 = vmul.f32 %v4044, %v4044
        %v4049 = vmul.f32 %v4045, %v4045
        %v4050 = vsub.f32 %v4046, %v4048
        %v4051 = vsub.f32 %v4047, %v4049
        %v4052 = vmax.f32 %v4050, 0.0
        %v4053 = vmax.f32 %v4051, 0.0
        %v4054 = vadd.f32 %v4052, 1e-05
        %v4055 = vadd.f32 %v4053, 1e-05
        %v4056 = vrsqrt.pop %v4054
        %v4057 = vrsqrt.pop %v4055
        %v4060 = vcombine.low %v4056, %v4057
        %v4061 = vrot.slane %v4060, 7
        %v4063 = vmul.f32 %v3795, %v4061
        %v4065 = vlaneseq
        %v4066 = vshrl.u32 %v4065, 7
        %v4067 = vsub.s32 1, %v4066
        %v4068 = vrot.slane %v4063, %v4067
        %v4069 = vlaneseq
        %v4070 = vshrl.u32 %v4069, 7
        %v4071 = vsub.s32 5, %v4070
        %v4072 = vrot.slane %v4063, %v4071
        %v4075 = vmul.f32 %v4044, %v4068
        %v4076 = vmul.f32 %v4045, %v4072
        %v4079 = vcombine.low %v4075, %v4076
        %v4080 = vrot.slane %v4079, 6
        %v4082 = vsub.f32 %v3795, %v4080
        %v4083 = vlaneseq
        %v4084 = vshrl.u32 %v4083, 7
        %v4085 = vsub.s32 1, %v4084
        %v4086 = vrot.slane %v4068, %v4085
        %v4087 = vlaneseq
        %v4088 = vshrl.u32 %v4087, 7
        %v4089 = vsub.s32 1, %v4088
        %v4090 = vrot.slane %v4072, %v4089
        %v4091 = vmul.f32 %v4016, %v4086
        %v4092 = vmul.f32 %v4017, %v4090
        %v4094 = vlaneseq
        %v4095 = vshrl.u32 %v4094, 7
        %v4096 = vsub.s32 2, %v4095
        %v4097 = vrot.slane %v4082, %v4096
        %v4098 = vlaneseq
        %v4099 = vshrl.u32 %v4098, 7
        %v4100 = vsub.s32 6, %v4099
        %v4101 = vrot.slane %v4082, %v4100
        %v4104 = vlaneseq
        %v4105 = vshrl.u32 %v4104, 7
        %v4106 = vsub.s32 2, %v4105
        %v4107 = vrot.slane %v4097, %v4106
        %v4108 = vlaneseq
        %v4109 = vshrl.u32 %v4108, 7
        %v4110 = vsub.s32 2, %v4109
        %v4111 = vrot.slane %v4101, %v4110
        %v4112 = vadd.f32 %v4091, %v4107
        %v4113 = vadd.f32 %v4092, %v4111
        %v4114 = vpack.c.bf16 %v4112, %v4112
        %v4115 = vpack.c.bf16 %v4113, %v4113
        %s4116 = scalar_lea.vmem %s331, 2048 [#allocation9]
        %v4117 = vld [vmem:[%s4116] sm:$0xff]
        %v4118 = vld [vmem:[%s4116 + $0x8] sm:$0xff]
        %v4119 = vld [vmem:[%s4116 + $0x10] sm:$0xff]
        %v4120 = vld [vmem:[%s4116 + $0x18] sm:$0xff]
        %v4121 = vld [vmem:[%s4116 + $0x20] sm:$0xff]
        %v4122 = vld [vmem:[%s4116 + $0x28] sm:$0xff]
        %v4123 = vld [vmem:[%s4116 + $0x30] sm:$0xff]
        %v4124 = vld [vmem:[%s4116 + $0x38] sm:$0xff]
        %v4125 = vld [vmem:[%s4116 + $0x40] sm:$0xff]
        %v4126 = vld [vmem:[%s4116 + $0x48] sm:$0xff]
        %v4127 = vld [vmem:[%s4116 + $0x50] sm:$0xff]
        %v4128 = vld [vmem:[%s4116 + $0x58] sm:$0xff]
        %v4129 = vld [vmem:[%s4116 + $0x60] sm:$0xff]
        %v4130 = vld [vmem:[%s4116 + $0x68] sm:$0xff]
        %v4131 = vld [vmem:[%s4116 + $0x70] sm:$0xff]
        %v4132 = vld [vmem:[%s4116 + $0x78] sm:$0xff]
        %v4133 = vld [vmem:[%s4116 + $0x80] sm:$0xff]
        %v4134 = vld [vmem:[%s4116 + $0x88] sm:$0xff]
        %v4135 = vld [vmem:[%s4116 + $0x90] sm:$0xff]
        %v4136 = vld [vmem:[%s4116 + $0x98] sm:$0xff]
        %v4137 = vld [vmem:[%s4116 + $0xa0] sm:$0xff]
        %v4138 = vld [vmem:[%s4116 + $0xa8] sm:$0xff]
        %v4139 = vld [vmem:[%s4116 + $0xb0] sm:$0xff]
        %v4140 = vld [vmem:[%s4116 + $0xb8] sm:$0xff]
        %v4141 = vld [vmem:[%s4116 + $0xc0] sm:$0xff]
        %v4142 = vld [vmem:[%s4116 + $0xc8] sm:$0xff]
        %v4143 = vld [vmem:[%s4116 + $0xd0] sm:$0xff]
        %v4144 = vld [vmem:[%s4116 + $0xd8] sm:$0xff]
        %v4145 = vld [vmem:[%s4116 + $0xe0] sm:$0xff]
        %v4146 = vld [vmem:[%s4116 + $0xe8] sm:$0xff]
        %v4147 = vld [vmem:[%s4116 + $0xf0] sm:$0xff]
        %v4148 = vld [vmem:[%s4116 + $0xf8] sm:$0xff]
        %s4149 = scalar_lea.vmem %s377, 64
        %v4150 = vld [vmem:[%s4149] sm:$0x77]
        %v4152 = vlaneseq
        %v4153 = vshrl.u32 %v4152, 7
        %v4154 = vsub.s32 0, %v4153
        %v4155 = vrot.slane %v4150, %v4154
        %v4156 = vlaneseq
        %v4157 = vshrl.u32 %v4156, 7
        %v4158 = vsub.s32 4, %v4157
        %v4159 = vrot.slane %v4150, %v4158
        %v4162 = vlaneseq
        %v4163 = vshrl.u32 %v4162, 7
        %v4164 = vsub.s32 0, %v4163
        %v4165 = vrot.slane %v4155, %v4164
        %v4166 = vlaneseq
        %v4167 = vshrl.u32 %v4166, 7
        %v4168 = vsub.s32 0, %v4167
        %v4169 = vrot.slane %v4159, %v4168
        %v4202 = vunpack.c.l.b16 %v4117
        %v4203 = vunpack.c.h.b16 %v4117
        %v4204 = vunpack.c.l.b16 %v4118
        %v4205 = vunpack.c.h.b16 %v4118
        %v4206 = vunpack.c.l.b16 %v4119
        %v4207 = vunpack.c.h.b16 %v4119
        %v4208 = vunpack.c.l.b16 %v4120
        %v4209 = vunpack.c.h.b16 %v4120
        %v4210 = vunpack.c.l.b16 %v4121
        %v4211 = vunpack.c.h.b16 %v4121
        %v4212 = vunpack.c.l.b16 %v4122
        %v4213 = vunpack.c.h.b16 %v4122
        %v4214 = vunpack.c.l.b16 %v4123
        %v4215 = vunpack.c.h.b16 %v4123
        %v4216 = vunpack.c.l.b16 %v4124
        %v4217 = vunpack.c.h.b16 %v4124
        %v4218 = vunpack.c.l.b16 %v4125
        %v4219 = vunpack.c.h.b16 %v4125
        %v4220 = vunpack.c.l.b16 %v4126
        %v4221 = vunpack.c.h.b16 %v4126
        %v4222 = vunpack.c.l.b16 %v4127
        %v4223 = vunpack.c.h.b16 %v4127
        %v4224 = vunpack.c.l.b16 %v4128
        %v4225 = vunpack.c.h.b16 %v4128
        %v4226 = vunpack.c.l.b16 %v4129
        %v4227 = vunpack.c.h.b16 %v4129
        %v4228 = vunpack.c.l.b16 %v4130
        %v4229 = vunpack.c.h.b16 %v4130
        %v4230 = vunpack.c.l.b16 %v4131
        %v4231 = vunpack.c.h.b16 %v4131
        %v4232 = vunpack.c.l.b16 %v4132
        %v4233 = vunpack.c.h.b16 %v4132
        %v4234 = vunpack.c.l.b16 %v4133
        %v4235 = vunpack.c.h.b16 %v4133
        %v4236 = vunpack.c.l.b16 %v4134
        %v4237 = vunpack.c.h.b16 %v4134
        %v4238 = vunpack.c.l.b16 %v4135
        %v4239 = vunpack.c.h.b16 %v4135
        %v4240 = vunpack.c.l.b16 %v4136
        %v4241 = vunpack.c.h.b16 %v4136
        %v4242 = vunpack.c.l.b16 %v4137
        %v4243 = vunpack.c.h.b16 %v4137
        %v4244 = vunpack.c.l.b16 %v4138
        %v4245 = vunpack.c.h.b16 %v4138
        %v4246 = vunpack.c.l.b16 %v4139
        %v4247 = vunpack.c.h.b16 %v4139
        %v4248 = vunpack.c.l.b16 %v4140
        %v4249 = vunpack.c.h.b16 %v4140
        %v4250 = vunpack.c.l.b16 %v4141
        %v4251 = vunpack.c.h.b16 %v4141
        %v4252 = vunpack.c.l.b16 %v4142
        %v4253 = vunpack.c.h.b16 %v4142
        %v4254 = vunpack.c.l.b16 %v4143
        %v4255 = vunpack.c.h.b16 %v4143
        %v4256 = vunpack.c.l.b16 %v4144
        %v4257 = vunpack.c.h.b16 %v4144
        %v4258 = vunpack.c.l.b16 %v4145
        %v4259 = vunpack.c.h.b16 %v4145
        %v4260 = vunpack.c.l.b16 %v4146
        %v4261 = vunpack.c.h.b16 %v4146
        %v4262 = vunpack.c.l.b16 %v4147
        %v4263 = vunpack.c.h.b16 %v4147
        %v4264 = vunpack.c.l.b16 %v4148
        %v4265 = vunpack.c.h.b16 %v4148
        %v4266 = vpack.c.b16 %v4204, %v4202
        %v4267 = vpack.c.b16 %v4205, %v4203
        %v4268 = vpack.c.b16 %v4208, %v4206
        %v4269 = vpack.c.b16 %v4209, %v4207
        %v4270 = vpack.c.b16 %v4212, %v4210
        %v4271 = vpack.c.b16 %v4213, %v4211
        %v4272 = vpack.c.b16 %v4216, %v4214
        %v4273 = vpack.c.b16 %v4217, %v4215
        %v4274 = vpack.c.b16 %v4220, %v4218
        %v4275 = vpack.c.b16 %v4221, %v4219
        %v4276 = vpack.c.b16 %v4224, %v4222
        %v4277 = vpack.c.b16 %v4225, %v4223
        %v4278 = vpack.c.b16 %v4228, %v4226
        %v4279 = vpack.c.b16 %v4229, %v4227
        %v4280 = vpack.c.b16 %v4232, %v4230
        %v4281 = vpack.c.b16 %v4233, %v4231
        %v4282 = vpack.c.b16 %v4236, %v4234
        %v4283 = vpack.c.b16 %v4237, %v4235
        %v4284 = vpack.c.b16 %v4240, %v4238
        %v4285 = vpack.c.b16 %v4241, %v4239
        %v4286 = vpack.c.b16 %v4244, %v4242
        %v4287 = vpack.c.b16 %v4245, %v4243
        %v4288 = vpack.c.b16 %v4248, %v4246
        %v4289 = vpack.c.b16 %v4249, %v4247
        %v4290 = vpack.c.b16 %v4252, %v4250
        %v4291 = vpack.c.b16 %v4253, %v4251
        %v4292 = vpack.c.b16 %v4256, %v4254
        %v4293 = vpack.c.b16 %v4257, %v4255
        %v4294 = vpack.c.b16 %v4260, %v4258
        %v4295 = vpack.c.b16 %v4261, %v4259
        %v4296 = vpack.c.b16 %v4264, %v4262
        %v4297 = vpack.c.b16 %v4265, %v4263
        %4330 = vmatprep.subr.bf16.mxu0 %v4267
        %4331 = vmatpush1.bf16.msra.mxu0 %v4266
        %4332 = vmatprep.subr.bf16.mxu0 %v4269
        %4333 = vmatpush1.bf16.msra.mxu0 %v4268
        %4334 = vmatprep.subr.bf16.mxu0 %v4271
        %4335 = vmatpush1.bf16.msra.mxu0 %v4270
        %4336 = vmatprep.subr.bf16.mxu0 %v4273
        %4337 = vmatpush1.bf16.msra.mxu0 %v4272
        %4338 = vmatprep.subr.bf16.mxu0 %v4275
        %4339 = vmatpush1.bf16.msra.mxu0 %v4274
        %4340 = vmatprep.subr.bf16.mxu0 %v4277
        %4341 = vmatpush1.bf16.msra.mxu0 %v4276
        %4342 = vmatprep.subr.bf16.mxu0 %v4279
        %4343 = vmatpush1.bf16.msra.mxu0 %v4278
        %4344 = vmatprep.subr.bf16.mxu0 %v4281
        %4345 = vmatpush1.bf16.msra.mxu0 %v4280
        %4346 = vmatprep.subr.bf16.mxu0 %v4283
        %4347 = vmatpush1.bf16.msra.mxu0 %v4282
        %4348 = vmatprep.subr.bf16.mxu0 %v4285
        %4349 = vmatpush1.bf16.msra.mxu0 %v4284
        %4350 = vmatprep.subr.bf16.mxu0 %v4287
        %4351 = vmatpush1.bf16.msra.mxu0 %v4286
        %4352 = vmatprep.subr.bf16.mxu0 %v4289
        %4353 = vmatpush1.bf16.msra.mxu0 %v4288
        %4354 = vmatprep.subr.bf16.mxu0 %v4291
        %4355 = vmatpush1.bf16.msra.mxu0 %v4290
        %4356 = vmatprep.subr.bf16.mxu0 %v4293
        %4357 = vmatpush1.bf16.msra.mxu0 %v4292
        %4358 = vmatprep.subr.bf16.mxu0 %v4295
        %4359 = vmatpush1.bf16.msra.mxu0 %v4294
        %4360 = vmatprep.subr.bf16.mxu0 %v4297
        %4361 = vmatpush1.bf16.msra.mxu0 %v4296
        %4362 = vmatprep.mubr.bf16.mxu0 %v4115
        %4363 = vmatmul.mubr.bf16.gmra.mrb[0].mxu0 %v4114
        %v4364 = vpop.f32.mrb[0].mxu0
        %v4365 = vadd.f32 %v4165, %v4364
        %v4366 = vpop.f32.mrb[0].mxu0
        %v4367 = vadd.f32 %v4169, %v4366
        %v4368 = vpop.f32.mrb[0].mxu0
        %v4369 = vpop.f32.mrb[0].mxu0
        %4370 = vdwg.mxu0
        %v4371 = vmax.f32 %v4365, 0.0
        %v4372 = vmax.f32 %v4367, 0.0
        %v4373 = vrot.slane %v4371, 4
        %v4374 = vadd.f32 %v4371, %v4373
        %v4375 = vrot.slane %v4374, 2
        %v4376 = vadd.f32 %v4374, %v4375
        %v4377 = vrot.slane %v4376, 1
        %v4378 = vadd.f32 %v4376, %v4377
        %v4379 = vrot.slane %v4372, 4
        %v4380 = vadd.f32 %v4372, %v4379
        %v4381 = vrot.slane %v4380, 2
        %v4382 = vadd.f32 %v4380, %v4381
        %v4383 = vrot.slane %v4382, 1
        %v4384 = vadd.f32 %v4382, %v4383
        %v4385 = vmul.f32 %v4371, %v4371
        %v4386 = vmul.f32 %v4372, %v4372
        %v4387 = vrot.slane %v4385, 4
        %v4388 = vadd.f32 %v4385, %v4387
        %v4389 = vrot.slane %v4388, 2
        %v4390 = vadd.f32 %v4388, %v4389
        %v4391 = vrot.slane %v4390, 1
        %v4392 = vadd.f32 %v4390, %v4391
        %v4393 = vrot.slane %v4386, 4
        %v4394 = vadd.f32 %v4386, %v4393
        %v4395 = vrot.slane %v4394, 2
        %v4396 = vadd.f32 %v4394, %v4395
        %v4397 = vrot.slane %v4396, 1
        %v4398 = vadd.f32 %v4396, %v4397
        %v4399 = vmul.f32 %v4378, 0.125
        %v4400 = vmul.f32 %v4384, 0.125
        %v4401 = vmul.f32 %v4392, 0.125
        %v4402 = vmul.f32 %v4398, 0.125
        %v4403 = vmul.f32 %v4399, %v4399
        %v4404 = vmul.f32 %v4400, %v4400
        %v4405 = vsub.f32 %v4401, %v4403
        %v4406 = vsub.f32 %v4402, %v4404
        %v4407 = vmax.f32 %v4405, 0.0
        %v4408 = vmax.f32 %v4406, 0.0
        %v4409 = vadd.f32 %v4407, 1e-05
        %v4410 = vadd.f32 %v4408, 1e-05
        %v4411 = vrsqrt.pop %v4409
        %v4412 = vrsqrt.pop %v4410
        %v4415 = vcombine.low %v4411, %v4412
        %v4416 = vrot.slane %v4415, 7
        %v4418 = vmul.f32 %v4150, %v4416
        %v4420 = vlaneseq
        %v4421 = vshrl.u32 %v4420, 7
        %v4422 = vsub.s32 1, %v4421
        %v4423 = vrot.slane %v4418, %v4422
        %v4424 = vlaneseq
        %v4425 = vshrl.u32 %v4424, 7
        %v4426 = vsub.s32 5, %v4425
        %v4427 = vrot.slane %v4418, %v4426
        %v4430 = vmul.f32 %v4399, %v4423
        %v4431 = vmul.f32 %v4400, %v4427
        %v4434 = vcombine.low %v4430, %v4431
        %v4435 = vrot.slane %v4434, 6
        %v4437 = vsub.f32 %v4150, %v4435
        %v4438 = vlaneseq
        %v4439 = vshrl.u32 %v4438, 7
        %v4440 = vsub.s32 1, %v4439
        %v4441 = vrot.slane %v4423, %v4440
        %v4442 = vlaneseq
        %v4443 = vshrl.u32 %v4442, 7
        %v4444 = vsub.s32 1, %v4443
        %v4445 = vrot.slane %v4427, %v4444
        %v4446 = vmul.f32 %v4371, %v4441
        %v4447 = vmul.f32 %v4372, %v4445
        %v4449 = vlaneseq
        %v4450 = vshrl.u32 %v4449, 7
        %v4451 = vsub.s32 2, %v4450
        %v4452 = vrot.slane %v4437, %v4451
        %v4453 = vlaneseq
        %v4454 = vshrl.u32 %v4453, 7
        %v4455 = vsub.s32 6, %v4454
        %v4456 = vrot.slane %v4437, %v4455
        %v4459 = vlaneseq
        %v4460 = vshrl.u32 %v4459, 7
        %v4461 = vsub.s32 2, %v4460
        %v4462 = vrot.slane %v4452, %v4461
        %v4463 = vlaneseq
        %v4464 = vshrl.u32 %v4463, 7
        %v4465 = vsub.s32 2, %v4464
        %v4466 = vrot.slane %v4456, %v4465
        %v4467 = vadd.f32 %v4446, %v4462
        %v4468 = vadd.f32 %v4447, %v4466
        %v4469 = vpack.c.bf16 %v4467, %v4467
        %v4470 = vpack.c.bf16 %v4468, %v4468
        %s4471 = scalar_lea.vmem %s331, 2304 [#allocation9]
        %v4472 = vld [vmem:[%s4471] sm:$0xff]
        %v4473 = vld [vmem:[%s4471 + $0x8] sm:$0xff]
        %v4474 = vld [vmem:[%s4471 + $0x10] sm:$0xff]
        %v4475 = vld [vmem:[%s4471 + $0x18] sm:$0xff]
        %v4476 = vld [vmem:[%s4471 + $0x20] sm:$0xff]
        %v4477 = vld [vmem:[%s4471 + $0x28] sm:$0xff]
        %v4478 = vld [vmem:[%s4471 + $0x30] sm:$0xff]
        %v4479 = vld [vmem:[%s4471 + $0x38] sm:$0xff]
        %v4480 = vld [vmem:[%s4471 + $0x40] sm:$0xff]
        %v4481 = vld [vmem:[%s4471 + $0x48] sm:$0xff]
        %v4482 = vld [vmem:[%s4471 + $0x50] sm:$0xff]
        %v4483 = vld [vmem:[%s4471 + $0x58] sm:$0xff]
        %v4484 = vld [vmem:[%s4471 + $0x60] sm:$0xff]
        %v4485 = vld [vmem:[%s4471 + $0x68] sm:$0xff]
        %v4486 = vld [vmem:[%s4471 + $0x70] sm:$0xff]
        %v4487 = vld [vmem:[%s4471 + $0x78] sm:$0xff]
        %v4488 = vld [vmem:[%s4471 + $0x80] sm:$0xff]
        %v4489 = vld [vmem:[%s4471 + $0x88] sm:$0xff]
        %v4490 = vld [vmem:[%s4471 + $0x90] sm:$0xff]
        %v4491 = vld [vmem:[%s4471 + $0x98] sm:$0xff]
        %v4492 = vld [vmem:[%s4471 + $0xa0] sm:$0xff]
        %v4493 = vld [vmem:[%s4471 + $0xa8] sm:$0xff]
        %v4494 = vld [vmem:[%s4471 + $0xb0] sm:$0xff]
        %v4495 = vld [vmem:[%s4471 + $0xb8] sm:$0xff]
        %v4496 = vld [vmem:[%s4471 + $0xc0] sm:$0xff]
        %v4497 = vld [vmem:[%s4471 + $0xc8] sm:$0xff]
        %v4498 = vld [vmem:[%s4471 + $0xd0] sm:$0xff]
        %v4499 = vld [vmem:[%s4471 + $0xd8] sm:$0xff]
        %v4500 = vld [vmem:[%s4471 + $0xe0] sm:$0xff]
        %v4501 = vld [vmem:[%s4471 + $0xe8] sm:$0xff]
        %v4502 = vld [vmem:[%s4471 + $0xf0] sm:$0xff]
        %v4503 = vld [vmem:[%s4471 + $0xf8] sm:$0xff]
        %s4504 = scalar_lea.vmem %s377, 72
        %v4505 = vld [vmem:[%s4504] sm:$0x77]
        %v4507 = vlaneseq
        %v4508 = vshrl.u32 %v4507, 7
        %v4509 = vsub.s32 0, %v4508
        %v4510 = vrot.slane %v4505, %v4509
        %v4511 = vlaneseq
        %v4512 = vshrl.u32 %v4511, 7
        %v4513 = vsub.s32 4, %v4512
        %v4514 = vrot.slane %v4505, %v4513
        %v4517 = vlaneseq
        %v4518 = vshrl.u32 %v4517, 7
        %v4519 = vsub.s32 0, %v4518
        %v4520 = vrot.slane %v4510, %v4519
        %v4521 = vlaneseq
        %v4522 = vshrl.u32 %v4521, 7
        %v4523 = vsub.s32 0, %v4522
        %v4524 = vrot.slane %v4514, %v4523
        %v4557 = vunpack.c.l.b16 %v4472
        %v4558 = vunpack.c.h.b16 %v4472
        %v4559 = vunpack.c.l.b16 %v4473
        %v4560 = vunpack.c.h.b16 %v4473
        %v4561 = vunpack.c.l.b16 %v4474
        %v4562 = vunpack.c.h.b16 %v4474
        %v4563 = vunpack.c.l.b16 %v4475
        %v4564 = vunpack.c.h.b16 %v4475
        %v4565 = vunpack.c.l.b16 %v4476
        %v4566 = vunpack.c.h.b16 %v4476
        %v4567 = vunpack.c.l.b16 %v4477
        %v4568 = vunpack.c.h.b16 %v4477
        %v4569 = vunpack.c.l.b16 %v4478
        %v4570 = vunpack.c.h.b16 %v4478
        %v4571 = vunpack.c.l.b16 %v4479
        %v4572 = vunpack.c.h.b16 %v4479
        %v4573 = vunpack.c.l.b16 %v4480
        %v4574 = vunpack.c.h.b16 %v4480
        %v4575 = vunpack.c.l.b16 %v4481
        %v4576 = vunpack.c.h.b16 %v4481
        %v4577 = vunpack.c.l.b16 %v4482
        %v4578 = vunpack.c.h.b16 %v4482
        %v4579 = vunpack.c.l.b16 %v4483
        %v4580 = vunpack.c.h.b16 %v4483
        %v4581 = vunpack.c.l.b16 %v4484
        %v4582 = vunpack.c.h.b16 %v4484
        %v4583 = vunpack.c.l.b16 %v4485
        %v4584 = vunpack.c.h.b16 %v4485
        %v4585 = vunpack.c.l.b16 %v4486
        %v4586 = vunpack.c.h.b16 %v4486
        %v4587 = vunpack.c.l.b16 %v4487
        %v4588 = vunpack.c.h.b16 %v4487
        %v4589 = vunpack.c.l.b16 %v4488
        %v4590 = vunpack.c.h.b16 %v4488
        %v4591 = vunpack.c.l.b16 %v4489
        %v4592 = vunpack.c.h.b16 %v4489
        %v4593 = vunpack.c.l.b16 %v4490
        %v4594 = vunpack.c.h.b16 %v4490
        %v4595 = vunpack.c.l.b16 %v4491
        %v4596 = vunpack.c.h.b16 %v4491
        %v4597 = vunpack.c.l.b16 %v4492
        %v4598 = vunpack.c.h.b16 %v4492
        %v4599 = vunpack.c.l.b16 %v4493
        %v4600 = vunpack.c.h.b16 %v4493
        %v4601 = vunpack.c.l.b16 %v4494
        %v4602 = vunpack.c.h.b16 %v4494
        %v4603 = vunpack.c.l.b16 %v4495
        %v4604 = vunpack.c.h.b16 %v4495
        %v4605 = vunpack.c.l.b16 %v4496
        %v4606 = vunpack.c.h.b16 %v4496
        %v4607 = vunpack.c.l.b16 %v4497
        %v4608 = vunpack.c.h.b16 %v4497
        %v4609 = vunpack.c.l.b16 %v4498
        %v4610 = vunpack.c.h.b16 %v4498
        %v4611 = vunpack.c.l.b16 %v4499
        %v4612 = vunpack.c.h.b16 %v4499
        %v4613 = vunpack.c.l.b16 %v4500
        %v4614 = vunpack.c.h.b16 %v4500
        %v4615 = vunpack.c.l.b16 %v4501
        %v4616 = vunpack.c.h.b16 %v4501
        %v4617 = vunpack.c.l.b16 %v4502
        %v4618 = vunpack.c.h.b16 %v4502
        %v4619 = vunpack.c.l.b16 %v4503
        %v4620 = vunpack.c.h.b16 %v4503
        %v4621 = vpack.c.b16 %v4559, %v4557
        %v4622 = vpack.c.b16 %v4560, %v4558
        %v4623 = vpack.c.b16 %v4563, %v4561
        %v4624 = vpack.c.b16 %v4564, %v4562
        %v4625 = vpack.c.b16 %v4567, %v4565
        %v4626 = vpack.c.b16 %v4568, %v4566
        %v4627 = vpack.c.b16 %v4571, %v4569
        %v4628 = vpack.c.b16 %v4572, %v4570
        %v4629 = vpack.c.b16 %v4575, %v4573
        %v4630 = vpack.c.b16 %v4576, %v4574
        %v4631 = vpack.c.b16 %v4579, %v4577
        %v4632 = vpack.c.b16 %v4580, %v4578
        %v4633 = vpack.c.b16 %v4583, %v4581
        %v4634 = vpack.c.b16 %v4584, %v4582
        %v4635 = vpack.c.b16 %v4587, %v4585
        %v4636 = vpack.c.b16 %v4588, %v4586
        %v4637 = vpack.c.b16 %v4591, %v4589
        %v4638 = vpack.c.b16 %v4592, %v4590
        %v4639 = vpack.c.b16 %v4595, %v4593
        %v4640 = vpack.c.b16 %v4596, %v4594
        %v4641 = vpack.c.b16 %v4599, %v4597
        %v4642 = vpack.c.b16 %v4600, %v4598
        %v4643 = vpack.c.b16 %v4603, %v4601
        %v4644 = vpack.c.b16 %v4604, %v4602
        %v4645 = vpack.c.b16 %v4607, %v4605
        %v4646 = vpack.c.b16 %v4608, %v4606
        %v4647 = vpack.c.b16 %v4611, %v4609
        %v4648 = vpack.c.b16 %v4612, %v4610
        %v4649 = vpack.c.b16 %v4615, %v4613
        %v4650 = vpack.c.b16 %v4616, %v4614
        %v4651 = vpack.c.b16 %v4619, %v4617
        %v4652 = vpack.c.b16 %v4620, %v4618
        %4685 = vmatprep.subr.bf16.mxu0 %v4622
        %4686 = vmatpush1.bf16.msra.mxu0 %v4621
        %4687 = vmatprep.subr.bf16.mxu0 %v4624
        %4688 = vmatpush1.bf16.msra.mxu0 %v4623
        %4689 = vmatprep.subr.bf16.mxu0 %v4626
        %4690 = vmatpush1.bf16.msra.mxu0 %v4625
        %4691 = vmatprep.subr.bf16.mxu0 %v4628
        %4692 = vmatpush1.bf16.msra.mxu0 %v4627
        %4693 = vmatprep.subr.bf16.mxu0 %v4630
        %4694 = vmatpush1.bf16.msra.mxu0 %v4629
        %4695 = vmatprep.subr.bf16.mxu0 %v4632
        %4696 = vmatpush1.bf16.msra.mxu0 %v4631
        %4697 = vmatprep.subr.bf16.mxu0 %v4634
        %4698 = vmatpush1.bf16.msra.mxu0 %v4633
        %4699 = vmatprep.subr.bf16.mxu0 %v4636
        %4700 = vmatpush1.bf16.msra.mxu0 %v4635
        %4701 = vmatprep.subr.bf16.mxu0 %v4638
        %4702 = vmatpush1.bf16.msra.mxu0 %v4637
        %4703 = vmatprep.subr.bf16.mxu0 %v4640
        %4704 = vmatpush1.bf16.msra.mxu0 %v4639
        %4705 = vmatprep.subr.bf16.mxu0 %v4642
        %4706 = vmatpush1.bf16.msra.mxu0 %v4641
        %4707 = vmatprep.subr.bf16.mxu0 %v4644
        %4708 = vmatpush1.bf16.msra.mxu0 %v4643
        %4709 = vmatprep.subr.bf16.mxu0 %v4646
        %4710 = vmatpush1.bf16.msra.mxu0 %v4645
        %4711 = vmatprep.subr.bf16.mxu0 %v4648
        %4712 = vmatpush1.bf16.msra.mxu0 %v4647
        %4713 = vmatprep.subr.bf16.mxu0 %v4650
        %4714 = vmatpush1.bf16.msra.mxu0 %v4649
        %4715 = vmatprep.subr.bf16.mxu0 %v4652
        %4716 = vmatpush1.bf16.msra.mxu0 %v4651
        %4717 = vmatprep.mubr.bf16.mxu0 %v4470
        %4718 = vmatmul.mubr.bf16.gmra.mrb[0].mxu0 %v4469
        %v4719 = vpop.f32.mrb[0].mxu0
        %v4720 = vadd.f32 %v4520, %v4719
        %v4721 = vpop.f32.mrb[0].mxu0
        %v4722 = vadd.f32 %v4524, %v4721
        %v4723 = vpop.f32.mrb[0].mxu0
        %v4724 = vpop.f32.mrb[0].mxu0
        %4725 = vdwg.mxu0
        %v4726 = vmax.f32 %v4720, 0.0
        %v4727 = vmax.f32 %v4722, 0.0
        %v4728 = vrot.slane %v4726, 4
        %v4729 = vadd.f32 %v4726, %v4728
        %v4730 = vrot.slane %v4729, 2
        %v4731 = vadd.f32 %v4729, %v4730
        %v4732 = vrot.slane %v4731, 1
        %v4733 = vadd.f32 %v4731, %v4732
        %v4734 = vrot.slane %v4727, 4
        %v4735 = vadd.f32 %v4727, %v4734
        %v4736 = vrot.slane %v4735, 2
        %v4737 = vadd.f32 %v4735, %v4736
        %v4738 = vrot.slane %v4737, 1
        %v4739 = vadd.f32 %v4737, %v4738
        %v4740 = vmul.f32 %v4726, %v4726
        %v4741 = vmul.f32 %v4727, %v4727
        %v4742 = vrot.slane %v4740, 4
        %v4743 = vadd.f32 %v4740, %v4742
        %v4744 = vrot.slane %v4743, 2
        %v4745 = vadd.f32 %v4743, %v4744
        %v4746 = vrot.slane %v4745, 1
        %v4747 = vadd.f32 %v4745, %v4746
        %v4748 = vrot.slane %v4741, 4
        %v4749 = vadd.f32 %v4741, %v4748
        %v4750 = vrot.slane %v4749, 2
        %v4751 = vadd.f32 %v4749, %v4750
        %v4752 = vrot.slane %v4751, 1
        %v4753 = vadd.f32 %v4751, %v4752
        %v4754 = vmul.f32 %v4733, 0.125
        %v4755 = vmul.f32 %v4739, 0.125
        %v4756 = vmul.f32 %v4747, 0.125
        %v4757 = vmul.f32 %v4753, 0.125
        %v4758 = vmul.f32 %v4754, %v4754
        %v4759 = vmul.f32 %v4755, %v4755
        %v4760 = vsub.f32 %v4756, %v4758
        %v4761 = vsub.f32 %v4757, %v4759
        %v4762 = vmax.f32 %v4760, 0.0
        %v4763 = vmax.f32 %v4761, 0.0
        %v4764 = vadd.f32 %v4762, 1e-05
        %v4765 = vadd.f32 %v4763, 1e-05
        %v4766 = vrsqrt.pop %v4764
        %v4767 = vrsqrt.pop %v4765
        %v4770 = vcombine.low %v4766, %v4767
        %v4771 = vrot.slane %v4770, 7
        %v4773 = vmul.f32 %v4505, %v4771
        %v4775 = vlaneseq
        %v4776 = vshrl.u32 %v4775, 7
        %v4777 = vsub.s32 1, %v4776
        %v4778 = vrot.slane %v4773, %v4777
        %v4779 = vlaneseq
        %v4780 = vshrl.u32 %v4779, 7
        %v4781 = vsub.s32 5, %v4780
        %v4782 = vrot.slane %v4773, %v4781
        %v4785 = vmul.f32 %v4754, %v4778
        %v4786 = vmul.f32 %v4755, %v4782
        %v4789 = vcombine.low %v4785, %v4786
        %v4790 = vrot.slane %v4789, 6
        %v4792 = vsub.f32 %v4505, %v4790
        %v4793 = vlaneseq
        %v4794 = vshrl.u32 %v4793, 7
        %v4795 = vsub.s32 1, %v4794
        %v4796 = vrot.slane %v4778, %v4795
        %v4797 = vlaneseq
        %v4798 = vshrl.u32 %v4797, 7
        %v4799 = vsub.s32 1, %v4798
        %v4800 = vrot.slane %v4782, %v4799
        %v4801 = vmul.f32 %v4726, %v4796
        %v4802 = vmul.f32 %v4727, %v4800
        %v4804 = vlaneseq
        %v4805 = vshrl.u32 %v4804, 7
        %v4806 = vsub.s32 2, %v4805
        %v4807 = vrot.slane %v4792, %v4806
        %v4808 = vlaneseq
        %v4809 = vshrl.u32 %v4808, 7
        %v4810 = vsub.s32 6, %v4809
        %v4811 = vrot.slane %v4792, %v4810
        %v4814 = vlaneseq
        %v4815 = vshrl.u32 %v4814, 7
        %v4816 = vsub.s32 2, %v4815
        %v4817 = vrot.slane %v4807, %v4816
        %v4818 = vlaneseq
        %v4819 = vshrl.u32 %v4818, 7
        %v4820 = vsub.s32 2, %v4819
        %v4821 = vrot.slane %v4811, %v4820
        %v4822 = vadd.f32 %v4801, %v4817
        %v4823 = vadd.f32 %v4802, %v4821
        %v4824 = vpack.c.bf16 %v4822, %v4822
        %v4825 = vpack.c.bf16 %v4823, %v4823
        %s4826 = scalar_lea.vmem %s331, 2560 [#allocation9]
        %v4827 = vld [vmem:[%s4826] sm:$0xff]
        %v4828 = vld [vmem:[%s4826 + $0x8] sm:$0xff]
        %v4829 = vld [vmem:[%s4826 + $0x10] sm:$0xff]
        %v4830 = vld [vmem:[%s4826 + $0x18] sm:$0xff]
        %v4831 = vld [vmem:[%s4826 + $0x20] sm:$0xff]
        %v4832 = vld [vmem:[%s4826 + $0x28] sm:$0xff]
        %v4833 = vld [vmem:[%s4826 + $0x30] sm:$0xff]
        %v4834 = vld [vmem:[%s4826 + $0x38] sm:$0xff]
        %v4835 = vld [vmem:[%s4826 + $0x40] sm:$0xff]
        %v4836 = vld [vmem:[%s4826 + $0x48] sm:$0xff]
        %v4837 = vld [vmem:[%s4826 + $0x50] sm:$0xff]
        %v4838 = vld [vmem:[%s4826 + $0x58] sm:$0xff]
        %v4839 = vld [vmem:[%s4826 + $0x60] sm:$0xff]
        %v4840 = vld [vmem:[%s4826 + $0x68] sm:$0xff]
        %v4841 = vld [vmem:[%s4826 + $0x70] sm:$0xff]
        %v4842 = vld [vmem:[%s4826 + $0x78] sm:$0xff]
        %v4843 = vld [vmem:[%s4826 + $0x80] sm:$0xff]
        %v4844 = vld [vmem:[%s4826 + $0x88] sm:$0xff]
        %v4845 = vld [vmem:[%s4826 + $0x90] sm:$0xff]
        %v4846 = vld [vmem:[%s4826 + $0x98] sm:$0xff]
        %v4847 = vld [vmem:[%s4826 + $0xa0] sm:$0xff]
        %v4848 = vld [vmem:[%s4826 + $0xa8] sm:$0xff]
        %v4849 = vld [vmem:[%s4826 + $0xb0] sm:$0xff]
        %v4850 = vld [vmem:[%s4826 + $0xb8] sm:$0xff]
        %v4851 = vld [vmem:[%s4826 + $0xc0] sm:$0xff]
        %v4852 = vld [vmem:[%s4826 + $0xc8] sm:$0xff]
        %v4853 = vld [vmem:[%s4826 + $0xd0] sm:$0xff]
        %v4854 = vld [vmem:[%s4826 + $0xd8] sm:$0xff]
        %v4855 = vld [vmem:[%s4826 + $0xe0] sm:$0xff]
        %v4856 = vld [vmem:[%s4826 + $0xe8] sm:$0xff]
        %v4857 = vld [vmem:[%s4826 + $0xf0] sm:$0xff]
        %v4858 = vld [vmem:[%s4826 + $0xf8] sm:$0xff]
        %s4859 = scalar_lea.vmem %s377, 80
        %v4860 = vld [vmem:[%s4859] sm:$0x77]
        %v4862 = vlaneseq
        %v4863 = vshrl.u32 %v4862, 7
        %v4864 = vsub.s32 0, %v4863
        %v4865 = vrot.slane %v4860, %v4864
        %v4866 = vlaneseq
        %v4867 = vshrl.u32 %v4866, 7
        %v4868 = vsub.s32 4, %v4867
        %v4869 = vrot.slane %v4860, %v4868
        %v4872 = vlaneseq
        %v4873 = vshrl.u32 %v4872, 7
        %v4874 = vsub.s32 0, %v4873
        %v4875 = vrot.slane %v4865, %v4874
        %v4876 = vlaneseq
        %v4877 = vshrl.u32 %v4876, 7
        %v4878 = vsub.s32 0, %v4877
        %v4879 = vrot.slane %v4869, %v4878
        %v4912 = vunpack.c.l.b16 %v4827
        %v4913 = vunpack.c.h.b16 %v4827
        %v4914 = vunpack.c.l.b16 %v4828
        %v4915 = vunpack.c.h.b16 %v4828
        %v4916 = vunpack.c.l.b16 %v4829
        %v4917 = vunpack.c.h.b16 %v4829
        %v4918 = vunpack.c.l.b16 %v4830
        %v4919 = vunpack.c.h.b16 %v4830
        %v4920 = vunpack.c.l.b16 %v4831
        %v4921 = vunpack.c.h.b16 %v4831
        %v4922 = vunpack.c.l.b16 %v4832
        %v4923 = vunpack.c.h.b16 %v4832
        %v4924 = vunpack.c.l.b16 %v4833
        %v4925 = vunpack.c.h.b16 %v4833
        %v4926 = vunpack.c.l.b16 %v4834
        %v4927 = vunpack.c.h.b16 %v4834
        %v4928 = vunpack.c.l.b16 %v4835
        %v4929 = vunpack.c.h.b16 %v4835
        %v4930 = vunpack.c.l.b16 %v4836
        %v4931 = vunpack.c.h.b16 %v4836
        %v4932 = vunpack.c.l.b16 %v4837
        %v4933 = vunpack.c.h.b16 %v4837
        %v4934 = vunpack.c.l.b16 %v4838
        %v4935 = vunpack.c.h.b16 %v4838
        %v4936 = vunpack.c.l.b16 %v4839
        %v4937 = vunpack.c.h.b16 %v4839
        %v4938 = vunpack.c.l.b16 %v4840
        %v4939 = vunpack.c.h.b16 %v4840
        %v4940 = vunpack.c.l.b16 %v4841
        %v4941 = vunpack.c.h.b16 %v4841
        %v4942 = vunpack.c.l.b16 %v4842
        %v4943 = vunpack.c.h.b16 %v4842
        %v4944 = vunpack.c.l.b16 %v4843
        %v4945 = vunpack.c.h.b16 %v4843
        %v4946 = vunpack.c.l.b16 %v4844
        %v4947 = vunpack.c.h.b16 %v4844
        %v4948 = vunpack.c.l.b16 %v4845
        %v4949 = vunpack.c.h.b16 %v4845
        %v4950 = vunpack.c.l.b16 %v4846
        %v4951 = vunpack.c.h.b16 %v4846
        %v4952 = vunpack.c.l.b16 %v4847
        %v4953 = vunpack.c.h.b16 %v4847
        %v4954 = vunpack.c.l.b16 %v4848
        %v4955 = vunpack.c.h.b16 %v4848
        %v4956 = vunpack.c.l.b16 %v4849
        %v4957 = vunpack.c.h.b16 %v4849
        %v4958 = vunpack.c.l.b16 %v4850
        %v4959 = vunpack.c.h.b16 %v4850
        %v4960 = vunpack.c.l.b16 %v4851
        %v4961 = vunpack.c.h.b16 %v4851
        %v4962 = vunpack.c.l.b16 %v4852
        %v4963 = vunpack.c.h.b16 %v4852
        %v4964 = vunpack.c.l.b16 %v4853
        %v4965 = vunpack.c.h.b16 %v4853
        %v4966 = vunpack.c.l.b16 %v4854
        %v4967 = vunpack.c.h.b16 %v4854
        %v4968 = vunpack.c.l.b16 %v4855
        %v4969 = vunpack.c.h.b16 %v4855
        %v4970 = vunpack.c.l.b16 %v4856
        %v4971 = vunpack.c.h.b16 %v4856
        %v4972 = vunpack.c.l.b16 %v4857
        %v4973 = vunpack.c.h.b16 %v4857
        %v4974 = vunpack.c.l.b16 %v4858
        %v4975 = vunpack.c.h.b16 %v4858
        %v4976 = vpack.c.b16 %v4914, %v4912
        %v4977 = vpack.c.b16 %v4915, %v4913
        %v4978 = vpack.c.b16 %v4918, %v4916
        %v4979 = vpack.c.b16 %v4919, %v4917
        %v4980 = vpack.c.b16 %v4922, %v4920
        %v4981 = vpack.c.b16 %v4923, %v4921
        %v4982 = vpack.c.b16 %v4926, %v4924
        %v4983 = vpack.c.b16 %v4927, %v4925
        %v4984 = vpack.c.b16 %v4930, %v4928
        %v4985 = vpack.c.b16 %v4931, %v4929
        %v4986 = vpack.c.b16 %v4934, %v4932
        %v4987 = vpack.c.b16 %v4935, %v4933
        %v4988 = vpack.c.b16 %v4938, %v4936
        %v4989 = vpack.c.b16 %v4939, %v4937
        %v4990 = vpack.c.b16 %v4942, %v4940
        %v4991 = vpack.c.b16 %v4943, %v4941
        %v4992 = vpack.c.b16 %v4946, %v4944
        %v4993 = vpack.c.b16 %v4947, %v4945
        %v4994 = vpack.c.b16 %v4950, %v4948
        %v4995 = vpack.c.b16 %v4951, %v4949
        %v4996 = vpack.c.b16 %v4954, %v4952
        %v4997 = vpack.c.b16 %v4955, %v4953
        %v4998 = vpack.c.b16 %v4958, %v4956
        %v4999 = vpack.c.b16 %v4959, %v4957
        %v5000 = vpack.c.b16 %v4962, %v4960
        %v5001 = vpack.c.b16 %v4963, %v4961
        %v5002 = vpack.c.b16 %v4966, %v4964
        %v5003 = vpack.c.b16 %v4967, %v4965
        %v5004 = vpack.c.b16 %v4970, %v4968
        %v5005 = vpack.c.b16 %v4971, %v4969
        %v5006 = vpack.c.b16 %v4974, %v4972
        %v5007 = vpack.c.b16 %v4975, %v4973
        %5040 = vmatprep.subr.bf16.mxu0 %v4977
        %5041 = vmatpush1.bf16.msra.mxu0 %v4976
        %5042 = vmatprep.subr.bf16.mxu0 %v4979
        %5043 = vmatpush1.bf16.msra.mxu0 %v4978
        %5044 = vmatprep.subr.bf16.mxu0 %v4981
        %5045 = vmatpush1.bf16.msra.mxu0 %v4980
        %5046 = vmatprep.subr.bf16.mxu0 %v4983
        %5047 = vmatpush1.bf16.msra.mxu0 %v4982
        %5048 = vmatprep.subr.bf16.mxu0 %v4985
        %5049 = vmatpush1.bf16.msra.mxu0 %v4984
        %5050 = vmatprep.subr.bf16.mxu0 %v4987
        %5051 = vmatpush1.bf16.msra.mxu0 %v4986
        %5052 = vmatprep.subr.bf16.mxu0 %v4989
        %5053 = vmatpush1.bf16.msra.mxu0 %v4988
        %5054 = vmatprep.subr.bf16.mxu0 %v4991
        %5055 = vmatpush1.bf16.msra.mxu0 %v4990
        %5056 = vmatprep.subr.bf16.mxu0 %v4993
        %5057 = vmatpush1.bf16.msra.mxu0 %v4992
        %5058 = vmatprep.subr.bf16.mxu0 %v4995
        %5059 = vmatpush1.bf16.msra.mxu0 %v4994
        %5060 = vmatprep.subr.bf16.mxu0 %v4997
        %5061 = vmatpush1.bf16.msra.mxu0 %v4996
        %5062 = vmatprep.subr.bf16.mxu0 %v4999
        %5063 = vmatpush1.bf16.msra.mxu0 %v4998
        %5064 = vmatprep.subr.bf16.mxu0 %v5001
        %5065 = vmatpush1.bf16.msra.mxu0 %v5000
        %5066 = vmatprep.subr.bf16.mxu0 %v5003
        %5067 = vmatpush1.bf16.msra.mxu0 %v5002
        %5068 = vmatprep.subr.bf16.mxu0 %v5005
        %5069 = vmatpush1.bf16.msra.mxu0 %v5004
        %5070 = vmatprep.subr.bf16.mxu0 %v5007
        %5071 = vmatpush1.bf16.msra.mxu0 %v5006
        %5072 = vmatprep.mubr.bf16.mxu0 %v4825
        %5073 = vmatmul.mubr.bf16.gmra.mrb[0].mxu0 %v4824
        %v5074 = vpop.f32.mrb[0].mxu0
        %v5075 = vadd.f32 %v4875, %v5074
        %v5076 = vpop.f32.mrb[0].mxu0
        %v5077 = vadd.f32 %v4879, %v5076
        %v5078 = vpop.f32.mrb[0].mxu0
        %v5079 = vpop.f32.mrb[0].mxu0
        %5080 = vdwg.mxu0
        %v5081 = vmax.f32 %v5075, 0.0
        %v5082 = vmax.f32 %v5077, 0.0
        %v5083 = vrot.slane %v5081, 4
        %v5084 = vadd.f32 %v5081, %v5083
        %v5085 = vrot.slane %v5084, 2
        %v5086 = vadd.f32 %v5084, %v5085
        %v5087 = vrot.slane %v5086, 1
        %v5088 = vadd.f32 %v5086, %v5087
        %v5089 = vrot.slane %v5082, 4
        %v5090 = vadd.f32 %v5082, %v5089
        %v5091 = vrot.slane %v5090, 2
        %v5092 = vadd.f32 %v5090, %v5091
        %v5093 = vrot.slane %v5092, 1
        %v5094 = vadd.f32 %v5092, %v5093
        %v5095 = vmul.f32 %v5081, %v5081
        %v5096 = vmul.f32 %v5082, %v5082
        %v5097 = vrot.slane %v5095, 4
        %v5098 = vadd.f32 %v5095, %v5097
        %v5099 = vrot.slane %v5098, 2
        %v5100 = vadd.f32 %v5098, %v5099
        %v5101 = vrot.slane %v5100, 1
        %v5102 = vadd.f32 %v5100, %v5101
        %v5103 = vrot.slane %v5096, 4
        %v5104 = vadd.f32 %v5096, %v5103
        %v5105 = vrot.slane %v5104, 2
        %v5106 = vadd.f32 %v5104, %v5105
        %v5107 = vrot.slane %v5106, 1
        %v5108 = vadd.f32 %v5106, %v5107
        %v5109 = vmul.f32 %v5088, 0.125
        %v5110 = vmul.f32 %v5094, 0.125
        %v5111 = vmul.f32 %v5102, 0.125
        %v5112 = vmul.f32 %v5108, 0.125
        %v5113 = vmul.f32 %v5109, %v5109
        %v5114 = vmul.f32 %v5110, %v5110
        %v5115 = vsub.f32 %v5111, %v5113
        %v5116 = vsub.f32 %v5112, %v5114
        %v5117 = vmax.f32 %v5115, 0.0
        %v5118 = vmax.f32 %v5116, 0.0
        %v5119 = vadd.f32 %v5117, 1e-05
        %v5120 = vadd.f32 %v5118, 1e-05
        %v5121 = vrsqrt.pop %v5119
        %v5122 = vrsqrt.pop %v5120
        %v5125 = vcombine.low %v5121, %v5122
        %v5126 = vrot.slane %v5125, 7
        %v5128 = vmul.f32 %v4860, %v5126
        %v5130 = vlaneseq
        %v5131 = vshrl.u32 %v5130, 7
        %v5132 = vsub.s32 1, %v5131
        %v5133 = vrot.slane %v5128, %v5132
        %v5134 = vlaneseq
        %v5135 = vshrl.u32 %v5134, 7
        %v5136 = vsub.s32 5, %v5135
        %v5137 = vrot.slane %v5128, %v5136
        %v5140 = vmul.f32 %v5109, %v5133
        %v5141 = vmul.f32 %v5110, %v5137
        %v5144 = vcombine.low %v5140, %v5141
        %v5145 = vrot.slane %v5144, 6
        %v5147 = vsub.f32 %v4860, %v5145
        %v5148 = vlaneseq
        %v5149 = vshrl.u32 %v5148, 7
        %v5150 = vsub.s32 1, %v5149
        %v5151 = vrot.slane %v5133, %v5150
        %v5152 = vlaneseq
        %v5153 = vshrl.u32 %v5152, 7
        %v5154 = vsub.s32 1, %v5153
        %v5155 = vrot.slane %v5137, %v5154
        %v5156 = vmul.f32 %v5081, %v5151
        %v5157 = vmul.f32 %v5082, %v5155
        %v5159 = vlaneseq
        %v5160 = vshrl.u32 %v5159, 7
        %v5161 = vsub.s32 2, %v5160
        %v5162 = vrot.slane %v5147, %v5161
        %v5163 = vlaneseq
        %v5164 = vshrl.u32 %v5163, 7
        %v5165 = vsub.s32 6, %v5164
        %v5166 = vrot.slane %v5147, %v5165
        %v5169 = vlaneseq
        %v5170 = vshrl.u32 %v5169, 7
        %v5171 = vsub.s32 2, %v5170
        %v5172 = vrot.slane %v5162, %v5171
        %v5173 = vlaneseq
        %v5174 = vshrl.u32 %v5173, 7
        %v5175 = vsub.s32 2, %v5174
        %v5176 = vrot.slane %v5166, %v5175
        %v5177 = vadd.f32 %v5156, %v5172
        %v5178 = vadd.f32 %v5157, %v5176
        %v5179 = vpack.c.bf16 %v5177, %v5177
        %v5180 = vpack.c.bf16 %v5178, %v5178
        %s5181 = scalar_lea.vmem %s331, 2816 [#allocation9]
        %v5182 = vld [vmem:[%s5181] sm:$0xff]
        %v5183 = vld [vmem:[%s5181 + $0x8] sm:$0xff]
        %v5184 = vld [vmem:[%s5181 + $0x10] sm:$0xff]
        %v5185 = vld [vmem:[%s5181 + $0x18] sm:$0xff]
        %v5186 = vld [vmem:[%s5181 + $0x20] sm:$0xff]
        %v5187 = vld [vmem:[%s5181 + $0x28] sm:$0xff]
        %v5188 = vld [vmem:[%s5181 + $0x30] sm:$0xff]
        %v5189 = vld [vmem:[%s5181 + $0x38] sm:$0xff]
        %v5190 = vld [vmem:[%s5181 + $0x40] sm:$0xff]
        %v5191 = vld [vmem:[%s5181 + $0x48] sm:$0xff]
        %v5192 = vld [vmem:[%s5181 + $0x50] sm:$0xff]
        %v5193 = vld [vmem:[%s5181 + $0x58] sm:$0xff]
        %v5194 = vld [vmem:[%s5181 + $0x60] sm:$0xff]
        %v5195 = vld [vmem:[%s5181 + $0x68] sm:$0xff]
        %v5196 = vld [vmem:[%s5181 + $0x70] sm:$0xff]
        %v5197 = vld [vmem:[%s5181 + $0x78] sm:$0xff]
        %v5198 = vld [vmem:[%s5181 + $0x80] sm:$0xff]
        %v5199 = vld [vmem:[%s5181 + $0x88] sm:$0xff]
        %v5200 = vld [vmem:[%s5181 + $0x90] sm:$0xff]
        %v5201 = vld [vmem:[%s5181 + $0x98] sm:$0xff]
        %v5202 = vld [vmem:[%s5181 + $0xa0] sm:$0xff]
        %v5203 = vld [vmem:[%s5181 + $0xa8] sm:$0xff]
        %v5204 = vld [vmem:[%s5181 + $0xb0] sm:$0xff]
        %v5205 = vld [vmem:[%s5181 + $0xb8] sm:$0xff]
        %v5206 = vld [vmem:[%s5181 + $0xc0] sm:$0xff]
        %v5207 = vld [vmem:[%s5181 + $0xc8] sm:$0xff]
        %v5208 = vld [vmem:[%s5181 + $0xd0] sm:$0xff]
        %v5209 = vld [vmem:[%s5181 + $0xd8] sm:$0xff]
        %v5210 = vld [vmem:[%s5181 + $0xe0] sm:$0xff]
        %v5211 = vld [vmem:[%s5181 + $0xe8] sm:$0xff]
        %v5212 = vld [vmem:[%s5181 + $0xf0] sm:$0xff]
        %v5213 = vld [vmem:[%s5181 + $0xf8] sm:$0xff]
        %s5214 = scalar_lea.vmem %s377, 88
        %v5215 = vld [vmem:[%s5214] sm:$0x77]
        %v5217 = vlaneseq
        %v5218 = vshrl.u32 %v5217, 7
        %v5219 = vsub.s32 0, %v5218
        %v5220 = vrot.slane %v5215, %v5219
        %v5221 = vlaneseq
        %v5222 = vshrl.u32 %v5221, 7
        %v5223 = vsub.s32 4, %v5222
        %v5224 = vrot.slane %v5215, %v5223
        %v5227 = vlaneseq
        %v5228 = vshrl.u32 %v5227, 7
        %v5229 = vsub.s32 0, %v5228
        %v5230 = vrot.slane %v5220, %v5229
        %v5231 = vlaneseq
        %v5232 = vshrl.u32 %v5231, 7
        %v5233 = vsub.s32 0, %v5232
        %v5234 = vrot.slane %v5224, %v5233
        %v5267 = vunpack.c.l.b16 %v5182
        %v5268 = vunpack.c.h.b16 %v5182
        %v5269 = vunpack.c.l.b16 %v5183
        %v5270 = vunpack.c.h.b16 %v5183
        %v5271 = vunpack.c.l.b16 %v5184
        %v5272 = vunpack.c.h.b16 %v5184
        %v5273 = vunpack.c.l.b16 %v5185
        %v5274 = vunpack.c.h.b16 %v5185
        %v5275 = vunpack.c.l.b16 %v5186
        %v5276 = vunpack.c.h.b16 %v5186
        %v5277 = vunpack.c.l.b16 %v5187
        %v5278 = vunpack.c.h.b16 %v5187
        %v5279 = vunpack.c.l.b16 %v5188
        %v5280 = vunpack.c.h.b16 %v5188
        %v5281 = vunpack.c.l.b16 %v5189
        %v5282 = vunpack.c.h.b16 %v5189
        %v5283 = vunpack.c.l.b16 %v5190
        %v5284 = vunpack.c.h.b16 %v5190
        %v5285 = vunpack.c.l.b16 %v5191
        %v5286 = vunpack.c.h.b16 %v5191
        %v5287 = vunpack.c.l.b16 %v5192
        %v5288 = vunpack.c.h.b16 %v5192
        %v5289 = vunpack.c.l.b16 %v5193
        %v5290 = vunpack.c.h.b16 %v5193
        %v5291 = vunpack.c.l.b16 %v5194
        %v5292 = vunpack.c.h.b16 %v5194
        %v5293 = vunpack.c.l.b16 %v5195
        %v5294 = vunpack.c.h.b16 %v5195
        %v5295 = vunpack.c.l.b16 %v5196
        %v5296 = vunpack.c.h.b16 %v5196
        %v5297 = vunpack.c.l.b16 %v5197
        %v5298 = vunpack.c.h.b16 %v5197
        %v5299 = vunpack.c.l.b16 %v5198
        %v5300 = vunpack.c.h.b16 %v5198
        %v5301 = vunpack.c.l.b16 %v5199
        %v5302 = vunpack.c.h.b16 %v5199
        %v5303 = vunpack.c.l.b16 %v5200
        %v5304 = vunpack.c.h.b16 %v5200
        %v5305 = vunpack.c.l.b16 %v5201
        %v5306 = vunpack.c.h.b16 %v5201
        %v5307 = vunpack.c.l.b16 %v5202
        %v5308 = vunpack.c.h.b16 %v5202
        %v5309 = vunpack.c.l.b16 %v5203
        %v5310 = vunpack.c.h.b16 %v5203
        %v5311 = vunpack.c.l.b16 %v5204
        %v5312 = vunpack.c.h.b16 %v5204
        %v5313 = vunpack.c.l.b16 %v5205
        %v5314 = vunpack.c.h.b16 %v5205
        %v5315 = vunpack.c.l.b16 %v5206
        %v5316 = vunpack.c.h.b16 %v5206
        %v5317 = vunpack.c.l.b16 %v5207
        %v5318 = vunpack.c.h.b16 %v5207
        %v5319 = vunpack.c.l.b16 %v5208
        %v5320 = vunpack.c.h.b16 %v5208
        %v5321 = vunpack.c.l.b16 %v5209
        %v5322 = vunpack.c.h.b16 %v5209
        %v5323 = vunpack.c.l.b16 %v5210
        %v5324 = vunpack.c.h.b16 %v5210
        %v5325 = vunpack.c.l.b16 %v5211
        %v5326 = vunpack.c.h.b16 %v5211
        %v5327 = vunpack.c.l.b16 %v5212
        %v5328 = vunpack.c.h.b16 %v5212
        %v5329 = vunpack.c.l.b16 %v5213
        %v5330 = vunpack.c.h.b16 %v5213
        %v5331 = vpack.c.b16 %v5269, %v5267
        %v5332 = vpack.c.b16 %v5270, %v5268
        %v5333 = vpack.c.b16 %v5273, %v5271
        %v5334 = vpack.c.b16 %v5274, %v5272
        %v5335 = vpack.c.b16 %v5277, %v5275
        %v5336 = vpack.c.b16 %v5278, %v5276
        %v5337 = vpack.c.b16 %v5281, %v5279
        %v5338 = vpack.c.b16 %v5282, %v5280
        %v5339 = vpack.c.b16 %v5285, %v5283
        %v5340 = vpack.c.b16 %v5286, %v5284
        %v5341 = vpack.c.b16 %v5289, %v5287
        %v5342 = vpack.c.b16 %v5290, %v5288
        %v5343 = vpack.c.b16 %v5293, %v5291
        %v5344 = vpack.c.b16 %v5294, %v5292
        %v5345 = vpack.c.b16 %v5297, %v5295
        %v5346 = vpack.c.b16 %v5298, %v5296
        %v5347 = vpack.c.b16 %v5301, %v5299
        %v5348 = vpack.c.b16 %v5302, %v5300
        %v5349 = vpack.c.b16 %v5305, %v5303
        %v5350 = vpack.c.b16 %v5306, %v5304
        %v5351 = vpack.c.b16 %v5309, %v5307
        %v5352 = vpack.c.b16 %v5310, %v5308
        %v5353 = vpack.c.b16 %v5313, %v5311
        %v5354 = vpack.c.b16 %v5314, %v5312
        %v5355 = vpack.c.b16 %v5317, %v5315
        %v5356 = vpack.c.b16 %v5318, %v5316
        %v5357 = vpack.c.b16 %v5321, %v5319
        %v5358 = vpack.c.b16 %v5322, %v5320
        %v5359 = vpack.c.b16 %v5325, %v5323
        %v5360 = vpack.c.b16 %v5326, %v5324
        %v5361 = vpack.c.b16 %v5329, %v5327
        %v5362 = vpack.c.b16 %v5330, %v5328
        %5395 = vmatprep.subr.bf16.mxu0 %v5332
        %5396 = vmatpush1.bf16.msra.mxu0 %v5331
        %5397 = vmatprep.subr.bf16.mxu0 %v5334
        %5398 = vmatpush1.bf16.msra.mxu0 %v5333
        %5399 = vmatprep.subr.bf16.mxu0 %v5336
        %5400 = vmatpush1.bf16.msra.mxu0 %v5335
        %5401 = vmatprep.subr.bf16.mxu0 %v5338
        %5402 = vmatpush1.bf16.msra.mxu0 %v5337
        %5403 = vmatprep.subr.bf16.mxu0 %v5340
        %5404 = vmatpush1.bf16.msra.mxu0 %v5339
        %5405 = vmatprep.subr.bf16.mxu0 %v5342
        %5406 = vmatpush1.bf16.msra.mxu0 %v5341
        %5407 = vmatprep.subr.bf16.mxu0 %v5344
        %5408 = vmatpush1.bf16.msra.mxu0 %v5343
        %5409 = vmatprep.subr.bf16.mxu0 %v5346
        %5410 = vmatpush1.bf16.msra.mxu0 %v5345
        %5411 = vmatprep.subr.bf16.mxu0 %v5348
        %5412 = vmatpush1.bf16.msra.mxu0 %v5347
        %5413 = vmatprep.subr.bf16.mxu0 %v5350
        %5414 = vmatpush1.bf16.msra.mxu0 %v5349
        %5415 = vmatprep.subr.bf16.mxu0 %v5352
        %5416 = vmatpush1.bf16.msra.mxu0 %v5351
        %5417 = vmatprep.subr.bf16.mxu0 %v5354
        %5418 = vmatpush1.bf16.msra.mxu0 %v5353
        %5419 = vmatprep.subr.bf16.mxu0 %v5356
        %5420 = vmatpush1.bf16.msra.mxu0 %v5355
        %5421 = vmatprep.subr.bf16.mxu0 %v5358
        %5422 = vmatpush1.bf16.msra.mxu0 %v5357
        %5423 = vmatprep.subr.bf16.mxu0 %v5360
        %5424 = vmatpush1.bf16.msra.mxu0 %v5359
        %5425 = vmatprep.subr.bf16.mxu0 %v5362
        %5426 = vmatpush1.bf16.msra.mxu0 %v5361
        %5427 = vmatprep.mubr.bf16.mxu0 %v5180
        %5428 = vmatmul.mubr.bf16.gmra.mrb[0].mxu0 %v5179
        %v5429 = vpop.f32.mrb[0].mxu0
        %v5430 = vadd.f32 %v5230, %v5429
        %v5431 = vpop.f32.mrb[0].mxu0
        %v5432 = vadd.f32 %v5234, %v5431
        %v5433 = vpop.f32.mrb[0].mxu0
        %v5434 = vpop.f32.mrb[0].mxu0
        %5435 = vdwg.mxu0
        %v5436 = vmax.f32 %v5430, 0.0
        %v5437 = vmax.f32 %v5432, 0.0
        %v5438 = vrot.slane %v5436, 4
        %v5439 = vadd.f32 %v5436, %v5438
        %v5440 = vrot.slane %v5439, 2
        %v5441 = vadd.f32 %v5439, %v5440
        %v5442 = vrot.slane %v5441, 1
        %v5443 = vadd.f32 %v5441, %v5442
        %v5444 = vrot.slane %v5437, 4
        %v5445 = vadd.f32 %v5437, %v5444
        %v5446 = vrot.slane %v5445, 2
        %v5447 = vadd.f32 %v5445, %v5446
        %v5448 = vrot.slane %v5447, 1
        %v5449 = vadd.f32 %v5447, %v5448
        %v5450 = vmul.f32 %v5436, %v5436
        %v5451 = vmul.f32 %v5437, %v5437
        %v5452 = vrot.slane %v5450, 4
        %v5453 = vadd.f32 %v5450, %v5452
        %v5454 = vrot.slane %v5453, 2
        %v5455 = vadd.f32 %v5453, %v5454
        %v5456 = vrot.slane %v5455, 1
        %v5457 = vadd.f32 %v5455, %v5456
        %v5458 = vrot.slane %v5451, 4
        %v5459 = vadd.f32 %v5451, %v5458
        %v5460 = vrot.slane %v5459, 2
        %v5461 = vadd.f32 %v5459, %v5460
        %v5462 = vrot.slane %v5461, 1
        %v5463 = vadd.f32 %v5461, %v5462
        %v5464 = vmul.f32 %v5443, 0.125
        %v5465 = vmul.f32 %v5449, 0.125
        %v5466 = vmul.f32 %v5457, 0.125
        %v5467 = vmul.f32 %v5463, 0.125
        %v5468 = vmul.f32 %v5464, %v5464
        %v5469 = vmul.f32 %v5465, %v5465
        %v5470 = vsub.f32 %v5466, %v5468
        %v5471 = vsub.f32 %v5467, %v5469
        %v5472 = vmax.f32 %v5470, 0.0
        %v5473 = vmax.f32 %v5471, 0.0
        %v5474 = vadd.f32 %v5472, 1e-05
        %v5475 = vadd.f32 %v5473, 1e-05
        %v5476 = vrsqrt.pop %v5474
        %v5477 = vrsqrt.pop %v5475
        %v5480 = vcombine.low %v5476, %v5477
        %v5481 = vrot.slane %v5480, 7
        %v5483 = vmul.f32 %v5215, %v5481
        %v5485 = vlaneseq
        %v5486 = vshrl.u32 %v5485, 7
        %v5487 = vsub.s32 1, %v5486
        %v5488 = vrot.slane %v5483, %v5487
        %v5489 = vlaneseq
        %v5490 = vshrl.u32 %v5489, 7
        %v5491 = vsub.s32 5, %v5490
        %v5492 = vrot.slane %v5483, %v5491
        %v5495 = vmul.f32 %v5464, %v5488
        %v5496 = vmul.f32 %v5465, %v5492
        %v5499 = vcombine.low %v5495, %v5496
        %v5500 = vrot.slane %v5499, 6
        %v5502 = vsub.f32 %v5215, %v5500
        %v5503 = vlaneseq
        %v5504 = vshrl.u32 %v5503, 7
        %v5505 = vsub.s32 1, %v5504
        %v5506 = vrot.slane %v5488, %v5505
        %v5507 = vlaneseq
        %v5508 = vshrl.u32 %v5507, 7
        %v5509 = vsub.s32 1, %v5508
        %v5510 = vrot.slane %v5492, %v5509
        %v5511 = vmul.f32 %v5436, %v5506
        %v5512 = vmul.f32 %v5437, %v5510
        %v5514 = vlaneseq
        %v5515 = vshrl.u32 %v5514, 7
        %v5516 = vsub.s32 2, %v5515
        %v5517 = vrot.slane %v5502, %v5516
        %v5518 = vlaneseq
        %v5519 = vshrl.u32 %v5518, 7
        %v5520 = vsub.s32 6, %v5519
        %v5521 = vrot.slane %v5502, %v5520
        %v5524 = vlaneseq
        %v5525 = vshrl.u32 %v5524, 7
        %v5526 = vsub.s32 2, %v5525
        %v5527 = vrot.slane %v5517, %v5526
        %v5528 = vlaneseq
        %v5529 = vshrl.u32 %v5528, 7
        %v5530 = vsub.s32 2, %v5529
        %v5531 = vrot.slane %v5521, %v5530
        %v5532 = vadd.f32 %v5511, %v5527
        %v5533 = vadd.f32 %v5512, %v5531
        %v5534 = vpack.c.bf16 %v5532, %v5532
        %v5535 = vpack.c.bf16 %v5533, %v5533
        %s5536 = scalar_lea.vmem %s331, 3072 [#allocation9]
        %v5537 = vld [vmem:[%s5536] sm:$0xff]
        %v5538 = vld [vmem:[%s5536 + $0x8] sm:$0xff]
        %v5539 = vld [vmem:[%s5536 + $0x10] sm:$0xff]
        %v5540 = vld [vmem:[%s5536 + $0x18] sm:$0xff]
        %v5541 = vld [vmem:[%s5536 + $0x20] sm:$0xff]
        %v5542 = vld [vmem:[%s5536 + $0x28] sm:$0xff]
        %v5543 = vld [vmem:[%s5536 + $0x30] sm:$0xff]
        %v5544 = vld [vmem:[%s5536 + $0x38] sm:$0xff]
        %v5545 = vld [vmem:[%s5536 + $0x40] sm:$0xff]
        %v5546 = vld [vmem:[%s5536 + $0x48] sm:$0xff]
        %v5547 = vld [vmem:[%s5536 + $0x50] sm:$0xff]
        %v5548 = vld [vmem:[%s5536 + $0x58] sm:$0xff]
        %v5549 = vld [vmem:[%s5536 + $0x60] sm:$0xff]
        %v5550 = vld [vmem:[%s5536 + $0x68] sm:$0xff]
        %v5551 = vld [vmem:[%s5536 + $0x70] sm:$0xff]
        %v5552 = vld [vmem:[%s5536 + $0x78] sm:$0xff]
        %v5553 = vld [vmem:[%s5536 + $0x80] sm:$0xff]
        %v5554 = vld [vmem:[%s5536 + $0x88] sm:$0xff]
        %v5555 = vld [vmem:[%s5536 + $0x90] sm:$0xff]
        %v5556 = vld [vmem:[%s5536 + $0x98] sm:$0xff]
        %v5557 = vld [vmem:[%s5536 + $0xa0] sm:$0xff]
        %v5558 = vld [vmem:[%s5536 + $0xa8] sm:$0xff]
        %v5559 = vld [vmem:[%s5536 + $0xb0] sm:$0xff]
        %v5560 = vld [vmem:[%s5536 + $0xb8] sm:$0xff]
        %v5561 = vld [vmem:[%s5536 + $0xc0] sm:$0xff]
        %v5562 = vld [vmem:[%s5536 + $0xc8] sm:$0xff]
        %v5563 = vld [vmem:[%s5536 + $0xd0] sm:$0xff]
        %v5564 = vld [vmem:[%s5536 + $0xd8] sm:$0xff]
        %v5565 = vld [vmem:[%s5536 + $0xe0] sm:$0xff]
        %v5566 = vld [vmem:[%s5536 + $0xe8] sm:$0xff]
        %v5567 = vld [vmem:[%s5536 + $0xf0] sm:$0xff]
        %v5568 = vld [vmem:[%s5536 + $0xf8] sm:$0xff]
        %s5569 = scalar_lea.vmem %s377, 96
        %v5570 = vld [vmem:[%s5569] sm:$0x77]
        %v5572 = vlaneseq
        %v5573 = vshrl.u32 %v5572, 7
        %v5574 = vsub.s32 0, %v5573
        %v5575 = vrot.slane %v5570, %v5574
        %v5576 = vlaneseq
        %v5577 = vshrl.u32 %v5576, 7
        %v5578 = vsub.s32 4, %v5577
        %v5579 = vrot.slane %v5570, %v5578
        %v5582 = vlaneseq
        %v5583 = vshrl.u32 %v5582, 7
        %v5584 = vsub.s32 0, %v5583
        %v5585 = vrot.slane %v5575, %v5584
        %v5586 = vlaneseq
        %v5587 = vshrl.u32 %v5586, 7
        %v5588 = vsub.s32 0, %v5587
        %v5589 = vrot.slane %v5579, %v5588
        %v5622 = vunpack.c.l.b16 %v5537
        %v5623 = vunpack.c.h.b16 %v5537
        %v5624 = vunpack.c.l.b16 %v5538
        %v5625 = vunpack.c.h.b16 %v5538
        %v5626 = vunpack.c.l.b16 %v5539
        %v5627 = vunpack.c.h.b16 %v5539
        %v5628 = vunpack.c.l.b16 %v5540
        %v5629 = vunpack.c.h.b16 %v5540
        %v5630 = vunpack.c.l.b16 %v5541
        %v5631 = vunpack.c.h.b16 %v5541
        %v5632 = vunpack.c.l.b16 %v5542
        %v5633 = vunpack.c.h.b16 %v5542
        %v5634 = vunpack.c.l.b16 %v5543
        %v5635 = vunpack.c.h.b16 %v5543
        %v5636 = vunpack.c.l.b16 %v5544
        %v5637 = vunpack.c.h.b16 %v5544
        %v5638 = vunpack.c.l.b16 %v5545
        %v5639 = vunpack.c.h.b16 %v5545
        %v5640 = vunpack.c.l.b16 %v5546
        %v5641 = vunpack.c.h.b16 %v5546
        %v5642 = vunpack.c.l.b16 %v5547
        %v5643 = vunpack.c.h.b16 %v5547
        %v5644 = vunpack.c.l.b16 %v5548
        %v5645 = vunpack.c.h.b16 %v5548
        %v5646 = vunpack.c.l.b16 %v5549
        %v5647 = vunpack.c.h.b16 %v5549
        %v5648 = vunpack.c.l.b16 %v5550
        %v5649 = vunpack.c.h.b16 %v5550
        %v5650 = vunpack.c.l.b16 %v5551
        %v5651 = vunpack.c.h.b16 %v5551
        %v5652 = vunpack.c.l.b16 %v5552
        %v5653 = vunpack.c.h.b16 %v5552
        %v5654 = vunpack.c.l.b16 %v5553
        %v5655 = vunpack.c.h.b16 %v5553
        %v5656 = vunpack.c.l.b16 %v5554
        %v5657 = vunpack.c.h.b16 %v5554
        %v5658 = vunpack.c.l.b16 %v5555
        %v5659 = vunpack.c.h.b16 %v5555
        %v5660 = vunpack.c.l.b16 %v5556
        %v5661 = vunpack.c.h.b16 %v5556
        %v5662 = vunpack.c.l.b16 %v5557
        %v5663 = vunpack.c.h.b16 %v5557
        %v5664 = vunpack.c.l.b16 %v5558
        %v5665 = vunpack.c.h.b16 %v5558
        %v5666 = vunpack.c.l.b16 %v5559
        %v5667 = vunpack.c.h.b16 %v5559
        %v5668 = vunpack.c.l.b16 %v5560
        %v5669 = vunpack.c.h.b16 %v5560
        %v5670 = vunpack.c.l.b16 %v5561
        %v5671 = vunpack.c.h.b16 %v5561
        %v5672 = vunpack.c.l.b16 %v5562
        %v5673 = vunpack.c.h.b16 %v5562
        %v5674 = vunpack.c.l.b16 %v5563
        %v5675 = vunpack.c.h.b16 %v5563
        %v5676 = vunpack.c.l.b16 %v5564
        %v5677 = vunpack.c.h.b16 %v5564
        %v5678 = vunpack.c.l.b16 %v5565
        %v5679 = vunpack.c.h.b16 %v5565
        %v5680 = vunpack.c.l.b16 %v5566
        %v5681 = vunpack.c.h.b16 %v5566
        %v5682 = vunpack.c.l.b16 %v5567
        %v5683 = vunpack.c.h.b16 %v5567
        %v5684 = vunpack.c.l.b16 %v5568
        %v5685 = vunpack.c.h.b16 %v5568
        %v5686 = vpack.c.b16 %v5624, %v5622
        %v5687 = vpack.c.b16 %v5625, %v5623
        %v5688 = vpack.c.b16 %v5628, %v5626
        %v5689 = vpack.c.b16 %v5629, %v5627
        %v5690 = vpack.c.b16 %v5632, %v5630
        %v5691 = vpack.c.b16 %v5633, %v5631
        %v5692 = vpack.c.b16 %v5636, %v5634
        %v5693 = vpack.c.b16 %v5637, %v5635
        %v5694 = vpack.c.b16 %v5640, %v5638
        %v5695 = vpack.c.b16 %v5641, %v5639
        %v5696 = vpack.c.b16 %v5644, %v5642
        %v5697 = vpack.c.b16 %v5645, %v5643
        %v5698 = vpack.c.b16 %v5648, %v5646
        %v5699 = vpack.c.b16 %v5649, %v5647
        %v5700 = vpack.c.b16 %v5652, %v5650
        %v5701 = vpack.c.b16 %v5653, %v5651
        %v5702 = vpack.c.b16 %v5656, %v5654
        %v5703 = vpack.c.b16 %v5657, %v5655
        %v5704 = vpack.c.b16 %v5660, %v5658
        %v5705 = vpack.c.b16 %v5661, %v5659
        %v5706 = vpack.c.b16 %v5664, %v5662
        %v5707 = vpack.c.b16 %v5665, %v5663
        %v5708 = vpack.c.b16 %v5668, %v5666
        %v5709 = vpack.c.b16 %v5669, %v5667
        %v5710 = vpack.c.b16 %v5672, %v5670
        %v5711 = vpack.c.b16 %v5673, %v5671
        %v5712 = vpack.c.b16 %v5676, %v5674
        %v5713 = vpack.c.b16 %v5677, %v5675
        %v5714 = vpack.c.b16 %v5680, %v5678
        %v5715 = vpack.c.b16 %v5681, %v5679
        %v5716 = vpack.c.b16 %v5684, %v5682
        %v5717 = vpack.c.b16 %v5685, %v5683
        %5750 = vmatprep.subr.bf16.mxu0 %v5687
        %5751 = vmatpush1.bf16.msra.mxu0 %v5686
        %5752 = vmatprep.subr.bf16.mxu0 %v5689
        %5753 = vmatpush1.bf16.msra.mxu0 %v5688
        %5754 = vmatprep.subr.bf16.mxu0 %v5691
        %5755 = vmatpush1.bf16.msra.mxu0 %v5690
        %5756 = vmatprep.subr.bf16.mxu0 %v5693
        %5757 = vmatpush1.bf16.msra.mxu0 %v5692
        %5758 = vmatprep.subr.bf16.mxu0 %v5695
        %5759 = vmatpush1.bf16.msra.mxu0 %v5694
        %5760 = vmatprep.subr.bf16.mxu0 %v5697
        %5761 = vmatpush1.bf16.msra.mxu0 %v5696
        %5762 = vmatprep.subr.bf16.mxu0 %v5699
        %5763 = vmatpush1.bf16.msra.mxu0 %v5698
        %5764 = vmatprep.subr.bf16.mxu0 %v5701
        %5765 = vmatpush1.bf16.msra.mxu0 %v5700
        %5766 = vmatprep.subr.bf16.mxu0 %v5703
        %5767 = vmatpush1.bf16.msra.mxu0 %v5702
        %5768 = vmatprep.subr.bf16.mxu0 %v5705
        %5769 = vmatpush1.bf16.msra.mxu0 %v5704
        %5770 = vmatprep.subr.bf16.mxu0 %v5707
        %5771 = vmatpush1.bf16.msra.mxu0 %v5706
        %5772 = vmatprep.subr.bf16.mxu0 %v5709
        %5773 = vmatpush1.bf16.msra.mxu0 %v5708
        %5774 = vmatprep.subr.bf16.mxu0 %v5711
        %5775 = vmatpush1.bf16.msra.mxu0 %v5710
        %5776 = vmatprep.subr.bf16.mxu0 %v5713
        %5777 = vmatpush1.bf16.msra.mxu0 %v5712
        %5778 = vmatprep.subr.bf16.mxu0 %v5715
        %5779 = vmatpush1.bf16.msra.mxu0 %v5714
        %5780 = vmatprep.subr.bf16.mxu0 %v5717
        %5781 = vmatpush1.bf16.msra.mxu0 %v5716
        %5782 = vmatprep.mubr.bf16.mxu0 %v5535
        %5783 = vmatmul.mubr.bf16.gmra.mrb[0].mxu0 %v5534
        %v5784 = vpop.f32.mrb[0].mxu0
        %v5785 = vadd.f32 %v5585, %v5784
        %v5786 = vpop.f32.mrb[0].mxu0
        %v5787 = vadd.f32 %v5589, %v5786
        %v5788 = vpop.f32.mrb[0].mxu0
        %v5789 = vpop.f32.mrb[0].mxu0
        %5790 = vdwg.mxu0
        %v5791 = vmax.f32 %v5785, 0.0
        %v5792 = vmax.f32 %v5787, 0.0
        %v5793 = vrot.slane %v5791, 4
        %v5794 = vadd.f32 %v5791, %v5793
        %v5795 = vrot.slane %v5794, 2
        %v5796 = vadd.f32 %v5794, %v5795
        %v5797 = vrot.slane %v5796, 1
        %v5798 = vadd.f32 %v5796, %v5797
        %v5799 = vrot.slane %v5792, 4
        %v5800 = vadd.f32 %v5792, %v5799
        %v5801 = vrot.slane %v5800, 2
        %v5802 = vadd.f32 %v5800, %v5801
        %v5803 = vrot.slane %v5802, 1
        %v5804 = vadd.f32 %v5802, %v5803
        %v5805 = vmul.f32 %v5791, %v5791
        %v5806 = vmul.f32 %v5792, %v5792
        %v5807 = vrot.slane %v5805, 4
        %v5808 = vadd.f32 %v5805, %v5807
        %v5809 = vrot.slane %v5808, 2
        %v5810 = vadd.f32 %v5808, %v5809
        %v5811 = vrot.slane %v5810, 1
        %v5812 = vadd.f32 %v5810, %v5811
        %v5813 = vrot.slane %v5806, 4
        %v5814 = vadd.f32 %v5806, %v5813
        %v5815 = vrot.slane %v5814, 2
        %v5816 = vadd.f32 %v5814, %v5815
        %v5817 = vrot.slane %v5816, 1
        %v5818 = vadd.f32 %v5816, %v5817
        %v5819 = vmul.f32 %v5798, 0.125
        %v5820 = vmul.f32 %v5804, 0.125
        %v5821 = vmul.f32 %v5812, 0.125
        %v5822 = vmul.f32 %v5818, 0.125
        %v5823 = vmul.f32 %v5819, %v5819
        %v5824 = vmul.f32 %v5820, %v5820
        %v5825 = vsub.f32 %v5821, %v5823
        %v5826 = vsub.f32 %v5822, %v5824
        %v5827 = vmax.f32 %v5825, 0.0
        %v5828 = vmax.f32 %v5826, 0.0
        %v5829 = vadd.f32 %v5827, 1e-05
        %v5830 = vadd.f32 %v5828, 1e-05
        %v5831 = vrsqrt.pop %v5829
        %v5832 = vrsqrt.pop %v5830
        %v5835 = vcombine.low %v5831, %v5832
        %v5836 = vrot.slane %v5835, 7
        %v5838 = vmul.f32 %v5570, %v5836
        %v5840 = vlaneseq
        %v5841 = vshrl.u32 %v5840, 7
        %v5842 = vsub.s32 1, %v5841
        %v5843 = vrot.slane %v5838, %v5842
        %v5844 = vlaneseq
        %v5845 = vshrl.u32 %v5844, 7
        %v5846 = vsub.s32 5, %v5845
        %v5847 = vrot.slane %v5838, %v5846
        %v5850 = vmul.f32 %v5819, %v5843
        %v5851 = vmul.f32 %v5820, %v5847
        %v5854 = vcombine.low %v5850, %v5851
        %v5855 = vrot.slane %v5854, 6
        %v5857 = vsub.f32 %v5570, %v5855
        %v5858 = vlaneseq
        %v5859 = vshrl.u32 %v5858, 7
        %v5860 = vsub.s32 1, %v5859
        %v5861 = vrot.slane %v5843, %v5860
        %v5862 = vlaneseq
        %v5863 = vshrl.u32 %v5862, 7
        %v5864 = vsub.s32 1, %v5863
        %v5865 = vrot.slane %v5847, %v5864
        %v5866 = vmul.f32 %v5791, %v5861
        %v5867 = vmul.f32 %v5792, %v5865
        %v5869 = vlaneseq
        %v5870 = vshrl.u32 %v5869, 7
        %v5871 = vsub.s32 2, %v5870
        %v5872 = vrot.slane %v5857, %v5871
        %v5873 = vlaneseq
        %v5874 = vshrl.u32 %v5873, 7
        %v5875 = vsub.s32 6, %v5874
        %v5876 = vrot.slane %v5857, %v5875
        %v5879 = vlaneseq
        %v5880 = vshrl.u32 %v5879, 7
        %v5881 = vsub.s32 2, %v5880
        %v5882 = vrot.slane %v5872, %v5881
        %v5883 = vlaneseq
        %v5884 = vshrl.u32 %v5883, 7
        %v5885 = vsub.s32 2, %v5884
        %v5886 = vrot.slane %v5876, %v5885
        %v5887 = vadd.f32 %v5866, %v5882
        %v5888 = vadd.f32 %v5867, %v5886
        %v5889 = vpack.c.bf16 %v5887, %v5887
        %v5890 = vpack.c.bf16 %v5888, %v5888
        %s5891 = scalar_lea.vmem %s331, 3328 [#allocation9]
        %v5892 = vld [vmem:[%s5891] sm:$0xff]
        %v5893 = vld [vmem:[%s5891 + $0x8] sm:$0xff]
        %v5894 = vld [vmem:[%s5891 + $0x10] sm:$0xff]
        %v5895 = vld [vmem:[%s5891 + $0x18] sm:$0xff]
        %v5896 = vld [vmem:[%s5891 + $0x20] sm:$0xff]
        %v5897 = vld [vmem:[%s5891 + $0x28] sm:$0xff]
        %v5898 = vld [vmem:[%s5891 + $0x30] sm:$0xff]
        %v5899 = vld [vmem:[%s5891 + $0x38] sm:$0xff]
        %v5900 = vld [vmem:[%s5891 + $0x40] sm:$0xff]
        %v5901 = vld [vmem:[%s5891 + $0x48] sm:$0xff]
        %v5902 = vld [vmem:[%s5891 + $0x50] sm:$0xff]
        %v5903 = vld [vmem:[%s5891 + $0x58] sm:$0xff]
        %v5904 = vld [vmem:[%s5891 + $0x60] sm:$0xff]
        %v5905 = vld [vmem:[%s5891 + $0x68] sm:$0xff]
        %v5906 = vld [vmem:[%s5891 + $0x70] sm:$0xff]
        %v5907 = vld [vmem:[%s5891 + $0x78] sm:$0xff]
        %v5908 = vld [vmem:[%s5891 + $0x80] sm:$0xff]
        %v5909 = vld [vmem:[%s5891 + $0x88] sm:$0xff]
        %v5910 = vld [vmem:[%s5891 + $0x90] sm:$0xff]
        %v5911 = vld [vmem:[%s5891 + $0x98] sm:$0xff]
        %v5912 = vld [vmem:[%s5891 + $0xa0] sm:$0xff]
        %v5913 = vld [vmem:[%s5891 + $0xa8] sm:$0xff]
        %v5914 = vld [vmem:[%s5891 + $0xb0] sm:$0xff]
        %v5915 = vld [vmem:[%s5891 + $0xb8] sm:$0xff]
        %v5916 = vld [vmem:[%s5891 + $0xc0] sm:$0xff]
        %v5917 = vld [vmem:[%s5891 + $0xc8] sm:$0xff]
        %v5918 = vld [vmem:[%s5891 + $0xd0] sm:$0xff]
        %v5919 = vld [vmem:[%s5891 + $0xd8] sm:$0xff]
        %v5920 = vld [vmem:[%s5891 + $0xe0] sm:$0xff]
        %v5921 = vld [vmem:[%s5891 + $0xe8] sm:$0xff]
        %v5922 = vld [vmem:[%s5891 + $0xf0] sm:$0xff]
        %v5923 = vld [vmem:[%s5891 + $0xf8] sm:$0xff]
        %s5924 = scalar_lea.vmem %s377, 104
        %v5925 = vld [vmem:[%s5924] sm:$0x77]
        %v5927 = vlaneseq
        %v5928 = vshrl.u32 %v5927, 7
        %v5929 = vsub.s32 0, %v5928
        %v5930 = vrot.slane %v5925, %v5929
        %v5931 = vlaneseq
        %v5932 = vshrl.u32 %v5931, 7
        %v5933 = vsub.s32 4, %v5932
        %v5934 = vrot.slane %v5925, %v5933
        %v5937 = vlaneseq
        %v5938 = vshrl.u32 %v5937, 7
        %v5939 = vsub.s32 0, %v5938
        %v5940 = vrot.slane %v5930, %v5939
        %v5941 = vlaneseq
        %v5942 = vshrl.u32 %v5941, 7
        %v5943 = vsub.s32 0, %v5942
        %v5944 = vrot.slane %v5934, %v5943
        %v5977 = vunpack.c.l.b16 %v5892
        %v5978 = vunpack.c.h.b16 %v5892
        %v5979 = vunpack.c.l.b16 %v5893
        %v5980 = vunpack.c.h.b16 %v5893
        %v5981 = vunpack.c.l.b16 %v5894
        %v5982 = vunpack.c.h.b16 %v5894
        %v5983 = vunpack.c.l.b16 %v5895
        %v5984 = vunpack.c.h.b16 %v5895
        %v5985 = vunpack.c.l.b16 %v5896
        %v5986 = vunpack.c.h.b16 %v5896
        %v5987 = vunpack.c.l.b16 %v5897
        %v5988 = vunpack.c.h.b16 %v5897
        %v5989 = vunpack.c.l.b16 %v5898
        %v5990 = vunpack.c.h.b16 %v5898
        %v5991 = vunpack.c.l.b16 %v5899
        %v5992 = vunpack.c.h.b16 %v5899
        %v5993 = vunpack.c.l.b16 %v5900
        %v5994 = vunpack.c.h.b16 %v5900
        %v5995 = vunpack.c.l.b16 %v5901
        %v5996 = vunpack.c.h.b16 %v5901
        %v5997 = vunpack.c.l.b16 %v5902
        %v5998 = vunpack.c.h.b16 %v5902
        %v5999 = vunpack.c.l.b16 %v5903
        %v6000 = vunpack.c.h.b16 %v5903
        %v6001 = vunpack.c.l.b16 %v5904
        %v6002 = vunpack.c.h.b16 %v5904
        %v6003 = vunpack.c.l.b16 %v5905
        %v6004 = vunpack.c.h.b16 %v5905
        %v6005 = vunpack.c.l.b16 %v5906
        %v6006 = vunpack.c.h.b16 %v5906
        %v6007 = vunpack.c.l.b16 %v5907
        %v6008 = vunpack.c.h.b16 %v5907
        %v6009 = vunpack.c.l.b16 %v5908
        %v6010 = vunpack.c.h.b16 %v5908
        %v6011 = vunpack.c.l.b16 %v5909
        %v6012 = vunpack.c.h.b16 %v5909
        %v6013 = vunpack.c.l.b16 %v5910
        %v6014 = vunpack.c.h.b16 %v5910
        %v6015 = vunpack.c.l.b16 %v5911
        %v6016 = vunpack.c.h.b16 %v5911
        %v6017 = vunpack.c.l.b16 %v5912
        %v6018 = vunpack.c.h.b16 %v5912
        %v6019 = vunpack.c.l.b16 %v5913
        %v6020 = vunpack.c.h.b16 %v5913
        %v6021 = vunpack.c.l.b16 %v5914
        %v6022 = vunpack.c.h.b16 %v5914
        %v6023 = vunpack.c.l.b16 %v5915
        %v6024 = vunpack.c.h.b16 %v5915
        %v6025 = vunpack.c.l.b16 %v5916
        %v6026 = vunpack.c.h.b16 %v5916
        %v6027 = vunpack.c.l.b16 %v5917
        %v6028 = vunpack.c.h.b16 %v5917
        %v6029 = vunpack.c.l.b16 %v5918
        %v6030 = vunpack.c.h.b16 %v5918
        %v6031 = vunpack.c.l.b16 %v5919
        %v6032 = vunpack.c.h.b16 %v5919
        %v6033 = vunpack.c.l.b16 %v5920
        %v6034 = vunpack.c.h.b16 %v5920
        %v6035 = vunpack.c.l.b16 %v5921
        %v6036 = vunpack.c.h.b16 %v5921
        %v6037 = vunpack.c.l.b16 %v5922
        %v6038 = vunpack.c.h.b16 %v5922
        %v6039 = vunpack.c.l.b16 %v5923
        %v6040 = vunpack.c.h.b16 %v5923
        %v6041 = vpack.c.b16 %v5979, %v5977
        %v6042 = vpack.c.b16 %v5980, %v5978
        %v6043 = vpack.c.b16 %v5983, %v5981
        %v6044 = vpack.c.b16 %v5984, %v5982
        %v6045 = vpack.c.b16 %v5987, %v5985
        %v6046 = vpack.c.b16 %v5988, %v5986
        %v6047 = vpack.c.b16 %v5991, %v5989
        %v6048 = vpack.c.b16 %v5992, %v5990
        %v6049 = vpack.c.b16 %v5995, %v5993
        %v6050 = vpack.c.b16 %v5996, %v5994
        %v6051 = vpack.c.b16 %v5999, %v5997
        %v6052 = vpack.c.b16 %v6000, %v5998
        %v6053 = vpack.c.b16 %v6003, %v6001
        %v6054 = vpack.c.b16 %v6004, %v6002
        %v6055 = vpack.c.b16 %v6007, %v6005
        %v6056 = vpack.c.b16 %v6008, %v6006
        %v6057 = vpack.c.b16 %v6011, %v6009
        %v6058 = vpack.c.b16 %v6012, %v6010
        %v6059 = vpack.c.b16 %v6015, %v6013
        %v6060 = vpack.c.b16 %v6016, %v6014
        %v6061 = vpack.c.b16 %v6019, %v6017
        %v6062 = vpack.c.b16 %v6020, %v6018
        %v6063 = vpack.c.b16 %v6023, %v6021
        %v6064 = vpack.c.b16 %v6024, %v6022
        %v6065 = vpack.c.b16 %v6027, %v6025
        %v6066 = vpack.c.b16 %v6028, %v6026
        %v6067 = vpack.c.b16 %v6031, %v6029
        %v6068 = vpack.c.b16 %v6032, %v6030
        %v6069 = vpack.c.b16 %v6035, %v6033
        %v6070 = vpack.c.b16 %v6036, %v6034
        %v6071 = vpack.c.b16 %v6039, %v6037
        %v6072 = vpack.c.b16 %v6040, %v6038
        %6105 = vmatprep.subr.bf16.mxu0 %v6042
        %6106 = vmatpush1.bf16.msra.mxu0 %v6041
        %6107 = vmatprep.subr.bf16.mxu0 %v6044
        %6108 = vmatpush1.bf16.msra.mxu0 %v6043
        %6109 = vmatprep.subr.bf16.mxu0 %v6046
        %6110 = vmatpush1.bf16.msra.mxu0 %v6045
        %6111 = vmatprep.subr.bf16.mxu0 %v6048
        %6112 = vmatpush1.bf16.msra.mxu0 %v6047
        %6113 = vmatprep.subr.bf16.mxu0 %v6050
        %6114 = vmatpush1.bf16.msra.mxu0 %v6049
        %6115 = vmatprep.subr.bf16.mxu0 %v6052
        %6116 = vmatpush1.bf16.msra.mxu0 %v6051
        %6117 = vmatprep.subr.bf16.mxu0 %v6054
        %6118 = vmatpush1.bf16.msra.mxu0 %v6053
        %6119 = vmatprep.subr.bf16.mxu0 %v6056
        %6120 = vmatpush1.bf16.msra.mxu0 %v6055
        %6121 = vmatprep.subr.bf16.mxu0 %v6058
        %6122 = vmatpush1.bf16.msra.mxu0 %v6057
        %6123 = vmatprep.subr.bf16.mxu0 %v6060
        %6124 = vmatpush1.bf16.msra.mxu0 %v6059
        %6125 = vmatprep.subr.bf16.mxu0 %v6062
        %6126 = vmatpush1.bf16.msra.mxu0 %v6061
        %6127 = vmatprep.subr.bf16.mxu0 %v6064
        %6128 = vmatpush1.bf16.msra.mxu0 %v6063
        %6129 = vmatprep.subr.bf16.mxu0 %v6066
        %6130 = vmatpush1.bf16.msra.mxu0 %v6065
        %6131 = vmatprep.subr.bf16.mxu0 %v6068
        %6132 = vmatpush1.bf16.msra.mxu0 %v6067
        %6133 = vmatprep.subr.bf16.mxu0 %v6070
        %6134 = vmatpush1.bf16.msra.mxu0 %v6069
        %6135 = vmatprep.subr.bf16.mxu0 %v6072
        %6136 = vmatpush1.bf16.msra.mxu0 %v6071
        %6137 = vmatprep.mubr.bf16.mxu0 %v5890
        %6138 = vmatmul.mubr.bf16.gmra.mrb[0].mxu0 %v5889
        %v6139 = vpop.f32.mrb[0].mxu0
        %v6140 = vadd.f32 %v5940, %v6139
        %v6141 = vpop.f32.mrb[0].mxu0
        %v6142 = vadd.f32 %v5944, %v6141
        %v6143 = vpop.f32.mrb[0].mxu0
        %v6144 = vpop.f32.mrb[0].mxu0
        %6145 = vdwg.mxu0
        %v6146 = vmax.f32 %v6140, 0.0
        %v6147 = vmax.f32 %v6142, 0.0
        %v6148 = vrot.slane %v6146, 4
        %v6149 = vadd.f32 %v6146, %v6148
        %v6150 = vrot.slane %v6149, 2
        %v6151 = vadd.f32 %v6149, %v6150
        %v6152 = vrot.slane %v6151, 1
        %v6153 = vadd.f32 %v6151, %v6152
        %v6154 = vrot.slane %v6147, 4
        %v6155 = vadd.f32 %v6147, %v6154
        %v6156 = vrot.slane %v6155, 2
        %v6157 = vadd.f32 %v6155, %v6156
        %v6158 = vrot.slane %v6157, 1
        %v6159 = vadd.f32 %v6157, %v6158
        %v6160 = vmul.f32 %v6146, %v6146
        %v6161 = vmul.f32 %v6147, %v6147
        %v6162 = vrot.slane %v6160, 4
        %v6163 = vadd.f32 %v6160, %v6162
        %v6164 = vrot.slane %v6163, 2
        %v6165 = vadd.f32 %v6163, %v6164
        %v6166 = vrot.slane %v6165, 1
        %v6167 = vadd.f32 %v6165, %v6166
        %v6168 = vrot.slane %v6161, 4
        %v6169 = vadd.f32 %v6161, %v6168
        %v6170 = vrot.slane %v6169, 2
        %v6171 = vadd.f32 %v6169, %v6170
        %v6172 = vrot.slane %v6171, 1
        %v6173 = vadd.f32 %v6171, %v6172
        %v6174 = vmul.f32 %v6153, 0.125
        %v6175 = vmul.f32 %v6159, 0.125
        %v6176 = vmul.f32 %v6167, 0.125
        %v6177 = vmul.f32 %v6173, 0.125
        %v6178 = vmul.f32 %v6174, %v6174
        %v6179 = vmul.f32 %v6175, %v6175
        %v6180 = vsub.f32 %v6176, %v6178
        %v6181 = vsub.f32 %v6177, %v6179
        %v6182 = vmax.f32 %v6180, 0.0
        %v6183 = vmax.f32 %v6181, 0.0
        %v6184 = vadd.f32 %v6182, 1e-05
        %v6185 = vadd.f32 %v6183, 1e-05
        %v6186 = vrsqrt.pop %v6184
        %v6187 = vrsqrt.pop %v6185
        %v6190 = vcombine.low %v6186, %v6187
        %v6191 = vrot.slane %v6190, 7
        %v6193 = vmul.f32 %v5925, %v6191
        %v6195 = vlaneseq
        %v6196 = vshrl.u32 %v6195, 7
        %v6197 = vsub.s32 1, %v6196
        %v6198 = vrot.slane %v6193, %v6197
        %v6199 = vlaneseq
        %v6200 = vshrl.u32 %v6199, 7
        %v6201 = vsub.s32 5, %v6200
        %v6202 = vrot.slane %v6193, %v6201
        %v6205 = vmul.f32 %v6174, %v6198
        %v6206 = vmul.f32 %v6175, %v6202
        %v6209 = vcombine.low %v6205, %v6206
        %v6210 = vrot.slane %v6209, 6
        %v6212 = vsub.f32 %v5925, %v6210
        %v6213 = vlaneseq
        %v6214 = vshrl.u32 %v6213, 7
        %v6215 = vsub.s32 1, %v6214
        %v6216 = vrot.slane %v6198, %v6215
        %v6217 = vlaneseq
        %v6218 = vshrl.u32 %v6217, 7
        %v6219 = vsub.s32 1, %v6218
        %v6220 = vrot.slane %v6202, %v6219
        %v6221 = vmul.f32 %v6146, %v6216
        %v6222 = vmul.f32 %v6147, %v6220
        %v6224 = vlaneseq
        %v6225 = vshrl.u32 %v6224, 7
        %v6226 = vsub.s32 2, %v6225
        %v6227 = vrot.slane %v6212, %v6226
        %v6228 = vlaneseq
        %v6229 = vshrl.u32 %v6228, 7
        %v6230 = vsub.s32 6, %v6229
        %v6231 = vrot.slane %v6212, %v6230
        %v6234 = vlaneseq
        %v6235 = vshrl.u32 %v6234, 7
        %v6236 = vsub.s32 2, %v6235
        %v6237 = vrot.slane %v6227, %v6236
        %v6238 = vlaneseq
        %v6239 = vshrl.u32 %v6238, 7
        %v6240 = vsub.s32 2, %v6239
        %v6241 = vrot.slane %v6231, %v6240
        %v6242 = vadd.f32 %v6221, %v6237
        %v6243 = vadd.f32 %v6222, %v6241
        %6244 = vst [vmem:[#allocation2] sm:$0xff] %v6242
        %6245 = vst [vmem:[#allocation2 + $0x8] sm:$0xff] %v6243
        %p6246 = scmp.eq.s32.totalorder %s25, 6
        // Predicated region
        $region77: #{tpu_custom_call.1} parent=47 // pred_check
          %p6247 = pneg %p6246
        $region78: #{tpu_custom_call.1} parent=47 // pred_check_branch
          %6249 = sbr.rel (%p6247) target = $region80
        $region79: #{tpu_custom_call.1} parent=47 // pred_region
          %v6250 = vpack.c.bf16 %v6242, %v6242
          %v6251 = vpack.c.bf16 %v6243, %v6243
          %v6252 = vld [vmem:[#allocation11] sm:$0xf]
          %v6253 = vld [vmem:[#allocation11 + $0x4] sm:$0xf]
          %v6254 = vld [vmem:[#allocation11 + $0x8] sm:$0xf]
          %v6255 = vld [vmem:[#allocation11 + $0xc] sm:$0xf]
          %v6256 = vld [vmem:[#allocation11 + $0x10] sm:$0xf]
          %v6257 = vld [vmem:[#allocation11 + $0x14] sm:$0xf]
          %v6258 = vld [vmem:[#allocation11 + $0x18] sm:$0xf]
          %v6259 = vld [vmem:[#allocation11 + $0x1c] sm:$0xf]
          %v6260 = vld [vmem:[#allocation11 + $0x20] sm:$0xf]
          %v6261 = vld [vmem:[#allocation11 + $0x24] sm:$0xf]
          %v6262 = vld [vmem:[#allocation11 + $0x28] sm:$0xf]
          %v6263 = vld [vmem:[#allocation11 + $0x2c] sm:$0xf]
          %v6264 = vld [vmem:[#allocation11 + $0x30] sm:$0xf]
          %v6265 = vld [vmem:[#allocation11 + $0x34] sm:$0xf]
          %v6266 = vld [vmem:[#allocation11 + $0x38] sm:$0xf]
          %v6267 = vld [vmem:[#allocation11 + $0x3c] sm:$0xf]
          %v6268 = vld [vmem:[#allocation11 + $0x40] sm:$0xf]
          %v6269 = vld [vmem:[#allocation11 + $0x44] sm:$0xf]
          %v6270 = vld [vmem:[#allocation11 + $0x48] sm:$0xf]
          %v6271 = vld [vmem:[#allocation11 + $0x4c] sm:$0xf]
          %v6272 = vld [vmem:[#allocation11 + $0x50] sm:$0xf]
          %v6273 = vld [vmem:[#allocation11 + $0x54] sm:$0xf]
          %v6274 = vld [vmem:[#allocation11 + $0x58] sm:$0xf]
          %v6275 = vld [vmem:[#allocation11 + $0x5c] sm:$0xf]
          %v6276 = vld [vmem:[#allocation11 + $0x60] sm:$0xf]
          %v6277 = vld [vmem:[#allocation11 + $0x64] sm:$0xf]
          %v6278 = vld [vmem:[#allocation11 + $0x68] sm:$0xf]
          %v6279 = vld [vmem:[#allocation11 + $0x6c] sm:$0xf]
          %v6280 = vld [vmem:[#allocation11 + $0x70] sm:$0xf]
          %v6281 = vld [vmem:[#allocation11 + $0x74] sm:$0xf]
          %v6282 = vld [vmem:[#allocation11 + $0x78] sm:$0xf]
          %v6283 = vld [vmem:[#allocation11 + $0x7c] sm:$0xf]
          %v6284 = vld [vmem:[#allocation12] sm:$0x1]
          %v6286 = vlaneseq
          %v6287 = vshrl.u32 %v6286, 7
          %v6288 = vsub.s32 0, %v6287
          %v6289 = vrot.slane %v6284, %v6288
          %v6323 = vunpack.c.l.b16 %v6252
          %v6324 = vunpack.c.l.b16 %v6253
          %v6325 = vunpack.c.l.b16 %v6254
          %v6326 = vunpack.c.l.b16 %v6255
          %v6327 = vunpack.c.l.b16 %v6256
          %v6328 = vunpack.c.l.b16 %v6257
          %v6329 = vunpack.c.l.b16 %v6258
          %v6330 = vunpack.c.l.b16 %v6259
          %v6331 = vunpack.c.l.b16 %v6260
          %v6332 = vunpack.c.l.b16 %v6261
          %v6333 = vunpack.c.l.b16 %v6262
          %v6334 = vunpack.c.l.b16 %v6263
          %v6335 = vunpack.c.l.b16 %v6264
          %v6336 = vunpack.c.l.b16 %v6265
          %v6337 = vunpack.c.l.b16 %v6266
          %v6338 = vunpack.c.l.b16 %v6267
          %v6339 = vunpack.c.l.b16 %v6268
          %v6340 = vunpack.c.l.b16 %v6269
          %v6341 = vunpack.c.l.b16 %v6270
          %v6342 = vunpack.c.l.b16 %v6271
          %v6343 = vunpack.c.l.b16 %v6272
          %v6344 = vunpack.c.l.b16 %v6273
          %v6345 = vunpack.c.l.b16 %v6274
          %v6346 = vunpack.c.l.b16 %v6275
          %v6347 = vunpack.c.l.b16 %v6276
          %v6348 = vunpack.c.l.b16 %v6277
          %v6349 = vunpack.c.l.b16 %v6278
          %v6350 = vunpack.c.l.b16 %v6279
          %v6351 = vunpack.c.l.b16 %v6280
          %v6352 = vunpack.c.l.b16 %v6281
          %v6353 = vunpack.c.l.b16 %v6282
          %v6354 = vunpack.c.l.b16 %v6283
          %v6355 = vpack.c.b16 %v6324, %v6323
          %v6356 = vpack.c.b16 %v6326, %v6325
          %v6357 = vpack.c.b16 %v6328, %v6327
          %v6358 = vpack.c.b16 %v6330, %v6329
          %v6359 = vpack.c.b16 %v6332, %v6331
          %v6360 = vpack.c.b16 %v6334, %v6333
          %v6361 = vpack.c.b16 %v6336, %v6335
          %v6362 = vpack.c.b16 %v6338, %v6337
          %v6363 = vpack.c.b16 %v6340, %v6339
          %v6364 = vpack.c.b16 %v6342, %v6341
          %v6365 = vpack.c.b16 %v6344, %v6343
          %v6366 = vpack.c.b16 %v6346, %v6345
          %v6367 = vpack.c.b16 %v6348, %v6347
          %v6368 = vpack.c.b16 %v6350, %v6349
          %v6369 = vpack.c.b16 %v6352, %v6351
          %v6370 = vpack.c.b16 %v6354, %v6353
          %6387 = vmatprep.subr.bf16.mxu0 0
          %6388 = vmatpush1.bf16.msra.mxu0 %v6355
          %6389 = vmatprep.subr.bf16.mxu0 0
          %6390 = vmatpush1.bf16.msra.mxu0 %v6356
          %6391 = vmatprep.subr.bf16.mxu0 0
          %6392 = vmatpush1.bf16.msra.mxu0 %v6357
          %6393 = vmatprep.subr.bf16.mxu0 0
          %6394 = vmatpush1.bf16.msra.mxu0 %v6358
          %6395 = vmatprep.subr.bf16.mxu0 0
          %6396 = vmatpush1.bf16.msra.mxu0 %v6359
          %6397 = vmatprep.subr.bf16.mxu0 0
          %6398 = vmatpush1.bf16.msra.mxu0 %v6360
          %6399 = vmatprep.subr.bf16.mxu0 0
          %6400 = vmatpush1.bf16.msra.mxu0 %v6361
          %6401 = vmatprep.subr.bf16.mxu0 0
          %6402 = vmatpush1.bf16.msra.mxu0 %v6362
          %6403 = vmatprep.subr.bf16.mxu0 0
          %6404 = vmatpush1.bf16.msra.mxu0 %v6363
          %6405 = vmatprep.subr.bf16.mxu0 0
          %6406 = vmatpush1.bf16.msra.mxu0 %v6364
          %6407 = vmatprep.subr.bf16.mxu0 0
          %6408 = vmatpush1.bf16.msra.mxu0 %v6365
          %6409 = vmatprep.subr.bf16.mxu0 0
          %6410 = vmatpush1.bf16.msra.mxu0 %v6366
          %6411 = vmatprep.subr.bf16.mxu0 0
          %6412 = vmatpush1.bf16.msra.mxu0 %v6367
          %6413 = vmatprep.subr.bf16.mxu0 0
          %6414 = vmatpush1.bf16.msra.mxu0 %v6368
          %6415 = vmatprep.subr.bf16.mxu0 0
          %6416 = vmatpush1.bf16.msra.mxu0 %v6369
          %6417 = vmatprep.subr.bf16.mxu0 0
          %6418 = vmatpush1.bf16.msra.mxu0 %v6370
          %6419 = vmatprep.mubr.bf16.mxu0 %v6251
          %6420 = vmatmul.mubr.bf16.gmra.mrb[0].mxu0 %v6250
          %v6421 = vpop.f32.mrb[0].mxu0
          %v6422 = vadd.f32 %v6289, %v6421
          %v6423 = vpop.f32.mrb[0].mxu0
          %v6424 = vpop.f32.mrb[0].mxu0
          %v6425 = vpop.f32.mrb[0].mxu0
          %6426 = vdwg.mxu0
          %6427 = vst [vmem:[#allocation14] sm:$0xff] %v6422
        $region80: #{tpu_custom_call.1} parent=47 // pred_fallthru
          _
        // Predicated region
        $region81: #{tpu_custom_call.1} parent=47 // pred_check
          %p6428 = pneg %p195
        $region82: #{tpu_custom_call.1} parent=47 // pred_check_branch
          %6430 = sbr.rel (%p6428) target = $region84
        $region83: #{tpu_custom_call.1} parent=47 // pred_region
          %s6432 = ssub.s32 128, 128
          %6433 = vsyncadd [#allocation5], %s6432
          %s6435 = sshll.u32 [#allocation14], 4
          %s6436 = int_to_ptr.vmem [resolvable:$true] %s6435
          %6438 = dma.vmem_to_hbm [thread:$0]  %s6436, 128, %s7, [#allocation5]
        $region84: #{tpu_custom_call.1} parent=47 // pred_fallthru
          _
        // Predicated region
        $region85: #{tpu_custom_call.1} parent=47 // pred_check
          %p6439 = pneg %p195
        $region86: #{tpu_custom_call.1} parent=47 // pred_check_branch
          %6441 = sbr.rel (%p6439) target = $region88
        $region87: #{tpu_custom_call.1} parent=47 // pred_region
          %6442 = dma.done [#allocation5], 128
        $region88: #{tpu_custom_call.1} parent=47 // pred_fallthru
          _
      $region48: #{tpu_custom_call.1} parent=5 // pred_fallthru
        _
      %p6443 = scmp.le.s32.totalorder 2, %s20
      // Predicated region
      $region89: #{tpu_custom_call.1} parent=5 // pred_check
        %p6444 = pneg %p6443
      $region90: #{tpu_custom_call.1} parent=5 // pred_check_branch
        %6446 = sbr.rel (%p6444) target = $region92
      $region91: #{tpu_custom_call.1} parent=5 // pred_region
        %s6447 = ssub.s32 %s20, 2
      $region92: #{tpu_custom_call.1} parent=5 // pred_fallthru
        _
    $region6: #{tpu_custom_call.1} parent=1 // loop_footer
      %s24 = sadd.s32 1, %s20
    $region7: #{tpu_custom_call.1} parent=1 // loop_footer_branch
      %19 = sbr.rel target = $region3
    $region8: #{tpu_custom_call.1} parent=1 // loop_exit
      _
    %6448 = vsyncpa [#allocation4], 1
    %s6449 = scalar_lea.sflag [#allocation4], 1
    %6450 = vsyncpa %s6449, 1
    %6451 = vsyncpa [#allocation7], 1
    %6452 = vsyncpa [#allocation10], 1
    %s6453 = scalar_lea.sflag [#allocation10], 1
    %6454 = vsyncpa %s6453, 1
    %6455 = vsyncpa [#allocation13], 1
    %6456 = vsyncpa [#allocation5], 1
    %s6457 = scalar_lea.sflag [#allocation5], 1
    %6458 = vsyncpa %s6457, 1

</llo_original>
